<compile_context>
chip_gen: v7x
topology: tpu7x:2x2x1
jax: 0.10.0
libtpu: 0.0.40
codegen_flags: <defaults>
</compile_context>

<pallas_src>
import math
import functools

import jax
import jax.numpy as jnp
from jax import lax
from jax.experimental import pallas as pl
from jax.experimental.pallas import tpu as pltpu


# ------------------------------ tiling helpers ------------------------------

def _row_tile(n, target):
    """Tile for a second-to-last (sublane) dim: multiple of 8, or the full dim."""
    if n <= target:
        return n
    for t in range(target, 7, -1):
        if n % t == 0 and t % 8 == 0:
            return t
    return n


def _lane_tile(n, target):
    """Tile for a last (lane) dim: multiple of 128, or the full dim."""
    if n <= target:
        return n
    t = (target // 128) * 128
    while t >= 128:
        if n % t == 0:
            return t
        t -= 128
    return n


# ------------------------------ in-kernel math ------------------------------

def _gelu_f32(x):
    # nanoGPT "new gelu" (tanh approximation), kept in f32 (v5e has no bf16 VPU/EUP).
    return 0.5 * x * (1.0 + jnp.tanh(math.sqrt(2.0 / math.pi) * (x + 0.044715 * x ** 3)))


def _layernorm_f32(x, w, b):
    mu = jnp.mean(x, axis=-1, keepdims=True)
    var = jnp.mean((x - mu) ** 2, axis=-1, keepdims=True)
    return (x - mu) * lax.rsqrt(var + 1e-5) * w + b


# ---------------- kernel 1: fused ln1 + qkv projection + head split ----------

def _ln_qkv_kernel(x_ref, lnw_ref, lnb_ref, w_ref, b_ref, q_ref, k_ref, v_ref):
    # x_ref: (1, tseq, D)   w_ref: (D, 3D)   q/k/v_ref: (1, nh, tseq, hd)
    nh, hd = q_ref.shape[1], q_ref.shape[3]
    D = x_ref.shape[2]
    x = x_ref[0].astype(jnp.float32)
    a = _layernorm_f32(x, lnw_ref[...], lnb_ref[...]).astype(w_ref.dtype)
    qkv = jnp.dot(a, w_ref[...], preferred_element_type=jnp.float32) + b_ref[...]
    # static, unrolled head split written directly in (head, seq, hd) layout
    # (keeps the XLA transpose out of HBM; all slicing is VMEM-local).
    for h in range(nh):
        q_ref[0, h] = qkv[:, h * hd:(h + 1) * hd].astype(q_ref.dtype)
        k_ref[0, h] = qkv[:, D + h * hd:D + (h + 1) * hd].astype(k_ref.dtype)
        v_ref[0, h] = qkv[:, 2 * D + h * hd:2 * D + (h + 1) * hd].astype(v_ref.dtype)


def fused_ln_qkv(x, ln_w, ln_b, w, b, n_head, tseq):
    B, T, D = x.shape
    hd = D // n_head
    head_shape = jax.ShapeDtypeStruct((B, n_head, T, hd), x.dtype)
    head_spec = pl.BlockSpec((1, n_head, tseq, hd), lambda b_, t: (b_, 0, t, 0))
    return pl.pallas_call(
        _ln_qkv_kernel,
        out_shape=(head_shape, head_shape, head_shape),
        grid=(B, T // tseq),
        in_specs=[
            pl.BlockSpec((1, tseq, D), lambda b_, t: (b_, t, 0)),
            pl.BlockSpec((1, D), lambda b_, t: (0, 0)),
            pl.BlockSpec((1, D), lambda b_, t: (0, 0)),
            pl.BlockSpec((D, 3 * D), lambda b_, t: (0, 0)),   # resident weights
            pl.BlockSpec((1, 3 * D), lambda b_, t: (0, 0)),
        ],
        out_specs=(head_spec, head_spec, head_spec),
        compiler_params=pltpu.CompilerParams(
            dimension_semantics=("parallel", "parallel")),
    )(x, ln_w.reshape(1, D), ln_b.reshape(1, D), w, b.reshape(1, 3 * D))


# ------------------- kernel 2: flash-style causal attention ------------------

def _flash_attn_kernel(q_ref, k_ref, v_ref, o_ref, m_sc, l_sc, acc_sc,
                       *, scale, approx_recip):
    qi, kj = pl.program_id(1), pl.program_id(2)
    tq, tk = q_ref.shape[1], k_ref.shape[1]

    @pl.when(kj == 0)
    def _init():
        m_sc[...] = jnp.full(m_sc.shape, -1e30, jnp.float32)
        l_sc[...] = jnp.zeros(l_sc.shape, jnp.float32)
        acc_sc[...] = jnp.zeros(acc_sc.shape, jnp.float32)

    # Skip KV tiles that lie entirely above the causal diagonal.
    @pl.when(kj * tk <= qi * tq + (tq - 1))
    def _compute():
        # q @ k^T via dot_general contracting head_dim (no explicit transpose).
        s = lax.dot_general(q_ref[0], k_ref[0], (((1,), (1,)), ((), ())),
                            preferred_element_type=jnp.float32) * scale
        row = qi * tq + lax.broadcasted_iota(jnp.int32, (tq, tk), 0)
        col = kj * tk + lax.broadcasted_iota(jnp.int32, (tq, tk), 1)
        s = jnp.where(col <= row, s, -1e30)
        m_prev = m_sc[...]
        m_new = jnp.maximum(m_prev, jnp.max(s, axis=-1, keepdims=True))
        alpha = jnp.exp(m_prev - m_new)
        p = jnp.exp(s - m_new)
        l_sc[...] = alpha * l_sc[...] + jnp.sum(p, axis=-1, keepdims=True)
        acc_sc[...] = alpha * acc_sc[...] + jnp.dot(
            p.astype(v_ref.dtype), v_ref[0], preferred_element_type=jnp.float32)
        m_sc[...] = m_new

    @pl.when(kj == pl.num_programs(2) - 1)
    def _finalize():
        inv = pl.reciprocal(l_sc[...], approx=approx_recip)
        o_ref[0] = (acc_sc[...] * inv).astype(o_ref.dtype)


def flash_attention(q, k, v, *, approx_recip=False):
    # q, k, v: (B * n_head, T, hd)
    BH, T, hd = q.shape
    tq = _row_tile(T, 128)
    tk = tq
    kern = functools.partial(_flash_attn_kernel,
                             scale=1.0 / math.sqrt(hd),
                             approx_recip=approx_recip)
    return pl.pallas_call(
        kern,
        out_shape=jax.ShapeDtypeStruct((BH, T, hd), q.dtype),
        grid=(BH, T // tq, T // tk),
        in_specs=[pl.BlockSpec((1, tq, hd), lambda b, i, j: (b, i, 0)),
                  pl.BlockSpec((1, tk, hd), lambda b, i, j: (b, j, 0)),
                  pl.BlockSpec((1, tk, hd), lambda b, i, j: (b, j, 0))],
        out_specs=pl.BlockSpec((1, tq, hd), lambda b, i, j: (b, i, 0)),
        scratch_shapes=[pltpu.VMEM((tq, 1), jnp.float32),   # running max m
                        pltpu.VMEM((tq, 1), jnp.float32),   # running sum l
                        pltpu.VMEM((tq, hd), jnp.float32)], # output accumulator
        compiler_params=pltpu.CompilerParams(
            dimension_semantics=("parallel", "parallel", "arbitrary")),
    )(q, k, v)


# --------------- kernel 3: attn output proj + residual (head merge) ----------

def _attn_proj_kernel(y_ref, x_ref, w_ref, b_ref, o_ref):
    # y_ref: (1, nh, tseq, hd) attention output; x_ref: (1, tseq, D) residual.
    nh, hd = y_ref.shape[1], y_ref.shape[3]
    acc = x_ref[0].astype(jnp.float32) + b_ref[...]
    # head merge done as per-head partial matmuls against row slabs of W_proj
    # (no host-side (B, nh, T, hd) -> (B, T, D) transpose through HBM).
    for h in range(nh):
        acc = acc + jnp.dot(y_ref[0, h], w_ref[h * hd:(h + 1) * hd, :],
                            preferred_element_type=jnp.float32)
    o_ref[0] = acc.astype(o_ref.dtype)


def attn_proj_residual(y_heads, x, w, b, tseq):
    B, nh, T, hd = y_heads.shape
    D = x.shape[-1]
    return pl.pallas_call(
        _attn_proj_kernel,
        out_shape=jax.ShapeDtypeStruct((B, T, D), x.dtype),
        grid=(B, T // tseq),
        in_specs=[pl.BlockSpec((1, nh, tseq, hd), lambda b_, t: (b_, 0, t, 0)),
                  pl.BlockSpec((1, tseq, D), lambda b_, t: (b_, t, 0)),
                  pl.BlockSpec((D, D), lambda b_, t: (0, 0)),     # resident
                  pl.BlockSpec((1, D), lambda b_, t: (0, 0))],
        out_specs=pl.BlockSpec((1, tseq, D), lambda b_, t: (b_, t, 0)),
        compiler_params=pltpu.CompilerParams(
            dimension_semantics=("parallel", "parallel")),
    )(y_heads, x, w, b.reshape(1, D))


# ---------- kernel 4: fused ln2 + MLP + residual, H-tiled with accumulator ---

def _ln_mlp_kernel(x_ref, lnw_ref, lnb_ref, wfc_ref, bfc_ref, wpr_ref, bpr_ref,
                   o_ref, a_sc, acc_sc):
    hi = pl.program_id(1)

    @pl.when(hi == 0)
    def _init():
        x = x_ref[...].astype(jnp.float32)
        a_sc[...] = _layernorm_f32(x, lnw_ref[...], lnb_ref[...]).astype(a_sc.dtype)
        acc_sc[...] = x + bpr_ref[...]       # residual + c_proj bias, added once

    h = jnp.dot(a_sc[...], wfc_ref[...],
                preferred_element_type=jnp.float32) + bfc_ref[...]
    h = _gelu_f32(h).astype(wpr_ref.dtype)
    acc_sc[...] += jnp.dot(h, wpr_ref[...], preferred_element_type=jnp.float32)

    @pl.when(hi == pl.num_programs(1) - 1)
    def _finalize():
        o_ref[...] = acc_sc[...].astype(o_ref.dtype)


def fused_ln_mlp_residual(x2d, ln_w, ln_b, w_fc, b_fc, w_pr, b_pr, *, tm, th):
    M, D = x2d.shape
    H = w_fc.shape[1]
    return pl.pallas_call(
        _ln_mlp_kernel,
        out_shape=jax.ShapeDtypeStruct((M, D), x2d.dtype),
        grid=(M // tm, H // th),
        in_specs=[
            pl.BlockSpec((tm, D), lambda i, h: (i, 0)),
            pl.BlockSpec((1, D), lambda i, h: (0, 0)),
            pl.BlockSpec((1, D), lambda i, h: (0, 0)),
            pl.BlockSpec((D, th), lambda i, h: (0, h)),
            pl.BlockSpec((1, th), lambda i, h: (0, h)),
            pl.BlockSpec((th, D), lambda i, h: (h, 0)),
            pl.BlockSpec((1, D), lambda i, h: (0, 0)),
        ],
        out_specs=pl.BlockSpec((tm, D), lambda i, h: (i, 0)),
        scratch_shapes=[pltpu.VMEM((tm, D), x2d.dtype),      # LN(x), reused over H
                        pltpu.VMEM((tm, D), jnp.float32)],   # f32 accumulator
        compiler_params=pltpu.CompilerParams(
            dimension_semantics=("parallel", "arbitrary")),
    )(x2d, ln_w.reshape(1, D), ln_b.reshape(1, D),
      w_fc, b_fc.reshape(1, H), w_pr, b_pr.reshape(1, D))


# -------- kernel 5: fused ln_f + tied lm_head (vocab-tiled, no wte.T copy) ----

def _ln_lmhead_kernel(x_ref, lnw_ref, lnb_ref, w_ref, o_ref):
    x = x_ref[...].astype(jnp.float32)                      # (B, D) last positions
    xn = _layernorm_f32(x, lnw_ref[...], lnb_ref[...]).astype(w_ref.dtype)
    # contract on D against wte (V, D) directly — no transposed weight in HBM
    o_ref[...] = lax.dot_general(xn, w_ref[...], (((1,), (1,)), ((), ())),
                                 preferred_element_type=jnp.float32
                                 ).astype(o_ref.dtype)


def fused_lnf_lm_head(x_last, ln_w, ln_b, wte, *, tv):
    B, D = x_last.shape
    V = wte.shape[0]
    # TODO(synk): for real GPT-2 vocab (50257) pad V to a multiple of 128 so the
    # vocab axis can be tiled lane-dense instead of falling back to a full block.
    return pl.pallas_call(
        _ln_lmhead_kernel,
        out_shape=jax.ShapeDtypeStruct((B, V), jnp.float32),
        grid=(V // tv,),
        in_specs=[pl.BlockSpec((B, D), lambda j: (0, 0)),
                  pl.BlockSpec((1, D), lambda j: (0, 0)),
                  pl.BlockSpec((1, D), lambda j: (0, 0)),
                  pl.BlockSpec((tv, D), lambda j: (j, 0))],
        out_specs=pl.BlockSpec((B, tv), lambda j: (0, j)),
        compiler_params=pltpu.CompilerParams(dimension_semantics=("parallel",)),
    )(x_last, ln_w.reshape(1, D), ln_b.reshape(1, D), wte)


# ------------------------------ model wrapper --------------------------------

def init_params(key, *, vocab_size, block_size, n_layer, n_head, n_embd):
    D = n_embd
    std = 0.02
    proj_std = 0.02 / math.sqrt(2 * n_layer)
    keys = iter(jax.random.split(key, 4 + 8 * n_layer))

    def nrm(shape, s):
        return s * jax.random.normal(next(keys), shape, dtype=jnp.float32)

    params = {
        "wte": nrm((vocab_size, D), std),        # tied with lm_head
        "wpe": nrm((block_size, D), std),
        "ln_f_w": jnp.ones((D,), jnp.float32),
        "ln_f_b": jnp.zeros((D,), jnp.float32),
        "blocks": [],
    }
    for _ in range(n_layer):
        params["blocks"].append({
            "ln1_w": jnp.ones((D,), jnp.float32),
            "ln1_b": jnp.zeros((D,), jnp.float32),
            "attn_w": nrm((D, 3 * D), std),
            "attn_b": jnp.zeros((3 * D,), jnp.float32),
            "attn_proj_w": nrm((D, D), proj_std),
            "attn_proj_b": jnp.zeros((D,), jnp.float32),
            "ln2_w": jnp.ones((D,), jnp.float32),
            "ln2_b": jnp.zeros((D,), jnp.float32),
            "mlp_fc_w": nrm((D, 4 * D), std),
            "mlp_fc_b": jnp.zeros((4 * D,), jnp.float32),
            "mlp_proj_w": nrm((4 * D, D), proj_std),
            "mlp_proj_b": jnp.zeros((D,), jnp.float32),
        })
    return params


def block_forward(x, p, *, n_head, approx_recip):
    B, T, D = x.shape
    hd = D // n_head
    tseq = _row_tile(T, 256)

    # attention branch (fused ln1 + qkv, flash attention, fused proj + residual)
    q, k, v = fused_ln_qkv(x, p["ln1_w"], p["ln1_b"], p["attn_w"], p["attn_b"],
                           n_head, tseq)
    y = flash_attention(q.reshape(B * n_head, T, hd),
                        k.reshape(B * n_head, T, hd),
                        v.reshape(B * n_head, T, hd),
                        approx_recip=approx_recip)
    x = attn_proj_residual(y.reshape(B, n_head, T, hd), x,
                           p["attn_proj_w"], p["attn_proj_b"], tseq)

    # MLP branch (fused ln2 + fc + gelu + proj + residual, H as reduction axis)
    M = B * T
    tm = _row_tile(M, 256)
    th = _lane_tile(p["mlp_fc_w"].shape[1], 512)
    x2 = fused_ln_mlp_residual(x.reshape(M, D), p["ln2_w"], p["ln2_b"],
                               p["mlp_fc_w"], p["mlp_fc_b"],
                               p["mlp_proj_w"], p["mlp_proj_b"], tm=tm, th=th)
    return x2.reshape(B, T, D)


def blame_gpt_forward(params, idx, *, n_head, compute_dtype=jnp.float32):
    # inference mode (targets=None): returns (logits (B, 1, vocab), loss=None)
    # TODO(synk): training branch (cross-entropy over all positions) not implemented.
    B, T = idx.shape
    V, D = params["wte"].shape
    approx_recip = compute_dtype == jnp.bfloat16

    if compute_dtype != jnp.float32:
        # cast matmul operands (2-D weights) to the compute dtype; keep 1-D
        # layernorm params / biases in f32 (stats & adds stay f32, v5e-safe).
        params = jax.tree_util.tree_map(
            lambda a: a.astype(compute_dtype) if a.ndim >= 2 else a, params)

    tok_emb = jnp.take(params["wte"], idx, axis=0)            # (B, T, D)
    pos_emb = params["wpe"][:T]                               # (T, D)
    x = (tok_emb + pos_emb[None]).astype(compute_dtype)       # dropout(p=0) = id

    for p in params["blocks"]:
        x = block_forward(x, p, n_head=n_head, approx_recip=approx_recip)

    # ln_f + tied lm_head only on the last position (inference path)
    x_last = x[:, -1, :]                                      # (B, D)
    tv = _lane_tile(V, 2048)
    logits = fused_lnf_lm_head(x_last, params["ln_f_w"], params["ln_f_b"],
                               params["wte"], tv=tv)
    return logits.reshape(B, 1, V), None


# ------------------------- pure-JAX reference check --------------------------

def _ref_forward(params, idx, *, n_head):
    B, T = idx.shape
    D = params["wte"].shape[1]
    hd = D // n_head

    def ln(x, w, b):
        m = x.mean(-1, keepdims=True)
        v = ((x - m) ** 2).mean(-1, keepdims=True)
        return (x - m) * lax.rsqrt(v + 1e-5) * w + b

    def gelu(x):
        return 0.5 * x * (1.0 + jnp.tanh(math.sqrt(2.0 / math.pi) * (x + 0.044715 * x ** 3)))

    x = jnp.take(params["wte"], idx, axis=0) + params["wpe"][:T][None]
    for p in params["blocks"]:
        h = ln(x, p["ln1_w"], p["ln1_b"])
        qkv = h @ p["attn_w"] + p["attn_b"]
        q, k, v = jnp.split(qkv, 3, axis=-1)
        q = q.reshape(B, T, n_head, hd).transpose(0, 2, 1, 3)
        k = k.reshape(B, T, n_head, hd).transpose(0, 2, 1, 3)
        v = v.reshape(B, T, n_head, hd).transpose(0, 2, 1, 3)
        att = jnp.einsum("bhqd,bhkd->bhqk", q, k) / math.sqrt(hd)
        mask = jnp.tril(jnp.ones((T, T), bool))
        att = jnp.where(mask, att, -jnp.inf)
        att = jax.nn.softmax(att, axis=-1)
        y = jnp.einsum("bhqk,bhkd->bhqd", att, v)
        y = y.transpose(0, 2, 1, 3).reshape(B, T, D)
        x = x + (y @ p["attn_proj_w"] + p["attn_proj_b"])
        h = ln(x, p["ln2_w"], p["ln2_b"])
        x = x + (gelu(h @ p["mlp_fc_w"] + p["mlp_fc_b"]) @ p["mlp_proj_w"] + p["mlp_proj_b"])
    x = ln(x, params["ln_f_w"], params["ln_f_b"])
    return x[:, -1:, :] @ params["wte"].T


# ---------------------------------- main --------------------------------------

if __name__ == "__main__":
    # small config consistent with the module
    vocab_size, block_size = 64, 16
    n_layer, n_head, n_embd = 2, 4, 32
    B, T = 2, 8

    key = jax.random.PRNGKey(0)
    kp, ki = jax.random.split(key)
    params = init_params(kp, vocab_size=vocab_size, block_size=block_size,
                         n_layer=n_layer, n_head=n_head, n_embd=n_embd)
    idx = jax.random.randint(ki, (B, T), 0, vocab_size, dtype=jnp.int32)

    ref = _ref_forward(params, idx, n_head=n_head)

    # f32 path: strict check against the pure-JAX reference
    fwd = jax.jit(functools.partial(blame_gpt_forward, n_head=n_head,
                                    compute_dtype=jnp.float32))
    logits, loss = fwd(params, idx)
    logits = jax.block_until_ready(logits)
    assert logits.shape == (B, 1, vocab_size) and loss is None
    assert jnp.allclose(logits, ref, atol=1e-4, rtol=1e-4), "f32 mismatch vs reference"

    # bf16 path: bf16 matmul operands, f32 accumulation / stats -> loose check
    fwd_bf16 = jax.jit(functools.partial(blame_gpt_forward, n_head=n_head,
                                         compute_dtype=jnp.bfloat16))
    logits_bf16, _ = fwd_bf16(params, idx)
    logits_bf16 = jax.block_until_ready(logits_bf16)
    assert logits_bf16.shape == (B, 1, vocab_size)
    assert jnp.allclose(logits_bf16, ref, atol=5e-2, rtol=5e-2), "bf16 mismatch vs reference"

    print("KERNEL_OK")
</pallas_src>

<mosaic_0001>
module attributes {stable_mosaic.version = 11 : i64} {
  func.func @_ln_qkv_kernel(%arg0: i32, %arg1: i32, %arg2: memref<1x8x32xf32, #tpu.memory_space<vmem>>, %arg3: memref<1x32xf32, #tpu.memory_space<vmem>>, %arg4: memref<1x32xf32, #tpu.memory_space<vmem>>, %arg5: memref<32x96xf32, #tpu.memory_space<vmem>>, %arg6: memref<1x96xf32, #tpu.memory_space<vmem>>, %arg7: memref<1x4x8x8xf32, #tpu.memory_space<vmem>>, %arg8: memref<1x4x8x8xf32, #tpu.memory_space<vmem>>, %arg9: memref<1x4x8x8xf32, #tpu.memory_space<vmem>>) attributes {dimension_semantics = [#tpu.dimension_semantics<parallel>, #tpu.dimension_semantics<parallel>], iteration_bounds = array<i64: 2, 1>, scalar_prefetch = 0 : i64, scratch_operands = 0 : i64, tpu.core_type = #tpu.core_type<tc>, window_params = [{transform_indices = @transform_0, window_bounds = array<i64: 1, 8, 32>}, {pipeline_mode = #tpu.pipeline_mode<synchronous>, transform_indices = @transform_1, window_bounds = array<i64: 1, 32>}, {pipeline_mode = #tpu.pipeline_mode<synchronous>, transform_indices = @transform_2, window_bounds = array<i64: 1, 32>}, {pipeline_mode = #tpu.pipeline_mode<synchronous>, transform_indices = @transform_3, window_bounds = array<i64: 32, 96>}, {pipeline_mode = #tpu.pipeline_mode<synchronous>, transform_indices = @transform_4, window_bounds = array<i64: 1, 96>}, {transform_indices = @transform_5, window_bounds = array<i64: 1, 4, 8, 8>}, {transform_indices = @transform_6, window_bounds = array<i64: 1, 4, 8, 8>}, {transform_indices = @transform_7, window_bounds = array<i64: 1, 4, 8, 8>}]} {
    %c0 = arith.constant 0 : index
    %c0_0 = arith.constant 0 : index
    %c0_1 = arith.constant 0 : index
    %0 = vector.load %arg2[%c0, %c0_0, %c0_1] : memref<1x8x32xf32, #tpu.memory_space<vmem>>, vector<1x8x32xf32>
    %1 = vector.shape_cast %0 : vector<1x8x32xf32> to vector<8x32xf32>
    %c0_2 = arith.constant 0 : index
    %c0_3 = arith.constant 0 : index
    %2 = vector.load %arg3[%c0_2, %c0_3] : memref<1x32xf32, #tpu.memory_space<vmem>>, vector<1x32xf32>
    %c0_4 = arith.constant 0 : index
    %c0_5 = arith.constant 0 : index
    %3 = vector.load %arg4[%c0_4, %c0_5] : memref<1x32xf32, #tpu.memory_space<vmem>>, vector<1x32xf32>
    %cst = arith.constant dense<0.000000e+00> : vector<8xf32>
    %4 = vector.multi_reduction <add>, %1, %cst [1] : vector<8x32xf32> to vector<8xf32>
    %5 = vector.shape_cast %4 : vector<8xf32> to vector<8x1xf32>
    %cst_6 = arith.constant 3.200000e+01 : f32
    %6 = vector.broadcast %cst_6 : f32 to vector<8x1xf32>
    %7 = arith.divf %5, %6 : vector<8x1xf32>
    %8 = vector.broadcast %7 : vector<8x1xf32> to vector<8x32xf32>
    %9 = arith.subf %1, %8 : vector<8x32xf32>
    %10 = arith.mulf %9, %9 : vector<8x32xf32>
    %cst_7 = arith.constant dense<0.000000e+00> : vector<8xf32>
    %11 = vector.multi_reduction <add>, %10, %cst_7 [1] : vector<8x32xf32> to vector<8xf32>
    %12 = vector.shape_cast %11 : vector<8xf32> to vector<8x1xf32>
    %cst_8 = arith.constant 3.200000e+01 : f32
    %13 = vector.broadcast %cst_8 : f32 to vector<8x1xf32>
    %14 = arith.divf %12, %13 : vector<8x1xf32>
    %15 = vector.broadcast %7 : vector<8x1xf32> to vector<8x32xf32>
    %16 = arith.subf %1, %15 : vector<8x32xf32>
    %cst_9 = arith.constant 9.99999974E-6 : f32
    %17 = vector.broadcast %cst_9 : f32 to vector<8x1xf32>
    %18 = arith.addf %14, %17 : vector<8x1xf32>
    %19 = math.rsqrt %18 : vector<8x1xf32>
    %20 = vector.broadcast %19 : vector<8x1xf32> to vector<8x32xf32>
    %21 = arith.mulf %16, %20 : vector<8x32xf32>
    %22 = vector.broadcast %2 : vector<1x32xf32> to vector<8x32xf32>
    %23 = arith.mulf %21, %22 : vector<8x32xf32>
    %24 = vector.broadcast %3 : vector<1x32xf32> to vector<8x32xf32>
    %25 = arith.addf %23, %24 : vector<8x32xf32>
    %c0_10 = arith.constant 0 : index
    %c0_11 = arith.constant 0 : index
    %26 = vector.load %arg5[%c0_10, %c0_11] : memref<32x96xf32, #tpu.memory_space<vmem>>, vector<32x96xf32>
    %cst_12 = arith.constant dense<0.000000e+00> : vector<8x96xf32>
    %27 = tpu.matmul %25, %26, %cst_12 {dimension_numbers = #tpu.dot_dimension_numbers<[1], [0], [0], [1], [0, 0, 1, 1], [], []>} : vector<8x32xf32>, vector<32x96xf32>, vector<8x96xf32> -> vector<8x96xf32>
    %c0_13 = arith.constant 0 : index
    %c0_14 = arith.constant 0 : index
    %28 = vector.load %arg6[%c0_13, %c0_14] : memref<1x96xf32, #tpu.memory_space<vmem>>, vector<1x96xf32>
    %29 = vector.broadcast %28 : vector<1x96xf32> to vector<8x96xf32>
    %30 = arith.addf %27, %29 : vector<8x96xf32>
    %31 = vector.extract_strided_slice %30 {offsets = [0, 0], sizes = [8, 8], strides = [1, 1]} : vector<8x96xf32> to vector<8x8xf32>
    %c0_15 = arith.constant 0 : index
    %c0_16 = arith.constant 0 : index
    %c0_17 = arith.constant 0 : index
    %c0_18 = arith.constant 0 : index
    %32 = vector.load %arg7[%c0_15, %c0_16, %c0_17, %c0_18] : memref<1x4x8x8xf32, #tpu.memory_space<vmem>>, vector<1x1x8x8xf32>
    %33 = vector.shape_cast %32 : vector<1x1x8x8xf32> to vector<8x8xf32>
    %34 = vector.shape_cast %31 : vector<8x8xf32> to vector<1x1x8x8xf32>
    tpu.vector_store %arg7[%c0_15, %c0_16, %c0_17, %c0_18], %34 {strides = array<i32>} : memref<1x4x8x8xf32, #tpu.memory_space<vmem>>, vector<1x1x8x8xf32>,
    %35 = vector.extract_strided_slice %30 {offsets = [0, 32], sizes = [8, 8], strides = [1, 1]} : vector<8x96xf32> to vector<8x8xf32>
    %c0_19 = arith.constant 0 : index
    %c0_20 = arith.constant 0 : index
    %c0_21 = arith.constant 0 : index
    %c0_22 = arith.constant 0 : index
    %36 = vector.load %arg8[%c0_19, %c0_20, %c0_21, %c0_22] : memref<1x4x8x8xf32, #tpu.memory_space<vmem>>, vector<1x1x8x8xf32>
    %37 = vector.shape_cast %36 : vector<1x1x8x8xf32> to vector<8x8xf32>
    %38 = vector.shape_cast %35 : vector<8x8xf32> to vector<1x1x8x8xf32>
    tpu.vector_store %arg8[%c0_19, %c0_20, %c0_21, %c0_22], %38 {strides = array<i32>} : memref<1x4x8x8xf32, #tpu.memory_space<vmem>>, vector<1x1x8x8xf32>,
    %39 = vector.extract_strided_slice %30 {offsets = [0, 64], sizes = [8, 8], strides = [1, 1]} : vector<8x96xf32> to vector<8x8xf32>
    %c0_23 = arith.constant 0 : index
    %c0_24 = arith.constant 0 : index
    %c0_25 = arith.constant 0 : index
    %c0_26 = arith.constant 0 : index
    %40 = vector.load %arg9[%c0_23, %c0_24, %c0_25, %c0_26] : memref<1x4x8x8xf32, #tpu.memory_space<vmem>>, vector<1x1x8x8xf32>
    %41 = vector.shape_cast %40 : vector<1x1x8x8xf32> to vector<8x8xf32>
    %42 = vector.shape_cast %39 : vector<8x8xf32> to vector<1x1x8x8xf32>
    tpu.vector_store %arg9[%c0_23, %c0_24, %c0_25, %c0_26], %42 {strides = array<i32>} : memref<1x4x8x8xf32, #tpu.memory_space<vmem>>, vector<1x1x8x8xf32>,
    %43 = vector.extract_strided_slice %30 {offsets = [0, 8], sizes = [8, 8], strides = [1, 1]} : vector<8x96xf32> to vector<8x8xf32>
    %c0_27 = arith.constant 0 : index
    %c1 = arith.constant 1 : index
    %c0_28 = arith.constant 0 : index
    %c0_29 = arith.constant 0 : index
    %44 = vector.load %arg7[%c0_27, %c1, %c0_28, %c0_29] : memref<1x4x8x8xf32, #tpu.memory_space<vmem>>, vector<1x1x8x8xf32>
    %45 = vector.shape_cast %44 : vector<1x1x8x8xf32> to vector<8x8xf32>
    %46 = vector.shape_cast %43 : vector<8x8xf32> to vector<1x1x8x8xf32>
    tpu.vector_store %arg7[%c0_27, %c1, %c0_28, %c0_29], %46 {strides = array<i32>} : memref<1x4x8x8xf32, #tpu.memory_space<vmem>>, vector<1x1x8x8xf32>,
    %47 = vector.extract_strided_slice %30 {offsets = [0, 40], sizes = [8, 8], strides = [1, 1]} : vector<8x96xf32> to vector<8x8xf32>
    %c0_30 = arith.constant 0 : index
    %c1_31 = arith.constant 1 : index
    %c0_32 = arith.constant 0 : index
    %c0_33 = arith.constant 0 : index
    %48 = vector.load %arg8[%c0_30, %c1_31, %c0_32, %c0_33] : memref<1x4x8x8xf32, #tpu.memory_space<vmem>>, vector<1x1x8x8xf32>
    %49 = vector.shape_cast %48 : vector<1x1x8x8xf32> to vector<8x8xf32>
    %50 = vector.shape_cast %47 : vector<8x8xf32> to vector<1x1x8x8xf32>
    tpu.vector_store %arg8[%c0_30, %c1_31, %c0_32, %c0_33], %50 {strides = array<i32>} : memref<1x4x8x8xf32, #tpu.memory_space<vmem>>, vector<1x1x8x8xf32>,
    %51 = vector.extract_strided_slice %30 {offsets = [0, 72], sizes = [8, 8], strides = [1, 1]} : vector<8x96xf32> to vector<8x8xf32>
    %c0_34 = arith.constant 0 : index
    %c1_35 = arith.constant 1 : index
    %c0_36 = arith.constant 0 : index
    %c0_37 = arith.constant 0 : index
    %52 = vector.load %arg9[%c0_34, %c1_35, %c0_36, %c0_37] : memref<1x4x8x8xf32, #tpu.memory_space<vmem>>, vector<1x1x8x8xf32>
    %53 = vector.shape_cast %52 : vector<1x1x8x8xf32> to vector<8x8xf32>
    %54 = vector.shape_cast %51 : vector<8x8xf32> to vector<1x1x8x8xf32>
    tpu.vector_store %arg9[%c0_34, %c1_35, %c0_36, %c0_37], %54 {strides = array<i32>} : memref<1x4x8x8xf32, #tpu.memory_space<vmem>>, vector<1x1x8x8xf32>,
    %55 = vector.extract_strided_slice %30 {offsets = [0, 16], sizes = [8, 8], strides = [1, 1]} : vector<8x96xf32> to vector<8x8xf32>
    %c0_38 = arith.constant 0 : index
    %c2 = arith.constant 2 : index
    %c0_39 = arith.constant 0 : index
    %c0_40 = arith.constant 0 : index
    %56 = vector.load %arg7[%c0_38, %c2, %c0_39, %c0_40] : memref<1x4x8x8xf32, #tpu.memory_space<vmem>>, vector<1x1x8x8xf32>
    %57 = vector.shape_cast %56 : vector<1x1x8x8xf32> to vector<8x8xf32>
    %58 = vector.shape_cast %55 : vector<8x8xf32> to vector<1x1x8x8xf32>
    tpu.vector_store %arg7[%c0_38, %c2, %c0_39, %c0_40], %58 {strides = array<i32>} : memref<1x4x8x8xf32, #tpu.memory_space<vmem>>, vector<1x1x8x8xf32>,
    %59 = vector.extract_strided_slice %30 {offsets = [0, 48], sizes = [8, 8], strides = [1, 1]} : vector<8x96xf32> to vector<8x8xf32>
    %c0_41 = arith.constant 0 : index
    %c2_42 = arith.constant 2 : index
    %c0_43 = arith.constant 0 : index
    %c0_44 = arith.constant 0 : index
    %60 = vector.load %arg8[%c0_41, %c2_42, %c0_43, %c0_44] : memref<1x4x8x8xf32, #tpu.memory_space<vmem>>, vector<1x1x8x8xf32>
    %61 = vector.shape_cast %60 : vector<1x1x8x8xf32> to vector<8x8xf32>
    %62 = vector.shape_cast %59 : vector<8x8xf32> to vector<1x1x8x8xf32>
    tpu.vector_store %arg8[%c0_41, %c2_42, %c0_43, %c0_44], %62 {strides = array<i32>} : memref<1x4x8x8xf32, #tpu.memory_space<vmem>>, vector<1x1x8x8xf32>,
    %63 = vector.extract_strided_slice %30 {offsets = [0, 80], sizes = [8, 8], strides = [1, 1]} : vector<8x96xf32> to vector<8x8xf32>
    %c0_45 = arith.constant 0 : index
    %c2_46 = arith.constant 2 : index
    %c0_47 = arith.constant 0 : index
    %c0_48 = arith.constant 0 : index
    %64 = vector.load %arg9[%c0_45, %c2_46, %c0_47, %c0_48] : memref<1x4x8x8xf32, #tpu.memory_space<vmem>>, vector<1x1x8x8xf32>
    %65 = vector.shape_cast %64 : vector<1x1x8x8xf32> to vector<8x8xf32>
    %66 = vector.shape_cast %63 : vector<8x8xf32> to vector<1x1x8x8xf32>
    tpu.vector_store %arg9[%c0_45, %c2_46, %c0_47, %c0_48], %66 {strides = array<i32>} : memref<1x4x8x8xf32, #tpu.memory_space<vmem>>, vector<1x1x8x8xf32>,
    %67 = vector.extract_strided_slice %30 {offsets = [0, 24], sizes = [8, 8], strides = [1, 1]} : vector<8x96xf32> to vector<8x8xf32>
    %c0_49 = arith.constant 0 : index
    %c3 = arith.constant 3 : index
    %c0_50 = arith.constant 0 : index
    %c0_51 = arith.constant 0 : index
    %68 = vector.load %arg7[%c0_49, %c3, %c0_50, %c0_51] : memref<1x4x8x8xf32, #tpu.memory_space<vmem>>, vector<1x1x8x8xf32>
    %69 = vector.shape_cast %68 : vector<1x1x8x8xf32> to vector<8x8xf32>
    %70 = vector.shape_cast %67 : vector<8x8xf32> to vector<1x1x8x8xf32>
    tpu.vector_store %arg7[%c0_49, %c3, %c0_50, %c0_51], %70 {strides = array<i32>} : memref<1x4x8x8xf32, #tpu.memory_space<vmem>>, vector<1x1x8x8xf32>,
    %71 = vector.extract_strided_slice %30 {offsets = [0, 56], sizes = [8, 8], strides = [1, 1]} : vector<8x96xf32> to vector<8x8xf32>
    %c0_52 = arith.constant 0 : index
    %c3_53 = arith.constant 3 : index
    %c0_54 = arith.constant 0 : index
    %c0_55 = arith.constant 0 : index
    %72 = vector.load %arg8[%c0_52, %c3_53, %c0_54, %c0_55] : memref<1x4x8x8xf32, #tpu.memory_space<vmem>>, vector<1x1x8x8xf32>
    %73 = vector.shape_cast %72 : vector<1x1x8x8xf32> to vector<8x8xf32>
    %74 = vector.shape_cast %71 : vector<8x8xf32> to vector<1x1x8x8xf32>
    tpu.vector_store %arg8[%c0_52, %c3_53, %c0_54, %c0_55], %74 {strides = array<i32>} : memref<1x4x8x8xf32, #tpu.memory_space<vmem>>, vector<1x1x8x8xf32>,
    %75 = vector.extract_strided_slice %30 {offsets = [0, 88], sizes = [8, 8], strides = [1, 1]} : vector<8x96xf32> to vector<8x8xf32>
    %c0_56 = arith.constant 0 : index
    %c3_57 = arith.constant 3 : index
    %c0_58 = arith.constant 0 : index
    %c0_59 = arith.constant 0 : index
    %76 = vector.load %arg9[%c0_56, %c3_57, %c0_58, %c0_59] : memref<1x4x8x8xf32, #tpu.memory_space<vmem>>, vector<1x1x8x8xf32>
    %77 = vector.shape_cast %76 : vector<1x1x8x8xf32> to vector<8x8xf32>
    %78 = vector.shape_cast %75 : vector<8x8xf32> to vector<1x1x8x8xf32>
    tpu.vector_store %arg9[%c0_56, %c3_57, %c0_58, %c0_59], %78 {strides = array<i32>} : memref<1x4x8x8xf32, #tpu.memory_space<vmem>>, vector<1x1x8x8xf32>,
    return
  }
  func.func @transform_0(%arg0: i32, %arg1: i32) -> (i32, i32, i32) {
    %c0_i32 = arith.constant 0 : i32
    %c0_i32_0 = arith.constant 0 : i32
    return %arg0, %arg1, %c0_i32 : i32, i32, i32
  }
  func.func @transform_1(%arg0: i32, %arg1: i32) -> (i32, i32) {
    %c0_i32 = arith.constant 0 : i32
    %c0_i32_0 = arith.constant 0 : i32
    %c0_i32_1 = arith.constant 0 : i32
    return %c0_i32, %c0_i32_0 : i32, i32
  }
  func.func @transform_2(%arg0: i32, %arg1: i32) -> (i32, i32) {
    %c0_i32 = arith.constant 0 : i32
    %c0_i32_0 = arith.constant 0 : i32
    %c0_i32_1 = arith.constant 0 : i32
    return %c0_i32, %c0_i32_0 : i32, i32
  }
  func.func @transform_3(%arg0: i32, %arg1: i32) -> (i32, i32) {
    %c0_i32 = arith.constant 0 : i32
    %c0_i32_0 = arith.constant 0 : i32
    %c0_i32_1 = arith.constant 0 : i32
    return %c0_i32, %c0_i32_0 : i32, i32
  }
  func.func @transform_4(%arg0: i32, %arg1: i32) -> (i32, i32) {
    %c0_i32 = arith.constant 0 : i32
    %c0_i32_0 = arith.constant 0 : i32
    %c0_i32_1 = arith.constant 0 : i32
    return %c0_i32, %c0_i32_0 : i32, i32
  }
  func.func @transform_5(%arg0: i32, %arg1: i32) -> (i32, i32, i32, i32) {
    %c0_i32 = arith.constant 0 : i32
    %c0_i32_0 = arith.constant 0 : i32
    %c0_i32_1 = arith.constant 0 : i32
    return %arg0, %c0_i32, %arg1, %c0_i32_0 : i32, i32, i32, i32
  }
  func.func @transform_6(%arg0: i32, %arg1: i32) -> (i32, i32, i32, i32) {
    %c0_i32 = arith.constant 0 : i32
    %c0_i32_0 = arith.constant 0 : i32
    %c0_i32_1 = arith.constant 0 : i32
    return %arg0, %c0_i32, %arg1, %c0_i32_0 : i32, i32, i32, i32
  }
  func.func @transform_7(%arg0: i32, %arg1: i32) -> (i32, i32, i32, i32) {
    %c0_i32 = arith.constant 0 : i32
    %c0_i32_0 = arith.constant 0 : i32
    %c0_i32_1 = arith.constant 0 : i32
    return %arg0, %c0_i32, %arg1, %c0_i32_0 : i32, i32, i32, i32
  }
}

module attributes {stable_mosaic.version = 11 : i64} {
  func.func @_flash_attn_kernel(%arg0: i32, %arg1: i32, %arg2: i32, %arg3: memref<1x8x8xf32, #tpu.memory_space<vmem>>, %arg4: memref<1x8x8xf32, #tpu.memory_space<vmem>>, %arg5: memref<1x8x8xf32, #tpu.memory_space<vmem>>, %arg6: memref<1x8x8xf32, #tpu.memory_space<vmem>>, %arg7: memref<8x1xf32, #tpu.memory_space<vmem>>, %arg8: memref<8x1xf32, #tpu.memory_space<vmem>>, %arg9: memref<8x8xf32, #tpu.memory_space<vmem>>) attributes {dimension_semantics = [#tpu.dimension_semantics<parallel>, #tpu.dimension_semantics<parallel>, #tpu.dimension_semantics<arbitrary>], iteration_bounds = array<i64: 8, 1, 1>, scalar_prefetch = 0 : i64, scratch_operands = 3 : i64, tpu.core_type = #tpu.core_type<tc>, window_params = [{transform_indices = @transform_0, window_bounds = array<i64: 1, 8, 8>}, {transform_indices = @transform_1, window_bounds = array<i64: 1, 8, 8>}, {transform_indices = @transform_2, window_bounds = array<i64: 1, 8, 8>}, {transform_indices = @transform_3, window_bounds = array<i64: 1, 8, 8>}]} {
    %c0_i32 = arith.constant 0 : i32
    %0 = arith.cmpi eq, %arg2, %c0_i32 : i32
    %1 = arith.extui %0 : i1 to i32
    %c0_i32_0 = arith.constant 0 : i32
    %2 = arith.cmpi ne, %1, %c0_i32_0 : i32
    scf.if %2 {
      %cst = arith.constant -1.000000e+30 : f32
      %12 = vector.broadcast %cst : f32 to vector<8x1xf32>
      %c0 = arith.constant 0 : index
      %c0_5 = arith.constant 0 : index
      %13 = vector.load %arg7[%c0, %c0_5] : memref<8x1xf32, #tpu.memory_space<vmem>>, vector<8x1xf32>
      tpu.vector_store %arg7[%c0, %c0_5], %12 {strides = array<i32>} : memref<8x1xf32, #tpu.memory_space<vmem>>, vector<8x1xf32>,
      %cst_6 = arith.constant 0.000000e+00 : f32
      %14 = vector.broadcast %cst_6 : f32 to vector<8x1xf32>
      %c0_7 = arith.constant 0 : index
      %c0_8 = arith.constant 0 : index
      %15 = vector.load %arg8[%c0_7, %c0_8] : memref<8x1xf32, #tpu.memory_space<vmem>>, vector<8x1xf32>
      tpu.vector_store %arg8[%c0_7, %c0_8], %14 {strides = array<i32>} : memref<8x1xf32, #tpu.memory_space<vmem>>, vector<8x1xf32>,
      %cst_9 = arith.constant 0.000000e+00 : f32
      %16 = vector.broadcast %cst_9 : f32 to vector<8x8xf32>
      %c0_10 = arith.constant 0 : index
      %c0_11 = arith.constant 0 : index
      %17 = vector.load %arg9[%c0_10, %c0_11] : memref<8x8xf32, #tpu.memory_space<vmem>>, vector<8x8xf32>
      tpu.vector_store %arg9[%c0_10, %c0_11], %16 {strides = array<i32>} : memref<8x8xf32, #tpu.memory_space<vmem>>, vector<8x8xf32>,
    } else {
    }
    %c8_i32 = arith.constant 8 : i32
    %3 = arith.muli %arg2, %c8_i32 : i32
    %c8_i32_1 = arith.constant 8 : i32
    %4 = arith.muli %arg1, %c8_i32_1 : i32
    %c7_i32 = arith.constant 7 : i32
    %5 = arith.addi %4, %c7_i32 : i32
    %6 = arith.cmpi sle, %3, %5 : i32
    %7 = arith.extui %6 : i1 to i32
    %c0_i32_2 = arith.constant 0 : i32
    %8 = arith.cmpi ne, %7, %c0_i32_2 : i32
    scf.if %8 {
      %c0 = arith.constant 0 : index
      %c0_5 = arith.constant 0 : index
      %c0_6 = arith.constant 0 : index
      %12 = vector.load %arg3[%c0, %c0_5, %c0_6] : memref<1x8x8xf32, #tpu.memory_space<vmem>>, vector<1x8x8xf32>
      %13 = vector.shape_cast %12 : vector<1x8x8xf32> to vector<8x8xf32>
      %c0_7 = arith.constant 0 : index
      %c0_8 = arith.constant 0 : index
      %c0_9 = arith.constant 0 : index
      %14 = vector.load %arg4[%c0_7, %c0_8, %c0_9] : memref<1x8x8xf32, #tpu.memory_space<vmem>>, vector<1x8x8xf32>
      %15 = vector.shape_cast %14 : vector<1x8x8xf32> to vector<8x8xf32>
      %cst = arith.constant dense<0.000000e+00> : vector<8x8xf32>
      %16 = tpu.matmul %13, %15, %cst {dimension_numbers = #tpu.dot_dimension_numbers<[1], [1], [0], [0], [0, 0, 1, 0], [], []>} : vector<8x8xf32>, vector<8x8xf32>, vector<8x8xf32> -> vector<8x8xf32>
      %cst_10 = arith.constant 0.353553385 : f32
      %17 = vector.broadcast %cst_10 : f32 to vector<8x8xf32>
      %18 = arith.mulf %16, %17 : vector<8x8xf32>
      %c8_i32_11 = arith.constant 8 : i32
      %19 = arith.muli %arg1, %c8_i32_11 : i32
      %20 = tpu.iota {dimensions = array<i32: 0>} : vector<8x8xi32>
      %21 = vector.broadcast %19 : i32 to vector<8x8xi32>
      %22 = arith.addi %21, %20 : vector<8x8xi32>
      %c8_i32_12 = arith.constant 8 : i32
      %23 = arith.muli %arg2, %c8_i32_12 : i32
      %24 = tpu.iota {dimensions = array<i32: 1>} : vector<8x8xi32>
      %25 = vector.broadcast %23 : i32 to vector<8x8xi32>
      %26 = arith.addi %25, %24 : vector<8x8xi32>
      %27 = arith.cmpi sle, %26, %22 : vector<8x8xi32>
      %cst_13 = arith.constant -1.000000e+30 : f32
      %28 = vector.broadcast %cst_13 : f32 to vector<8x8xf32>
      %29 = arith.select %27, %18, %28 : vector<8x8xi1>, vector<8x8xf32>
      %c0_14 = arith.constant 0 : index
      %c0_15 = arith.constant 0 : index
      %30 = vector.load %arg7[%c0_14, %c0_15] : memref<8x1xf32, #tpu.memory_space<vmem>>, vector<8x1xf32>
      %cst_16 = arith.constant dense<0xFF800000> : vector<8xf32>
      %31 = vector.multi_reduction <maximumf>, %29, %cst_16 [1] : vector<8x8xf32> to vector<8xf32>
      %32 = vector.shape_cast %31 : vector<8xf32> to vector<8x1xf32>
      %33 = arith.maximumf %30, %32 : vector<8x1xf32>
      %34 = arith.subf %30, %33 : vector<8x1xf32>
      %35 = math.exp %34 : vector<8x1xf32>
      %36 = vector.broadcast %33 : vector<8x1xf32> to vector<8x8xf32>
      %37 = arith.subf %29, %36 : vector<8x8xf32>
      %38 = math.exp %37 : vector<8x8xf32>
      %c0_17 = arith.constant 0 : index
      %c0_18 = arith.constant 0 : index
      %39 = vector.load %arg8[%c0_17, %c0_18] : memref<8x1xf32, #tpu.memory_space<vmem>>, vector<8x1xf32>
      %40 = arith.mulf %35, %39 : vector<8x1xf32>
      %cst_19 = arith.constant dense<0.000000e+00> : vector<8xf32>
      %41 = vector.multi_reduction <add>, %38, %cst_19 [1] : vector<8x8xf32> to vector<8xf32>
      %42 = vector.shape_cast %41 : vector<8xf32> to vector<8x1xf32>
      %43 = arith.addf %40, %42 : vector<8x1xf32>
      %c0_20 = arith.constant 0 : index
      %c0_21 = arith.constant 0 : index
      %44 = vector.load %arg8[%c0_20, %c0_21] : memref<8x1xf32, #tpu.memory_space<vmem>>, vector<8x1xf32>
      tpu.vector_store %arg8[%c0_20, %c0_21], %43 {strides = array<i32>} : memref<8x1xf32, #tpu.memory_space<vmem>>, vector<8x1xf32>,
      %c0_22 = arith.constant 0 : index
      %c0_23 = arith.constant 0 : index
      %45 = vector.load %arg9[%c0_22, %c0_23] : memref<8x8xf32, #tpu.memory_space<vmem>>, vector<8x8xf32>
      %46 = vector.broadcast %35 : vector<8x1xf32> to vector<8x8xf32>
      %47 = arith.mulf %46, %45 : vector<8x8xf32>
      %c0_24 = arith.constant 0 : index
      %c0_25 = arith.constant 0 : index
      %c0_26 = arith.constant 0 : index
      %48 = vector.load %arg5[%c0_24, %c0_25, %c0_26] : memref<1x8x8xf32, #tpu.memory_space<vmem>>, vector<1x8x8xf32>
      %49 = vector.shape_cast %48 : vector<1x8x8xf32> to vector<8x8xf32>
      %cst_27 = arith.constant dense<0.000000e+00> : vector<8x8xf32>
      %50 = tpu.matmul %38, %49, %cst_27 {dimension_numbers = #tpu.dot_dimension_numbers<[1], [0], [0], [1], [0, 0, 1, 1], [], []>} : vector<8x8xf32>, vector<8x8xf32>, vector<8x8xf32> -> vector<8x8xf32>
      %51 = arith.addf %47, %50 : vector<8x8xf32>
      %c0_28 = arith.constant 0 : index
      %c0_29 = arith.constant 0 : index
      %52 = vector.load %arg9[%c0_28, %c0_29] : memref<8x8xf32, #tpu.memory_space<vmem>>, vector<8x8xf32>
      tpu.vector_store %arg9[%c0_28, %c0_29], %51 {strides = array<i32>} : memref<8x8xf32, #tpu.memory_space<vmem>>, vector<8x8xf32>,
      %c0_30 = arith.constant 0 : index
      %c0_31 = arith.constant 0 : index
      %53 = vector.load %arg7[%c0_30, %c0_31] : memref<8x1xf32, #tpu.memory_space<vmem>>, vector<8x1xf32>
      tpu.vector_store %arg7[%c0_30, %c0_31], %33 {strides = array<i32>} : memref<8x1xf32, #tpu.memory_space<vmem>>, vector<8x1xf32>,
    } else {
    }
    %c0_i32_3 = arith.constant 0 : i32
    %9 = arith.cmpi eq, %arg2, %c0_i32_3 : i32
    %10 = arith.extui %9 : i1 to i32
    %c0_i32_4 = arith.constant 0 : i32
    %11 = arith.cmpi ne, %10, %c0_i32_4 : i32
    scf.if %11 {
      %c0 = arith.constant 0 : index
      %c0_5 = arith.constant 0 : index
      %12 = vector.load %arg8[%c0, %c0_5] : memref<8x1xf32, #tpu.memory_space<vmem>>, vector<8x1xf32>
      %13 = tpu.reciprocal %12 : vector<8x1xf32> -> vector<8x1xf32>
      %c0_6 = arith.constant 0 : index
      %c0_7 = arith.constant 0 : index
      %14 = vector.load %arg9[%c0_6, %c0_7] : memref<8x8xf32, #tpu.memory_space<vmem>>, vector<8x8xf32>
      %15 = vector.broadcast %13 : vector<8x1xf32> to vector<8x8xf32>
      %16 = arith.mulf %14, %15 : vector<8x8xf32>
      %c0_8 = arith.constant 0 : index
      %c0_9 = arith.constant 0 : index
      %c0_10 = arith.constant 0 : index
      %17 = vector.load %arg6[%c0_8, %c0_9, %c0_10] : memref<1x8x8xf32, #tpu.memory_space<vmem>>, vector<1x8x8xf32>
      %18 = vector.shape_cast %17 : vector<1x8x8xf32> to vector<8x8xf32>
      %19 = vector.shape_cast %16 : vector<8x8xf32> to vector<1x8x8xf32>
      tpu.vector_store %arg6[%c0_8, %c0_9, %c0_10], %19 {strides = array<i32>} : memref<1x8x8xf32, #tpu.memory_space<vmem>>, vector<1x8x8xf32>,
    } else {
    }
    return
  }
  func.func @transform_0(%arg0: i32, %arg1: i32, %arg2: i32) -> (i32, i32, i32) {
    %c0_i32 = arith.constant 0 : i32
    %c0_i32_0 = arith.constant 0 : i32
    return %arg0, %arg1, %c0_i32 : i32, i32, i32
  }
  func.func @transform_1(%arg0: i32, %arg1: i32, %arg2: i32) -> (i32, i32, i32) {
    %c0_i32 = arith.constant 0 : i32
    %c0_i32_0 = arith.constant 0 : i32
    return %arg0, %arg2, %c0_i32 : i32, i32, i32
  }
  func.func @transform_2(%arg0: i32, %arg1: i32, %arg2: i32) -> (i32, i32, i32) {
    %c0_i32 = arith.constant 0 : i32
    %c0_i32_0 = arith.constant 0 : i32
    return %arg0, %arg2, %c0_i32 : i32, i32, i32
  }
  func.func @transform_3(%arg0: i32, %arg1: i32, %arg2: i32) -> (i32, i32, i32) {
    %c0_i32 = arith.constant 0 : i32
    %c0_i32_0 = arith.constant 0 : i32
    return %arg0, %arg1, %c0_i32 : i32, i32, i32
  }
}

module attributes {stable_mosaic.version = 11 : i64} {
  func.func @_attn_proj_kernel(%arg0: i32, %arg1: i32, %arg2: memref<1x4x8x8xf32, #tpu.memory_space<vmem>>, %arg3: memref<1x8x32xf32, #tpu.memory_space<vmem>>, %arg4: memref<32x32xf32, #tpu.memory_space<vmem>>, %arg5: memref<1x32xf32, #tpu.memory_space<vmem>>, %arg6: memref<1x8x32xf32, #tpu.memory_space<vmem>>) attributes {dimension_semantics = [#tpu.dimension_semantics<parallel>, #tpu.dimension_semantics<parallel>], iteration_bounds = array<i64: 2, 1>, scalar_prefetch = 0 : i64, scratch_operands = 0 : i64, tpu.core_type = #tpu.core_type<tc>, window_params = [{transform_indices = @transform_0, window_bounds = array<i64: 1, 4, 8, 8>}, {transform_indices = @transform_1, window_bounds = array<i64: 1, 8, 32>}, {pipeline_mode = #tpu.pipeline_mode<synchronous>, transform_indices = @transform_2, window_bounds = array<i64: 32, 32>}, {pipeline_mode = #tpu.pipeline_mode<synchronous>, transform_indices = @transform_3, window_bounds = array<i64: 1, 32>}, {transform_indices = @transform_4, window_bounds = array<i64: 1, 8, 32>}]} {
    %c0 = arith.constant 0 : index
    %c0_0 = arith.constant 0 : index
    %c0_1 = arith.constant 0 : index
    %0 = vector.load %arg3[%c0, %c0_0, %c0_1] : memref<1x8x32xf32, #tpu.memory_space<vmem>>, vector<1x8x32xf32>
    %1 = vector.shape_cast %0 : vector<1x8x32xf32> to vector<8x32xf32>
    %c0_2 = arith.constant 0 : index
    %c0_3 = arith.constant 0 : index
    %2 = vector.load %arg5[%c0_2, %c0_3] : memref<1x32xf32, #tpu.memory_space<vmem>>, vector<1x32xf32>
    %3 = vector.broadcast %2 : vector<1x32xf32> to vector<8x32xf32>
    %4 = arith.addf %1, %3 : vector<8x32xf32>
    %c0_4 = arith.constant 0 : index
    %c0_5 = arith.constant 0 : index
    %c0_6 = arith.constant 0 : index
    %c0_7 = arith.constant 0 : index
    %5 = vector.load %arg2[%c0_4, %c0_5, %c0_6, %c0_7] : memref<1x4x8x8xf32, #tpu.memory_space<vmem>>, vector<1x1x8x8xf32>
    %6 = vector.shape_cast %5 : vector<1x1x8x8xf32> to vector<8x8xf32>
    %c0_8 = arith.constant 0 : index
    %c0_9 = arith.constant 0 : index
    %7 = vector.load %arg4[%c0_8, %c0_9] : memref<32x32xf32, #tpu.memory_space<vmem>>, vector<8x32xf32>
    %cst = arith.constant dense<0.000000e+00> : vector<8x32xf32>
    %8 = tpu.matmul %6, %7, %cst {dimension_numbers = #tpu.dot_dimension_numbers<[1], [0], [0], [1], [0, 0, 1, 1], [], []>} : vector<8x8xf32>, vector<8x32xf32>, vector<8x32xf32> -> vector<8x32xf32>
    %9 = arith.addf %4, %8 : vector<8x32xf32>
    %c0_10 = arith.constant 0 : index
    %c1 = arith.constant 1 : index
    %c0_11 = arith.constant 0 : index
    %c0_12 = arith.constant 0 : index
    %10 = vector.load %arg2[%c0_10, %c1, %c0_11, %c0_12] : memref<1x4x8x8xf32, #tpu.memory_space<vmem>>, vector<1x1x8x8xf32>
    %11 = vector.shape_cast %10 : vector<1x1x8x8xf32> to vector<8x8xf32>
    %c8 = arith.constant 8 : index
    %c0_13 = arith.constant 0 : index
    %12 = vector.load %arg4[%c8, %c0_13] : memref<32x32xf32, #tpu.memory_space<vmem>>, vector<8x32xf32>
    %cst_14 = arith.constant dense<0.000000e+00> : vector<8x32xf32>
    %13 = tpu.matmul %11, %12, %cst_14 {dimension_numbers = #tpu.dot_dimension_numbers<[1], [0], [0], [1], [0, 0, 1, 1], [], []>} : vector<8x8xf32>, vector<8x32xf32>, vector<8x32xf32> -> vector<8x32xf32>
    %14 = arith.addf %9, %13 : vector<8x32xf32>
    %c0_15 = arith.constant 0 : index
    %c2 = arith.constant 2 : index
    %c0_16 = arith.constant 0 : index
    %c0_17 = arith.constant 0 : index
    %15 = vector.load %arg2[%c0_15, %c2, %c0_16, %c0_17] : memref<1x4x8x8xf32, #tpu.memory_space<vmem>>, vector<1x1x8x8xf32>
    %16 = vector.shape_cast %15 : vector<1x1x8x8xf32> to vector<8x8xf32>
    %c16 = arith.constant 16 : index
    %c0_18 = arith.constant 0 : index
    %17 = vector.load %arg4[%c16, %c0_18] : memref<32x32xf32, #tpu.memory_space<vmem>>, vector<8x32xf32>
    %cst_19 = arith.constant dense<0.000000e+00> : vector<8x32xf32>
    %18 = tpu.matmul %16, %17, %cst_19 {dimension_numbers = #tpu.dot_dimension_numbers<[1], [0], [0], [1], [0, 0, 1, 1], [], []>} : vector<8x8xf32>, vector<8x32xf32>, vector<8x32xf32> -> vector<8x32xf32>
    %19 = arith.addf %14, %18 : vector<8x32xf32>
    %c0_20 = arith.constant 0 : index
    %c3 = arith.constant 3 : index
    %c0_21 = arith.constant 0 : index
    %c0_22 = arith.constant 0 : index
    %20 = vector.load %arg2[%c0_20, %c3, %c0_21, %c0_22] : memref<1x4x8x8xf32, #tpu.memory_space<vmem>>, vector<1x1x8x8xf32>
    %21 = vector.shape_cast %20 : vector<1x1x8x8xf32> to vector<8x8xf32>
    %c24 = arith.constant 24 : index
    %c0_23 = arith.constant 0 : index
    %22 = vector.load %arg4[%c24, %c0_23] : memref<32x32xf32, #tpu.memory_space<vmem>>, vector<8x32xf32>
    %cst_24 = arith.constant dense<0.000000e+00> : vector<8x32xf32>
    %23 = tpu.matmul %21, %22, %cst_24 {dimension_numbers = #tpu.dot_dimension_numbers<[1], [0], [0], [1], [0, 0, 1, 1], [], []>} : vector<8x8xf32>, vector<8x32xf32>, vector<8x32xf32> -> vector<8x32xf32>
    %24 = arith.addf %19, %23 : vector<8x32xf32>
    %c0_25 = arith.constant 0 : index
    %c0_26 = arith.constant 0 : index
    %c0_27 = arith.constant 0 : index
    %25 = vector.load %arg6[%c0_25, %c0_26, %c0_27] : memref<1x8x32xf32, #tpu.memory_space<vmem>>, vector<1x8x32xf32>
    %26 = vector.shape_cast %25 : vector<1x8x32xf32> to vector<8x32xf32>
    %27 = vector.shape_cast %24 : vector<8x32xf32> to vector<1x8x32xf32>
    tpu.vector_store %arg6[%c0_25, %c0_26, %c0_27], %27 {strides = array<i32>} : memref<1x8x32xf32, #tpu.memory_space<vmem>>, vector<1x8x32xf32>,
    return
  }
  func.func @transform_0(%arg0: i32, %arg1: i32) -> (i32, i32, i32, i32) {
    %c0_i32 = arith.constant 0 : i32
    %c0_i32_0 = arith.constant 0 : i32
    %c0_i32_1 = arith.constant 0 : i32
    return %arg0, %c0_i32, %arg1, %c0_i32_0 : i32, i32, i32, i32
  }
  func.func @transform_1(%arg0: i32, %arg1: i32) -> (i32, i32, i32) {
    %c0_i32 = arith.constant 0 : i32
    %c0_i32_0 = arith.constant 0 : i32
    return %arg0, %arg1, %c0_i32 : i32, i32, i32
  }
  func.func @transform_2(%arg0: i32, %arg1: i32) -> (i32, i32) {
    %c0_i32 = arith.constant 0 : i32
    %c0_i32_0 = arith.constant 0 : i32
    %c0_i32_1 = arith.constant 0 : i32
    return %c0_i32, %c0_i32_0 : i32, i32
  }
  func.func @transform_3(%arg0: i32, %arg1: i32) -> (i32, i32) {
    %c0_i32 = arith.constant 0 : i32
    %c0_i32_0 = arith.constant 0 : i32
    %c0_i32_1 = arith.constant 0 : i32
    return %c0_i32, %c0_i32_0 : i32, i32
  }
  func.func @transform_4(%arg0: i32, %arg1: i32) -> (i32, i32, i32) {
    %c0_i32 = arith.constant 0 : i32
    %c0_i32_0 = arith.constant 0 : i32
    return %arg0, %arg1, %c0_i32 : i32, i32, i32
  }
}

module attributes {stable_mosaic.version = 11 : i64} {
  func.func @_ln_mlp_kernel(%arg0: i32, %arg1: i32, %arg2: memref<16x32xf32, #tpu.memory_space<vmem>>, %arg3: memref<1x32xf32, #tpu.memory_space<vmem>>, %arg4: memref<1x32xf32, #tpu.memory_space<vmem>>, %arg5: memref<32x128xf32, #tpu.memory_space<vmem>>, %arg6: memref<1x128xf32, #tpu.memory_space<vmem>>, %arg7: memref<128x32xf32, #tpu.memory_space<vmem>>, %arg8: memref<1x32xf32, #tpu.memory_space<vmem>>, %arg9: memref<16x32xf32, #tpu.memory_space<vmem>>, %arg10: memref<16x32xf32, #tpu.memory_space<vmem>>, %arg11: memref<16x32xf32, #tpu.memory_space<vmem>>) attributes {dimension_semantics = [#tpu.dimension_semantics<parallel>, #tpu.dimension_semantics<arbitrary>], iteration_bounds = array<i64: 1, 1>, scalar_prefetch = 0 : i64, scratch_operands = 2 : i64, tpu.core_type = #tpu.core_type<tc>, window_params = [{transform_indices = @transform_0, window_bounds = array<i64: 16, 32>}, {pipeline_mode = #tpu.pipeline_mode<synchronous>, transform_indices = @transform_1, window_bounds = array<i64: 1, 32>}, {pipeline_mode = #tpu.pipeline_mode<synchronous>, transform_indices = @transform_2, window_bounds = array<i64: 1, 32>}, {transform_indices = @transform_3, window_bounds = array<i64: 32, 128>}, {transform_indices = @transform_4, window_bounds = array<i64: 1, 128>}, {transform_indices = @transform_5, window_bounds = array<i64: 128, 32>}, {pipeline_mode = #tpu.pipeline_mode<synchronous>, transform_indices = @transform_6, window_bounds = array<i64: 1, 32>}, {transform_indices = @transform_7, window_bounds = array<i64: 16, 32>}]} {
    %c0_i32 = arith.constant 0 : i32
    %0 = arith.cmpi eq, %arg1, %c0_i32 : i32
    %1 = arith.extui %0 : i1 to i32
    %c0_i32_0 = arith.constant 0 : i32
    %2 = arith.cmpi ne, %1, %c0_i32_0 : i32
    scf.if %2 {
      %c0_19 = arith.constant 0 : index
      %c0_20 = arith.constant 0 : index
      %30 = vector.load %arg2[%c0_19, %c0_20] : memref<16x32xf32, #tpu.memory_space<vmem>>, vector<16x32xf32>
      %c0_21 = arith.constant 0 : index
      %c0_22 = arith.constant 0 : index
      %31 = vector.load %arg3[%c0_21, %c0_22] : memref<1x32xf32, #tpu.memory_space<vmem>>, vector<1x32xf32>
      %c0_23 = arith.constant 0 : index
      %c0_24 = arith.constant 0 : index
      %32 = vector.load %arg4[%c0_23, %c0_24] : memref<1x32xf32, #tpu.memory_space<vmem>>, vector<1x32xf32>
      %cst_25 = arith.constant dense<0.000000e+00> : vector<16xf32>
      %33 = vector.multi_reduction <add>, %30, %cst_25 [1] : vector<16x32xf32> to vector<16xf32>
      %34 = vector.shape_cast %33 : vector<16xf32> to vector<16x1xf32>
      %cst_26 = arith.constant 3.200000e+01 : f32
      %35 = vector.broadcast %cst_26 : f32 to vector<16x1xf32>
      %36 = arith.divf %34, %35 : vector<16x1xf32>
      %37 = vector.broadcast %36 : vector<16x1xf32> to vector<16x32xf32>
      %38 = arith.subf %30, %37 : vector<16x32xf32>
      %39 = arith.mulf %38, %38 : vector<16x32xf32>
      %cst_27 = arith.constant dense<0.000000e+00> : vector<16xf32>
      %40 = vector.multi_reduction <add>, %39, %cst_27 [1] : vector<16x32xf32> to vector<16xf32>
      %41 = vector.shape_cast %40 : vector<16xf32> to vector<16x1xf32>
      %cst_28 = arith.constant 3.200000e+01 : f32
      %42 = vector.broadcast %cst_28 : f32 to vector<16x1xf32>
      %43 = arith.divf %41, %42 : vector<16x1xf32>
      %44 = vector.broadcast %36 : vector<16x1xf32> to vector<16x32xf32>
      %45 = arith.subf %30, %44 : vector<16x32xf32>
      %cst_29 = arith.constant 9.99999974E-6 : f32
      %46 = vector.broadcast %cst_29 : f32 to vector<16x1xf32>
      %47 = arith.addf %43, %46 : vector<16x1xf32>
      %48 = math.rsqrt %47 : vector<16x1xf32>
      %49 = vector.broadcast %48 : vector<16x1xf32> to vector<16x32xf32>
      %50 = arith.mulf %45, %49 : vector<16x32xf32>
      %51 = vector.broadcast %31 : vector<1x32xf32> to vector<16x32xf32>
      %52 = arith.mulf %50, %51 : vector<16x32xf32>
      %53 = vector.broadcast %32 : vector<1x32xf32> to vector<16x32xf32>
      %54 = arith.addf %52, %53 : vector<16x32xf32>
      %c0_30 = arith.constant 0 : index
      %c0_31 = arith.constant 0 : index
      %55 = vector.load %arg10[%c0_30, %c0_31] : memref<16x32xf32, #tpu.memory_space<vmem>>, vector<16x32xf32>
      tpu.vector_store %arg10[%c0_30, %c0_31], %54 {strides = array<i32>} : memref<16x32xf32, #tpu.memory_space<vmem>>, vector<16x32xf32>,
      %c0_32 = arith.constant 0 : index
      %c0_33 = arith.constant 0 : index
      %56 = vector.load %arg8[%c0_32, %c0_33] : memref<1x32xf32, #tpu.memory_space<vmem>>, vector<1x32xf32>
      %57 = vector.broadcast %56 : vector<1x32xf32> to vector<16x32xf32>
      %58 = arith.addf %30, %57 : vector<16x32xf32>
      %c0_34 = arith.constant 0 : index
      %c0_35 = arith.constant 0 : index
      %59 = vector.load %arg11[%c0_34, %c0_35] : memref<16x32xf32, #tpu.memory_space<vmem>>, vector<16x32xf32>
      tpu.vector_store %arg11[%c0_34, %c0_35], %58 {strides = array<i32>} : memref<16x32xf32, #tpu.memory_space<vmem>>, vector<16x32xf32>,
    } else {
    }
    %c0 = arith.constant 0 : index
    %c0_1 = arith.constant 0 : index
    %3 = vector.load %arg10[%c0, %c0_1] : memref<16x32xf32, #tpu.memory_space<vmem>>, vector<16x32xf32>
    %c0_2 = arith.constant 0 : index
    %c0_3 = arith.constant 0 : index
    %4 = vector.load %arg5[%c0_2, %c0_3] : memref<32x128xf32, #tpu.memory_space<vmem>>, vector<32x128xf32>
    %cst = arith.constant dense<0.000000e+00> : vector<16x128xf32>
    %5 = tpu.matmul %3, %4, %cst {dimension_numbers = #tpu.dot_dimension_numbers<[1], [0], [0], [1], [0, 0, 1, 1], [], []>} : vector<16x32xf32>, vector<32x128xf32>, vector<16x128xf32> -> vector<16x128xf32>
    %c0_4 = arith.constant 0 : index
    %c0_5 = arith.constant 0 : index
    %6 = vector.load %arg6[%c0_4, %c0_5] : memref<1x128xf32, #tpu.memory_space<vmem>>, vector<1x128xf32>
    %7 = vector.broadcast %6 : vector<1x128xf32> to vector<16x128xf32>
    %8 = arith.addf %5, %7 : vector<16x128xf32>
    %cst_6 = arith.constant 5.000000e-01 : f32
    %9 = vector.broadcast %cst_6 : f32 to vector<16x128xf32>
    %10 = arith.mulf %9, %8 : vector<16x128xf32>
    %11 = arith.mulf %8, %8 : vector<16x128xf32>
    %12 = arith.mulf %8, %11 : vector<16x128xf32>
    %cst_7 = arith.constant 4.471500e-02 : f32
    %13 = vector.broadcast %cst_7 : f32 to vector<16x128xf32>
    %14 = arith.mulf %13, %12 : vector<16x128xf32>
    %15 = arith.addf %8, %14 : vector<16x128xf32>
    %cst_8 = arith.constant 0.797884583 : f32
    %16 = vector.broadcast %cst_8 : f32 to vector<16x128xf32>
    %17 = arith.mulf %16, %15 : vector<16x128xf32>
    %18 = math.tanh %17 : vector<16x128xf32>
    %cst_9 = arith.constant 1.000000e+00 : f32
    %19 = vector.broadcast %cst_9 : f32 to vector<16x128xf32>
    %20 = arith.addf %19, %18 : vector<16x128xf32>
    %21 = arith.mulf %10, %20 : vector<16x128xf32>
    %c0_10 = arith.constant 0 : index
    %c0_11 = arith.constant 0 : index
    %22 = vector.load %arg11[%c0_10, %c0_11] : memref<16x32xf32, #tpu.memory_space<vmem>>, vector<16x32xf32>
    %c0_12 = arith.constant 0 : index
    %c0_13 = arith.constant 0 : index
    %23 = vector.load %arg7[%c0_12, %c0_13] : memref<128x32xf32, #tpu.memory_space<vmem>>, vector<128x32xf32>
    %cst_14 = arith.constant dense<0.000000e+00> : vector<16x32xf32>
    %24 = tpu.matmul %21, %23, %cst_14 {dimension_numbers = #tpu.dot_dimension_numbers<[1], [0], [0], [1], [0, 0, 1, 1], [], []>} : vector<16x128xf32>, vector<128x32xf32>, vector<16x32xf32> -> vector<16x32xf32>
    %25 = arith.addf %22, %24 : vector<16x32xf32>
    %c0_15 = arith.constant 0 : index
    %c0_16 = arith.constant 0 : index
    %26 = vector.load %arg11[%c0_15, %c0_16] : memref<16x32xf32, #tpu.memory_space<vmem>>, vector<16x32xf32>
    tpu.vector_store %arg11[%c0_15, %c0_16], %25 {strides = array<i32>} : memref<16x32xf32, #tpu.memory_space<vmem>>, vector<16x32xf32>,
    %c0_i32_17 = arith.constant 0 : i32
    %27 = arith.cmpi eq, %arg1, %c0_i32_17 : i32
    %28 = arith.extui %27 : i1 to i32
    %c0_i32_18 = arith.constant 0 : i32
    %29 = arith.cmpi ne, %28, %c0_i32_18 : i32
    scf.if %29 {
      %c0_19 = arith.constant 0 : index
      %c0_20 = arith.constant 0 : index
      %30 = vector.load %arg11[%c0_19, %c0_20] : memref<16x32xf32, #tpu.memory_space<vmem>>, vector<16x32xf32>
      %c0_21 = arith.constant 0 : index
      %c0_22 = arith.constant 0 : index
      %31 = vector.load %arg9[%c0_21, %c0_22] : memref<16x32xf32, #tpu.memory_space<vmem>>, vector<16x32xf32>
      tpu.vector_store %arg9[%c0_21, %c0_22], %30 {strides = array<i32>} : memref<16x32xf32, #tpu.memory_space<vmem>>, vector<16x32xf32>,
    } else {
    }
    return
  }
  func.func @transform_0(%arg0: i32, %arg1: i32) -> (i32, i32) {
    %c0_i32 = arith.constant 0 : i32
    %c0_i32_0 = arith.constant 0 : i32
    return %arg0, %c0_i32 : i32, i32
  }
  func.func @transform_1(%arg0: i32, %arg1: i32) -> (i32, i32) {
    %c0_i32 = arith.constant 0 : i32
    %c0_i32_0 = arith.constant 0 : i32
    %c0_i32_1 = arith.constant 0 : i32
    return %c0_i32, %c0_i32_0 : i32, i32
  }
  func.func @transform_2(%arg0: i32, %arg1: i32) -> (i32, i32) {
    %c0_i32 = arith.constant 0 : i32
    %c0_i32_0 = arith.constant 0 : i32
    %c0_i32_1 = arith.constant 0 : i32
    return %c0_i32, %c0_i32_0 : i32, i32
  }
  func.func @transform_3(%arg0: i32, %arg1: i32) -> (i32, i32) {
    %c0_i32 = arith.constant 0 : i32
    %c0_i32_0 = arith.constant 0 : i32
    return %c0_i32, %arg1 : i32, i32
  }
  func.func @transform_4(%arg0: i32, %arg1: i32) -> (i32, i32) {
    %c0_i32 = arith.constant 0 : i32
    %c0_i32_0 = arith.constant 0 : i32
    return %c0_i32, %arg1 : i32, i32
  }
  func.func @transform_5(%arg0: i32, %arg1: i32) -> (i32, i32) {
    %c0_i32 = arith.constant 0 : i32
    %c0_i32_0 = arith.constant 0 : i32
    return %arg1, %c0_i32 : i32, i32
  }
  func.func @transform_6(%arg0: i32, %arg1: i32) -> (i32, i32) {
    %c0_i32 = arith.constant 0 : i32
    %c0_i32_0 = arith.constant 0 : i32
    %c0_i32_1 = arith.constant 0 : i32
    return %c0_i32, %c0_i32_0 : i32, i32
  }
  func.func @transform_7(%arg0: i32, %arg1: i32) -> (i32, i32) {
    %c0_i32 = arith.constant 0 : i32
    %c0_i32_0 = arith.constant 0 : i32
    return %arg0, %c0_i32 : i32, i32
  }
}

module attributes {stable_mosaic.version = 11 : i64} {
  func.func @_ln_lmhead_kernel(%arg0: i32, %arg1: memref<2x32xf32, #tpu.memory_space<vmem>>, %arg2: memref<1x32xf32, #tpu.memory_space<vmem>>, %arg3: memref<1x32xf32, #tpu.memory_space<vmem>>, %arg4: memref<64x32xf32, #tpu.memory_space<vmem>>, %arg5: memref<2x64xf32, #tpu.memory_space<vmem>>) attributes {dimension_semantics = [#tpu.dimension_semantics<parallel>], iteration_bounds = array<i64: 1>, scalar_prefetch = 0 : i64, scratch_operands = 0 : i64, tpu.core_type = #tpu.core_type<tc>, window_params = [{pipeline_mode = #tpu.pipeline_mode<synchronous>, transform_indices = @transform_0, window_bounds = array<i64: 2, 32>}, {pipeline_mode = #tpu.pipeline_mode<synchronous>, transform_indices = @transform_1, window_bounds = array<i64: 1, 32>}, {pipeline_mode = #tpu.pipeline_mode<synchronous>, transform_indices = @transform_2, window_bounds = array<i64: 1, 32>}, {transform_indices = @transform_3, window_bounds = array<i64: 64, 32>}, {transform_indices = @transform_4, window_bounds = array<i64: 2, 64>}]} {
    %c0 = arith.constant 0 : index
    %c0_0 = arith.constant 0 : index
    %0 = vector.load %arg1[%c0, %c0_0] : memref<2x32xf32, #tpu.memory_space<vmem>>, vector<2x32xf32>
    %c0_1 = arith.constant 0 : index
    %c0_2 = arith.constant 0 : index
    %1 = vector.load %arg2[%c0_1, %c0_2] : memref<1x32xf32, #tpu.memory_space<vmem>>, vector<1x32xf32>
    %c0_3 = arith.constant 0 : index
    %c0_4 = arith.constant 0 : index
    %2 = vector.load %arg3[%c0_3, %c0_4] : memref<1x32xf32, #tpu.memory_space<vmem>>, vector<1x32xf32>
    %cst = arith.constant dense<0.000000e+00> : vector<2xf32>
    %3 = vector.multi_reduction <add>, %0, %cst [1] : vector<2x32xf32> to vector<2xf32>
    %4 = vector.shape_cast %3 : vector<2xf32> to vector<2x1xf32>
    %cst_5 = arith.constant 3.200000e+01 : f32
    %5 = vector.broadcast %cst_5 : f32 to vector<2x1xf32>
    %6 = arith.divf %4, %5 : vector<2x1xf32>
    %7 = vector.broadcast %6 : vector<2x1xf32> to vector<2x32xf32>
    %8 = arith.subf %0, %7 : vector<2x32xf32>
    %9 = arith.mulf %8, %8 : vector<2x32xf32>
    %cst_6 = arith.constant dense<0.000000e+00> : vector<2xf32>
    %10 = vector.multi_reduction <add>, %9, %cst_6 [1] : vector<2x32xf32> to vector<2xf32>
    %11 = vector.shape_cast %10 : vector<2xf32> to vector<2x1xf32>
    %cst_7 = arith.constant 3.200000e+01 : f32
    %12 = vector.broadcast %cst_7 : f32 to vector<2x1xf32>
    %13 = arith.divf %11, %12 : vector<2x1xf32>
    %14 = vector.broadcast %6 : vector<2x1xf32> to vector<2x32xf32>
    %15 = arith.subf %0, %14 : vector<2x32xf32>
    %cst_8 = arith.constant 9.99999974E-6 : f32
    %16 = vector.broadcast %cst_8 : f32 to vector<2x1xf32>
    %17 = arith.addf %13, %16 : vector<2x1xf32>
    %18 = math.rsqrt %17 : vector<2x1xf32>
    %19 = vector.broadcast %18 : vector<2x1xf32> to vector<2x32xf32>
    %20 = arith.mulf %15, %19 : vector<2x32xf32>
    %21 = vector.broadcast %1 : vector<1x32xf32> to vector<2x32xf32>
    %22 = arith.mulf %20, %21 : vector<2x32xf32>
    %23 = vector.broadcast %2 : vector<1x32xf32> to vector<2x32xf32>
    %24 = arith.addf %22, %23 : vector<2x32xf32>
    %c0_9 = arith.constant 0 : index
    %c0_10 = arith.constant 0 : index
    %25 = vector.load %arg4[%c0_9, %c0_10] : memref<64x32xf32, #tpu.memory_space<vmem>>, vector<64x32xf32>
    %cst_11 = arith.constant dense<0.000000e+00> : vector<2x64xf32>
    %26 = tpu.matmul %24, %25, %cst_11 {dimension_numbers = #tpu.dot_dimension_numbers<[1], [1], [0], [0], [0, 0, 1, 0], [], []>} : vector<2x32xf32>, vector<64x32xf32>, vector<2x64xf32> -> vector<2x64xf32>
    %c0_12 = arith.constant 0 : index
    %c0_13 = arith.constant 0 : index
    %27 = vector.load %arg5[%c0_12, %c0_13] : memref<2x64xf32, #tpu.memory_space<vmem>>, vector<2x64xf32>
    tpu.vector_store %arg5[%c0_12, %c0_13], %26 {strides = array<i32>} : memref<2x64xf32, #tpu.memory_space<vmem>>, vector<2x64xf32>,
    return
  }
  func.func @transform_0(%arg0: i32) -> (i32, i32) {
    %c0_i32 = arith.constant 0 : i32
    %c0_i32_0 = arith.constant 0 : i32
    %c0_i32_1 = arith.constant 0 : i32
    return %c0_i32, %c0_i32_0 : i32, i32
  }
  func.func @transform_1(%arg0: i32) -> (i32, i32) {
    %c0_i32 = arith.constant 0 : i32
    %c0_i32_0 = arith.constant 0 : i32
    %c0_i32_1 = arith.constant 0 : i32
    return %c0_i32, %c0_i32_0 : i32, i32
  }
  func.func @transform_2(%arg0: i32) -> (i32, i32) {
    %c0_i32 = arith.constant 0 : i32
    %c0_i32_0 = arith.constant 0 : i32
    %c0_i32_1 = arith.constant 0 : i32
    return %c0_i32, %c0_i32_0 : i32, i32
  }
  func.func @transform_3(%arg0: i32) -> (i32, i32) {
    %c0_i32 = arith.constant 0 : i32
    %c0_i32_0 = arith.constant 0 : i32
    return %arg0, %c0_i32 : i32, i32
  }
  func.func @transform_4(%arg0: i32) -> (i32, i32) {
    %c0_i32 = arith.constant 0 : i32
    %c0_i32_0 = arith.constant 0 : i32
    return %c0_i32, %arg0 : i32, i32
  }
}

</mosaic_0001>

<llo_original>
// kernel: blame_gpt_forward.9
$region0: #{blame_gpt_forward.9}
  #allocation0 [shape = 'u32[]', space=smem, size = 0x4, offset = 0x4, fixed_abs, tag = 'smem constant byte address 0x4 - core index']
  #allocation1 [shape = 'u32[144,128]{1,0:T(1,128)}', space=vmem, size = 0x12000, scoped, tag = 'internal scratch']
  %s0 = inlined_call_operand.vmem [shape: f32[2,8,32], index: 0, kind: input, shape index: {}]
  %s1 = inlined_call_operand.vmem [shape: f32[1,32], index: 1, kind: input, shape index: {}]
  %s2 = inlined_call_operand.vmem [shape: f32[1,32], index: 2, kind: input, shape index: {}]
  %s3 = inlined_call_operand.vmem [shape: f32[32,96], index: 3, kind: input, shape index: {}]
  %s4 = inlined_call_operand.vmem [shape: f32[1,96], index: 4, kind: input, shape index: {}]
  %s5 = inlined_call_operand.vmem [shape: f32[2,4,8,8], index: 5, kind: output, shape index: {0}]
  %s6 = inlined_call_operand.vmem [shape: f32[2,4,8,8], index: 6, kind: output, shape index: {1}]
  %s7 = inlined_call_operand.vmem [shape: f32[2,4,8,8], index: 7, kind: output, shape index: {2}]
  %8 = xla_tuple %s5, %s6, %s7
  %s9 = sld [smem:[#allocation0]]
  $region69: #{blame_gpt_forward.9} parent=0
    _
  %s11 = ssub.s32 1, %s9
  %s12 = scalar_select 0, %s11, %s9
  loop: start=0, step=1, limit=4
  $region2: #{blame_gpt_forward.9} parent=0 // loop_pre_header
    _
  $region3: #{blame_gpt_forward.9} parent=0 // loop_header
    %s14 = sphi 0, %s18
    %p15 = scmp.ge.s32.totalorder %s14, 4
    %s21 = sphi 0, %s33
    %s22 = sphi 0, %s29
    %s23 = sphi 0, %s21
    %s24 = sphi 0, %s22
    %s25 = sphi 0, %s23
    %s26 = sphi 0, %s24
    %s38 = sphi 0, %s40
    %s41 = sphi 0, %s38
    %s42 = sphi 0, %s41
    %s58 = sphi 0, %s42
    %s62 = sphi 0, %s62
    %s64 = sphi 0, %s62
    %s65 = sphi 0, %s64
    %s79 = sphi 0, %s65
    %s83 = sphi 0, %s83
    %s85 = sphi 0, %s83
    %s86 = sphi 0, %s85
    %s100 = sphi 0, %s86
    %s104 = sphi 0, %s104
    %s106 = sphi 0, %s104
    %s107 = sphi 0, %s106
    %s121 = sphi 0, %s107
    %s125 = sphi 0, %s125
    %s127 = sphi 0, %s125
    %s128 = sphi 0, %s127
    %s142 = sphi 0, %s128
    %s150 = sphi 0, %s152
    %s153 = sphi 0, %s150
    %s154 = sphi 0, %s153
    %s170 = sphi 0, %s154
    %s178 = sphi 0, %s180
    %s181 = sphi 0, %s178
    %s182 = sphi 0, %s181
    %s198 = sphi 0, %s182
    %s206 = sphi 0, %s208
    %s209 = sphi 0, %s206
    %s210 = sphi 0, %s209
    %s226 = sphi 0, %s210
  $region4: #{blame_gpt_forward.9} parent=0 // loop_header_branch
    %17 = sbr.rel (%p15) target = $region8
  $region5: #{blame_gpt_forward.9} parent=0 // loop_body
    %s19 = ssub.s32 %s14, 1
    %s20 = ssub.s32 %s14, 2
    %s27 = sadd.s32 1, %s22
    %p28 = scmp.ge.s32.totalorder %s27, 1
    %s29 = scalar_select %p28, 0, %s27
    %s30 = sadd.s32 1, %s21
    %s31 = scalar_select %p28, %s30, %s21
    %p32 = scmp.ge.s32.totalorder %s31, 2
    %s33 = scalar_select %p32, 0, %s31
    %s34 = ssub.s32 %s21, %s33
    %s35 = ssub.s32 %s22, %s29
    %s36 = sor.u32 %s34, %s35
    %p37 = scmp.eq.s32.totalorder %s36, 0
    %s39 = sadd.s32 %s38, 1
    %s40 = scalar_select %p37, %s38, %s39
    %p43 = pneg %p37
    %p44 = scmp.eq.s32.totalorder %s14, 1
    %p45 = por %p43, %p44
    %p46 = scmp.ne.s32.totalorder %s38, %s41
    %p47 = scmp.eq.s32.totalorder %s14, 0
    %p48 = por %p46, %p47
    %p49 = scmp.ne.s32.totalorder %s38, %s41
    %p50 = scmp.eq.s32.totalorder %s19, 1
    %p51 = por %p49, %p50
    %p52 = scmp.ne.s32.totalorder %s41, %s42
    %p53 = scmp.eq.s32.totalorder %s19, 0
    %p54 = por %p52, %p53
    %p55 = scmp.ne.s32.totalorder %s41, %s42
    %p56 = scmp.eq.s32.totalorder %s20, 1
    %p57 = por %p55, %p56
    %p59 = scmp.ne.s32.totalorder %s42, %s58
    %p60 = scmp.eq.s32.totalorder %s20, 0
    %p61 = por %p59, %p60
    %s63 = sadd.s32 %s62, 1
    %p66 = scmp.eq.s32.totalorder %s14, 1
    %p67 = scmp.ne.s32.totalorder %s62, %s64
    %p68 = scmp.eq.s32.totalorder %s14, 0
    %p69 = por %p67, %p68
    %p70 = scmp.ne.s32.totalorder %s62, %s64
    %p71 = scmp.eq.s32.totalorder %s19, 1
    %p72 = por %p70, %p71
    %p73 = scmp.ne.s32.totalorder %s64, %s65
    %p74 = scmp.eq.s32.totalorder %s19, 0
    %p75 = por %p73, %p74
    %p76 = scmp.ne.s32.totalorder %s64, %s65
    %p77 = scmp.eq.s32.totalorder %s20, 1
    %p78 = por %p76, %p77
    %p80 = scmp.ne.s32.totalorder %s65, %s79
    %p81 = scmp.eq.s32.totalorder %s20, 0
    %p82 = por %p80, %p81
    %s84 = sadd.s32 %s83, 1
    %p87 = scmp.eq.s32.totalorder %s14, 1
    %p88 = scmp.ne.s32.totalorder %s83, %s85
    %p89 = scmp.eq.s32.totalorder %s14, 0
    %p90 = por %p88, %p89
    %p91 = scmp.ne.s32.totalorder %s83, %s85
    %p92 = scmp.eq.s32.totalorder %s19, 1
    %p93 = por %p91, %p92
    %p94 = scmp.ne.s32.totalorder %s85, %s86
    %p95 = scmp.eq.s32.totalorder %s19, 0
    %p96 = por %p94, %p95
    %p97 = scmp.ne.s32.totalorder %s85, %s86
    %p98 = scmp.eq.s32.totalorder %s20, 1
    %p99 = por %p97, %p98
    %p101 = scmp.ne.s32.totalorder %s86, %s100
    %p102 = scmp.eq.s32.totalorder %s20, 0
    %p103 = por %p101, %p102
    %s105 = sadd.s32 %s104, 1
    %p108 = scmp.eq.s32.totalorder %s14, 1
    %p109 = scmp.ne.s32.totalorder %s104, %s106
    %p110 = scmp.eq.s32.totalorder %s14, 0
    %p111 = por %p109, %p110
    %p112 = scmp.ne.s32.totalorder %s104, %s106
    %p113 = scmp.eq.s32.totalorder %s19, 1
    %p114 = por %p112, %p113
    %p115 = scmp.ne.s32.totalorder %s106, %s107
    %p116 = scmp.eq.s32.totalorder %s19, 0
    %p117 = por %p115, %p116
    %p118 = scmp.ne.s32.totalorder %s106, %s107
    %p119 = scmp.eq.s32.totalorder %s20, 1
    %p120 = por %p118, %p119
    %p122 = scmp.ne.s32.totalorder %s107, %s121
    %p123 = scmp.eq.s32.totalorder %s20, 0
    %p124 = por %p122, %p123
    %s126 = sadd.s32 %s125, 1
    %p129 = scmp.eq.s32.totalorder %s14, 1
    %p130 = scmp.ne.s32.totalorder %s125, %s127
    %p131 = scmp.eq.s32.totalorder %s14, 0
    %p132 = por %p130, %p131
    %p133 = scmp.ne.s32.totalorder %s125, %s127
    %p134 = scmp.eq.s32.totalorder %s19, 1
    %p135 = por %p133, %p134
    %p136 = scmp.ne.s32.totalorder %s127, %s128
    %p137 = scmp.eq.s32.totalorder %s19, 0
    %p138 = por %p136, %p137
    %p139 = scmp.ne.s32.totalorder %s127, %s128
    %p140 = scmp.eq.s32.totalorder %s20, 1
    %p141 = por %p139, %p140
    %p143 = scmp.ne.s32.totalorder %s128, %s142
    %p144 = scmp.eq.s32.totalorder %s20, 0
    %p145 = por %p143, %p144
    %s146 = ssub.s32 %s21, %s33
    %s147 = ssub.s32 %s22, %s29
    %s148 = sor.u32 %s146, %s147
    %p149 = scmp.eq.s32.totalorder %s148, 0
    %s151 = sadd.s32 %s150, 1
    %s152 = scalar_select %p149, %s150, %s151
    %p155 = pneg %p149
    %p156 = scmp.eq.s32.totalorder %s14, 1
    %p157 = por %p155, %p156
    %p158 = scmp.ne.s32.totalorder %s150, %s153
    %p159 = scmp.eq.s32.totalorder %s14, 0
    %p160 = por %p158, %p159
    %p161 = scmp.ne.s32.totalorder %s150, %s153
    %p162 = scmp.eq.s32.totalorder %s19, 1
    %p163 = por %p161, %p162
    %p164 = scmp.ne.s32.totalorder %s153, %s154
    %p165 = scmp.eq.s32.totalorder %s19, 0
    %p166 = por %p164, %p165
    %p167 = scmp.ne.s32.totalorder %s153, %s154
    %p168 = scmp.eq.s32.totalorder %s20, 1
    %p169 = por %p167, %p168
    %p171 = scmp.ne.s32.totalorder %s154, %s170
    %p172 = scmp.eq.s32.totalorder %s20, 0
    %p173 = por %p171, %p172
    %s174 = ssub.s32 %s21, %s33
    %s175 = ssub.s32 %s22, %s29
    %s176 = sor.u32 %s174, %s175
    %p177 = scmp.eq.s32.totalorder %s176, 0
    %s179 = sadd.s32 %s178, 1
    %s180 = scalar_select %p177, %s178, %s179
    %p183 = pneg %p177
    %p184 = scmp.eq.s32.totalorder %s14, 1
    %p185 = por %p183, %p184
    %p186 = scmp.ne.s32.totalorder %s178, %s181
    %p187 = scmp.eq.s32.totalorder %s14, 0
    %p188 = por %p186, %p187
    %p189 = scmp.ne.s32.totalorder %s178, %s181
    %p190 = scmp.eq.s32.totalorder %s19, 1
    %p191 = por %p189, %p190
    %p192 = scmp.ne.s32.totalorder %s181, %s182
    %p193 = scmp.eq.s32.totalorder %s19, 0
    %p194 = por %p192, %p193
    %p195 = scmp.ne.s32.totalorder %s181, %s182
    %p196 = scmp.eq.s32.totalorder %s20, 1
    %p197 = por %p195, %p196
    %p199 = scmp.ne.s32.totalorder %s182, %s198
    %p200 = scmp.eq.s32.totalorder %s20, 0
    %p201 = por %p199, %p200
    %s202 = ssub.s32 %s21, %s33
    %s203 = ssub.s32 %s22, %s29
    %s204 = sor.u32 %s202, %s203
    %p205 = scmp.eq.s32.totalorder %s204, 0
    %s207 = sadd.s32 %s206, 1
    %s208 = scalar_select %p205, %s206, %s207
    %p211 = pneg %p205
    %p212 = scmp.eq.s32.totalorder %s14, 1
    %p213 = por %p211, %p212
    %p214 = scmp.ne.s32.totalorder %s206, %s209
    %p215 = scmp.eq.s32.totalorder %s14, 0
    %p216 = por %p214, %p215
    %p217 = scmp.ne.s32.totalorder %s206, %s209
    %p218 = scmp.eq.s32.totalorder %s19, 1
    %p219 = por %p217, %p218
    %p220 = scmp.ne.s32.totalorder %s209, %s210
    %p221 = scmp.eq.s32.totalorder %s19, 0
    %p222 = por %p220, %p221
    %p223 = scmp.ne.s32.totalorder %s209, %s210
    %p224 = scmp.eq.s32.totalorder %s20, 1
    %p225 = por %p223, %p224
    %p227 = scmp.ne.s32.totalorder %s210, %s226
    %p228 = scmp.eq.s32.totalorder %s20, 0
    %p229 = por %p227, %p228
    %p230 = scmp.le.s32.totalorder 1, %s14
    %p231 = scmp.lt.s32.totalorder %s14, 3
    %p232 = pnand %p230, %p231
    %p233 = pneg %p232
    // Predicated region
    $region9: #{blame_gpt_forward.9} parent=5 // pred_check
      _
    $region10: #{blame_gpt_forward.9} parent=5 // pred_check_branch
      %235 = sbr.rel (%p232) target = $region12
    $region11: #{blame_gpt_forward.9} parent=5 // pred_region
      %s236 = ssub.s32 %s14, 1
      // Predicated region
      $region13: #{blame_gpt_forward.9} parent=11 // pred_check
        %p237 = pneg %p75
      $region14: #{blame_gpt_forward.9} parent=11 // pred_check_branch
        %239 = sbr.rel (%p237) target = $region16
      $region15: #{blame_gpt_forward.9} parent=11 // pred_region
        _
      $region16: #{blame_gpt_forward.9} parent=11 // pred_fallthru
        _
      // Predicated region
      $region17: #{blame_gpt_forward.9} parent=11 // pred_check
        %p240 = pneg %p96
      $region18: #{blame_gpt_forward.9} parent=11 // pred_check_branch
        %242 = sbr.rel (%p240) target = $region20
      $region19: #{blame_gpt_forward.9} parent=11 // pred_region
        _
      $region20: #{blame_gpt_forward.9} parent=11 // pred_fallthru
        _
      // Predicated region
      $region21: #{blame_gpt_forward.9} parent=11 // pred_check
        %p243 = pneg %p117
      $region22: #{blame_gpt_forward.9} parent=11 // pred_check_branch
        %245 = sbr.rel (%p243) target = $region24
      $region23: #{blame_gpt_forward.9} parent=11 // pred_region
        _
      $region24: #{blame_gpt_forward.9} parent=11 // pred_fallthru
        _
      // Predicated region
      $region25: #{blame_gpt_forward.9} parent=11 // pred_check
        %p246 = pneg %p138
      $region26: #{blame_gpt_forward.9} parent=11 // pred_check_branch
        %248 = sbr.rel (%p246) target = $region28
      $region27: #{blame_gpt_forward.9} parent=11 // pred_region
        _
      $region28: #{blame_gpt_forward.9} parent=11 // pred_fallthru
        _
    $region12: #{blame_gpt_forward.9} parent=5 // pred_fallthru
      _
    %p249 = scmp.lt.s32.totalorder %s14, 2
    // Predicated region
    $region29: #{blame_gpt_forward.9} parent=5 // pred_check
      %p250 = pneg %p249
    $region30: #{blame_gpt_forward.9} parent=5 // pred_check_branch
      %252 = sbr.rel (%p250) target = $region32
    $region31: #{blame_gpt_forward.9} parent=5 // pred_region
      // Predicated region
      $region33: #{blame_gpt_forward.9} parent=31 // pred_check
        %p253 = pneg %p48
      $region34: #{blame_gpt_forward.9} parent=31 // pred_check_branch
        %255 = sbr.rel (%p253) target = $region36
      $region35: #{blame_gpt_forward.9} parent=31 // pred_region
        %p256 = scmp.lt.s32.totalorder %s21, 1
        %s257 = scalar_select %p256, %s21, 1
        %p258 = scmp.lt.s32.totalorder %s22, 0
        %s259 = scalar_select %p258, %s22, 0
        %s260 = sadd.s32 %s259, %s257
        %s261 = smul.addr %s260, 8
        %s262 = scalar_lea.vmem %s0, %s261
      $region36: #{blame_gpt_forward.9} parent=31 // pred_fallthru
        _
    $region32: #{blame_gpt_forward.9} parent=5 // pred_fallthru
      _
    %p263 = scmp.le.s32.totalorder 1, %s14
    %p264 = scmp.lt.s32.totalorder %s14, 3
    %p265 = pnand %p263, %p264
    %p266 = pneg %p265
    // Predicated region
    $region37: #{blame_gpt_forward.9} parent=5 // pred_check
      _
    $region38: #{blame_gpt_forward.9} parent=5 // pred_check_branch
      %268 = sbr.rel (%p265) target = $region40
    $region39: #{blame_gpt_forward.9} parent=5 // pred_region
      %s269 = ssub.s32 %s14, 1
      %p270 = scmp.lt.s32.totalorder %s23, 1
      %s271 = scalar_select %p270, %s23, 1
      %p272 = scmp.lt.s32.totalorder %s24, 0
      %s273 = scalar_select %p272, %s24, 0
      %s274 = sadd.s32 %s273, %s271
      %s275 = smul.addr %s274, 8
      %s276 = scalar_lea.vmem %s0, %s275
      %p277 = pneg %p54
      %p278 = pneg %p51
      %p279 = pneg %p75
      %p280 = pneg %p72
      %p281 = pneg %p96
      %p282 = pneg %p93
      %p283 = pneg %p117
      %p284 = pneg %p114
      %p285 = pneg %p138
      %p286 = pneg %p135
      %p287 = pneg %p166
      %p288 = pneg %p163
      %p289 = scmp.lt.s32.totalorder %s23, 1
      %s290 = scalar_select %p289, %s23, 1
      %p291 = scmp.lt.s32.totalorder %s24, 0
      %s292 = scalar_select %p291, %s24, 0
      %s293 = smul.addr %s290, 4
      %s294 = sadd.s32 %s292, %s293
      %s295 = smul.addr %s294, 8
      %s296 = scalar_lea.vmem %s5, %s295
      %p297 = pneg %p194
      %p298 = pneg %p191
      %p299 = scmp.lt.s32.totalorder %s23, 1
      %s300 = scalar_select %p299, %s23, 1
      %p301 = scmp.lt.s32.totalorder %s24, 0
      %s302 = scalar_select %p301, %s24, 0
      %s303 = smul.addr %s300, 4
      %s304 = sadd.s32 %s302, %s303
      %s305 = smul.addr %s304, 8
      %s306 = scalar_lea.vmem %s6, %s305
      %p307 = pneg %p222
      %p308 = pneg %p219
      %p309 = scmp.lt.s32.totalorder %s23, 1
      %s310 = scalar_select %p309, %s23, 1
      %p311 = scmp.lt.s32.totalorder %s24, 0
      %s312 = scalar_select %p311, %s24, 0
      %s313 = smul.addr %s310, 4
      %s314 = sadd.s32 %s312, %s313
      %s315 = smul.addr %s314, 8
      %s316 = scalar_lea.vmem %s7, %s315
      %p317 = scmp.lt.s32.totalorder %s23, 1
      %s318 = scalar_select %p317, %s23, 1
      %p319 = scmp.lt.s32.totalorder %s24, 0
      %s320 = scalar_select %p319, %s24, 0
      %s321 = sadd.s32 %s320, %s318
      %s322 = smul.addr %s321, 8
      %s323 = scalar_lea.vmem %s0, %s322
      %p324 = scmp.lt.s32.totalorder %s23, 1
      %s325 = scalar_select %p324, %s23, 1
      %p326 = scmp.lt.s32.totalorder %s24, 0
      %s327 = scalar_select %p326, %s24, 0
      %s328 = smul.addr %s325, 4
      %s329 = sadd.s32 %s327, %s328
      %s330 = smul.addr %s329, 8
      %s331 = scalar_lea.vmem %s5, %s330
      %p332 = scmp.lt.s32.totalorder %s23, 1
      %s333 = scalar_select %p332, %s23, 1
      %p334 = scmp.lt.s32.totalorder %s24, 0
      %s335 = scalar_select %p334, %s24, 0
      %s336 = smul.addr %s333, 4
      %s337 = sadd.s32 %s335, %s336
      %s338 = smul.addr %s337, 8
      %s339 = scalar_lea.vmem %s6, %s338
      %p340 = scmp.lt.s32.totalorder %s23, 1
      %s341 = scalar_select %p340, %s23, 1
      %p342 = scmp.lt.s32.totalorder %s24, 0
      %s343 = scalar_select %p342, %s24, 0
      %s344 = smul.addr %s341, 4
      %s345 = sadd.s32 %s343, %s344
      %s346 = smul.addr %s345, 8
      %s347 = scalar_lea.vmem %s7, %s346
      %v348 = vld [vmem:[%s323] sm:$0xff]
      %v349 = vld [vmem:[%s1] sm:$0x1]
      %v350 = vld [vmem:[%s2] sm:$0x1]
      %vm351 = vcmask 261120
      %v352 = vsel %vm351, %v348, 0.0
      %353 = vadd.xlane.f32.xlu0 %v352
      %v354 = vpop.xlane.xlu0 %353
      %v355 = vrcp.pop 32.0
      %v356 = vmul.f32 %v354, %v355
      %v357 = vsub.f32 %v348, %v356
      %v358 = vmul.f32 %v357, %v357
      %v359 = vsel %vm351, %v358, 0.0
      %360 = vadd.xlane.f32.xlu0 %v359
      %v361 = vpop.xlane.xlu0 %360
      %v362 = vmul.f32 %v361, %v355
      %v363 = vadd.f32 %v362, 1e-05
      %v364 = vrsqrt.pop %v363
      %v365 = vmul.f32 %v357, %v364
      %v367 = vlaneseq
      %v368 = vshrl.u32 %v367, 7
      %v369 = vsub.s32 0, %v368
      %v370 = vrot.slane %v349, %v369
      %v372 = vmul.f32 %v365, %v370
      %v374 = vlaneseq
      %v375 = vshrl.u32 %v374, 7
      %v376 = vsub.s32 0, %v375
      %v377 = vrot.slane %v350, %v376
      %v379 = vadd.f32 %v372, %v377
      %v380 = vld [vmem:[%s3] sm:$0xff]
      %v381 = vld [vmem:[%s3 + $0x8] sm:$0xff]
      %v382 = vld [vmem:[%s3 + $0x10] sm:$0xff]
      %v383 = vld [vmem:[%s3 + $0x18] sm:$0xff]
      %v384 = vld [vmem:[%s4] sm:$0x1]
      %v386 = vlaneseq
      %v387 = vshrl.u32 %v386, 7
      %v388 = vsub.s32 0, %v387
      %v389 = vrot.slane %v384, %v388
      %v392 = vsel %vm351, %v379, 0
      %394 = vmatprep.subr.mxu0 0.0
      %395 = vmatpush1.msra.mxu0 %v380
      %396 = vmatprep.subr.mxu0 0.0
      %397 = vmatpush1.msra.mxu0 %v381
      %398 = vmatprep.subr.mxu0 0.0
      %399 = vmatpush1.msra.mxu0 %v382
      %400 = vmatprep.subr.mxu0 0.0
      %401 = vmatpush1.msra.mxu0 %v383
      %402 = vmatprep.subr.mxu0 0.0
      %403 = vmatpush1.msra.mxu0 0.0
      %404 = vmatprep.subr.mxu0 0.0
      %405 = vmatpush1.msra.mxu0 0.0
      %406 = vmatprep.subr.mxu0 0.0
      %407 = vmatpush1.msra.mxu0 0.0
      %408 = vmatprep.subr.mxu0 0.0
      %409 = vmatpush1.msra.mxu0 0.0
      %410 = vmatprep.subr.mxu0 0.0
      %411 = vmatpush1.msra.mxu0 0.0
      %412 = vmatprep.subr.mxu0 0.0
      %413 = vmatpush1.msra.mxu0 0.0
      %414 = vmatprep.subr.mxu0 0.0
      %415 = vmatpush1.msra.mxu0 0.0
      %416 = vmatprep.subr.mxu0 0.0
      %417 = vmatpush1.msra.mxu0 0.0
      %418 = vmatprep.subr.mxu0 0.0
      %419 = vmatpush1.msra.mxu0 0.0
      %420 = vmatprep.subr.mxu0 0.0
      %421 = vmatpush1.msra.mxu0 0.0
      %422 = vmatprep.subr.mxu0 0.0
      %423 = vmatpush1.msra.mxu0 0.0
      %424 = vmatprep.subr.mxu0 0.0
      %425 = vmatpush1.msra.mxu0 0.0
      %426 = vmatprep.subr.mxu0 0.0
      %427 = vmatpush1.msra.mxu0 0.0
      %428 = vmatprep.subr.mxu0 0.0
      %429 = vmatpush1.msra.mxu0 0.0
      %430 = vmatprep.subr.mxu0 0.0
      %431 = vmatpush1.msra.mxu0 0.0
      %432 = vmatprep.subr.mxu0 0.0
      %433 = vmatpush1.msra.mxu0 0.0
      %434 = vmatprep.subr.mxu0 0.0
      %435 = vmatpush1.msra.mxu0 0.0
      %436 = vmatprep.subr.mxu0 0.0
      %437 = vmatpush1.msra.mxu0 0.0
      %438 = vmatprep.subr.mxu0 0.0
      %439 = vmatpush1.msra.mxu0 0.0
      %440 = vmatprep.subr.mxu0 0.0
      %441 = vmatpush1.msra.mxu0 0.0
      %442 = vmatprep.subr.mxu0 0.0
      %443 = vmatpush1.msra.mxu0 0.0
      %444 = vmatprep.subr.mxu0 0.0
      %445 = vmatpush1.msra.mxu0 0.0
      %446 = vmatprep.subr.mxu0 0.0
      %447 = vmatpush1.msra.mxu0 0.0
      %448 = vmatprep.subr.mxu0 0.0
      %449 = vmatpush1.msra.mxu0 0.0
      %450 = vmatprep.subr.mxu0 0.0
      %451 = vmatpush1.msra.mxu0 0.0
      %452 = vmatprep.subr.mxu0 0.0
      %453 = vmatpush1.msra.mxu0 0.0
      %454 = vmatprep.subr.mxu0 0.0
      %455 = vmatpush1.msra.mxu0 0.0
      %456 = vmatprep.subr.mxu0 0.0
      %457 = vmatpush1.msra.mxu0 0.0
      %458 = vmatprep.mubr.f32.mxu0 0.0
      %459 = vmatmul.mubr.f32.gmra.mrb[0].mxu0 %v392
      %v460 = vpop.f32.mrb[0].mxu0
      %v461 = vadd.f32 %v389, %v460
      %v462 = vpop.f32.mrb[0].mxu0
      %463 = vdwg.mxu0
      %vm464 = vcmask 64512
      %465 = vst.msk [vmem:[%s331] sm:$0xff] %vm464, %v461
      %467 = vrot.lane.b32.xlu0 %v461, 96
      %v468 = vpop.permute.xlu0 %467
      %470 = vst.msk [vmem:[%s339] sm:$0xff] %vm464, %v468
      %471 = vrot.lane.b32.xlu0 %v461, 64
      %v472 = vpop.permute.xlu0 %471
      %474 = vst.msk [vmem:[%s347] sm:$0xff] %vm464, %v472
      %475 = vrot.lane.b32.xlu0 %v461, 120
      %v476 = vpop.permute.xlu0 %475
      %s478 = scalar_lea.vmem %s331, 8
      %479 = vst.msk [vmem:[%s478] sm:$0xff] %vm464, %v476
      %480 = vrot.lane.b32.xlu0 %v461, 88
      %v481 = vpop.permute.xlu0 %480
      %s483 = scalar_lea.vmem %s339, 8
      %484 = vst.msk [vmem:[%s483] sm:$0xff] %vm464, %v481
      %485 = vrot.lane.b32.xlu0 %v461, 56
      %v486 = vpop.permute.xlu0 %485
      %s488 = scalar_lea.vmem %s347, 8
      %489 = vst.msk [vmem:[%s488] sm:$0xff] %vm464, %v486
      %490 = vrot.lane.b32.xlu0 %v461, 112
      %v491 = vpop.permute.xlu0 %490
      %s493 = scalar_lea.vmem %s331, 16
      %494 = vst.msk [vmem:[%s493] sm:$0xff] %vm464, %v491
      %495 = vrot.lane.b32.xlu0 %v461, 80
      %v496 = vpop.permute.xlu0 %495
      %s498 = scalar_lea.vmem %s339, 16
      %499 = vst.msk [vmem:[%s498] sm:$0xff] %vm464, %v496
      %500 = vrot.lane.b32.xlu0 %v461, 48
      %v501 = vpop.permute.xlu0 %500
      %s503 = scalar_lea.vmem %s347, 16
      %504 = vst.msk [vmem:[%s503] sm:$0xff] %vm464, %v501
      %505 = vrot.lane.b32.xlu0 %v461, 104
      %v506 = vpop.permute.xlu0 %505
      %s508 = scalar_lea.vmem %s331, 24
      %509 = vst.msk [vmem:[%s508] sm:$0xff] %vm464, %v506
      %510 = vrot.lane.b32.xlu0 %v461, 72
      %v511 = vpop.permute.xlu0 %510
      %s513 = scalar_lea.vmem %s339, 24
      %514 = vst.msk [vmem:[%s513] sm:$0xff] %vm464, %v511
      %515 = vrot.lane.b32.xlu0 %v461, 40
      %v516 = vpop.permute.xlu0 %515
      %s518 = scalar_lea.vmem %s347, 24
      %519 = vst.msk [vmem:[%s518] sm:$0xff] %vm464, %v516
      %p520 = scmp.lt.s32.totalorder %s23, 1
      %s521 = scalar_select %p520, %s23, 1
      %p522 = scmp.lt.s32.totalorder %s24, 0
      %s523 = scalar_select %p522, %s24, 0
      %s524 = smul.addr %s521, 4
      %s525 = sadd.s32 %s523, %s524
      %s526 = smul.addr %s525, 8
      %s527 = scalar_lea.vmem %s5, %s526
      %p528 = scmp.lt.s32.totalorder %s23, 1
      %s529 = scalar_select %p528, %s23, 1
      %p530 = scmp.lt.s32.totalorder %s24, 0
      %s531 = scalar_select %p530, %s24, 0
      %s532 = smul.addr %s529, 4
      %s533 = sadd.s32 %s531, %s532
      %s534 = smul.addr %s533, 8
      %s535 = scalar_lea.vmem %s6, %s534
      %p536 = scmp.lt.s32.totalorder %s23, 1
      %s537 = scalar_select %p536, %s23, 1
      %p538 = scmp.lt.s32.totalorder %s24, 0
      %s539 = scalar_select %p538, %s24, 0
      %s540 = smul.addr %s537, 4
      %s541 = sadd.s32 %s539, %s540
      %s542 = smul.addr %s541, 8
      %s543 = scalar_lea.vmem %s7, %s542
      // Predicated region
      $region41: #{blame_gpt_forward.9} parent=39 // pred_check
        %p544 = pneg %p163
      $region42: #{blame_gpt_forward.9} parent=39 // pred_check_branch
        %546 = sbr.rel (%p544) target = $region44
      $region43: #{blame_gpt_forward.9} parent=39 // pred_region
        _
      $region44: #{blame_gpt_forward.9} parent=39 // pred_fallthru
        _
      // Predicated region
      $region45: #{blame_gpt_forward.9} parent=39 // pred_check
        %p547 = pneg %p191
      $region46: #{blame_gpt_forward.9} parent=39 // pred_check_branch
        %549 = sbr.rel (%p547) target = $region48
      $region47: #{blame_gpt_forward.9} parent=39 // pred_region
        _
      $region48: #{blame_gpt_forward.9} parent=39 // pred_fallthru
        _
      // Predicated region
      $region49: #{blame_gpt_forward.9} parent=39 // pred_check
        %p550 = pneg %p219
      $region50: #{blame_gpt_forward.9} parent=39 // pred_check_branch
        %552 = sbr.rel (%p550) target = $region52
      $region51: #{blame_gpt_forward.9} parent=39 // pred_region
        _
      $region52: #{blame_gpt_forward.9} parent=39 // pred_fallthru
        _
    $region40: #{blame_gpt_forward.9} parent=5 // pred_fallthru
      _
    %p553 = scmp.le.s32.totalorder 2, %s14
    // Predicated region
    $region53: #{blame_gpt_forward.9} parent=5 // pred_check
      %p554 = pneg %p553
    $region54: #{blame_gpt_forward.9} parent=5 // pred_check_branch
      %556 = sbr.rel (%p554) target = $region56
    $region55: #{blame_gpt_forward.9} parent=5 // pred_region
      %s557 = ssub.s32 %s14, 2
      // Predicated region
      $region57: #{blame_gpt_forward.9} parent=55 // pred_check
        %p558 = pneg %p169
      $region58: #{blame_gpt_forward.9} parent=55 // pred_check_branch
        %560 = sbr.rel (%p558) target = $region60
      $region59: #{blame_gpt_forward.9} parent=55 // pred_region
        %p561 = scmp.lt.s32.totalorder %s25, 1
        %s562 = scalar_select %p561, %s25, 1
        %p563 = scmp.lt.s32.totalorder %s26, 0
        %s564 = scalar_select %p563, %s26, 0
        %s565 = smul.addr %s562, 4
        %s566 = sadd.s32 %s564, %s565
        %s567 = smul.addr %s566, 8
        %s568 = scalar_lea.vmem %s5, %s567
      $region60: #{blame_gpt_forward.9} parent=55 // pred_fallthru
        _
      // Predicated region
      $region61: #{blame_gpt_forward.9} parent=55 // pred_check
        %p569 = pneg %p197
      $region62: #{blame_gpt_forward.9} parent=55 // pred_check_branch
        %571 = sbr.rel (%p569) target = $region64
      $region63: #{blame_gpt_forward.9} parent=55 // pred_region
        %p572 = scmp.lt.s32.totalorder %s25, 1
        %s573 = scalar_select %p572, %s25, 1
        %p574 = scmp.lt.s32.totalorder %s26, 0
        %s575 = scalar_select %p574, %s26, 0
        %s576 = smul.addr %s573, 4
        %s577 = sadd.s32 %s575, %s576
        %s578 = smul.addr %s577, 8
        %s579 = scalar_lea.vmem %s6, %s578
      $region64: #{blame_gpt_forward.9} parent=55 // pred_fallthru
        _
      // Predicated region
      $region65: #{blame_gpt_forward.9} parent=55 // pred_check
        %p580 = pneg %p225
      $region66: #{blame_gpt_forward.9} parent=55 // pred_check_branch
        %582 = sbr.rel (%p580) target = $region68
      $region67: #{blame_gpt_forward.9} parent=55 // pred_region
        %p583 = scmp.lt.s32.totalorder %s25, 1
        %s584 = scalar_select %p583, %s25, 1
        %p585 = scmp.lt.s32.totalorder %s26, 0
        %s586 = scalar_select %p585, %s26, 0
        %s587 = smul.addr %s584, 4
        %s588 = sadd.s32 %s586, %s587
        %s589 = smul.addr %s588, 8
        %s590 = scalar_lea.vmem %s7, %s589
      $region68: #{blame_gpt_forward.9} parent=55 // pred_fallthru
        _
    $region56: #{blame_gpt_forward.9} parent=5 // pred_fallthru
      _
  $region6: #{blame_gpt_forward.9} parent=0 // loop_footer
    %s18 = sadd.s32 1, %s14
  $region7: #{blame_gpt_forward.9} parent=0 // loop_footer_branch
    %13 = sbr.rel target = $region3
  $region8: #{blame_gpt_forward.9} parent=0 // loop_exit
    _

// kernel: blame_gpt_forward.10
$region0: #{blame_gpt_forward.10}
  #allocation0 [shape = 'u32[]', space=smem, size = 0x4, offset = 0x4, fixed_abs, tag = 'smem constant byte address 0x4 - core index']
  #allocation1 [shape = 'u32[144,128]{1,0:T(1,128)}', space=vmem, size = 0x12000, scoped, tag = 'internal scratch']
  #allocation2 [shape = 'f32[8,1]{1,0:T(8,128)}', space=vmem, size = 0x1000, scoped, tag = 'scratch operand']
  #allocation3 [shape = 'f32[8,1]{1,0:T(8,128)}', space=vmem, size = 0x1000, scoped, tag = 'scratch operand']
  #allocation4 [shape = 'f32[8,8]{1,0:T(8,128)}', space=vmem, size = 0x1000, scoped, tag = 'scratch operand']
  %s0 = inlined_call_operand.vmem [shape: f32[8,8,8], index: 0, kind: input, shape index: {}]
  %s1 = inlined_call_operand.vmem [shape: f32[8,8,8], index: 1, kind: input, shape index: {}]
  %s2 = inlined_call_operand.vmem [shape: f32[8,8,8], index: 2, kind: input, shape index: {}]
  %s3 = inlined_call_operand.vmem [shape: f32[8,8,8], index: 3, kind: output, shape index: {}]
  %s4 = sld [smem:[#allocation0]]
  $region57: #{blame_gpt_forward.10} parent=0
    _
  %s6 = ssub.s32 1, %s4
  %s7 = scalar_select 0, %s6, %s4
  loop: start=0, step=1, limit=10
  $region2: #{blame_gpt_forward.10} parent=0 // loop_pre_header
    _
  $region3: #{blame_gpt_forward.10} parent=0 // loop_header
    %s9 = sphi 0, %s13
    %p10 = scmp.ge.s32.totalorder %s9, 10
    %s16 = sphi 0, %s35
    %s17 = sphi 0, %s31
    %s18 = sphi 0, %s27
    %s19 = sphi 0, %s16
    %s20 = sphi 0, %s17
    %s21 = sphi 0, %s18
    %s22 = sphi 0, %s19
    %s23 = sphi 0, %s20
    %s24 = sphi 0, %s21
    %s40 = sphi 0, %s42
    %s43 = sphi 0, %s40
    %s44 = sphi 0, %s43
    %s60 = sphi 0, %s44
    %s68 = sphi 0, %s70
    %s71 = sphi 0, %s68
    %s72 = sphi 0, %s71
    %s88 = sphi 0, %s72
    %s96 = sphi 0, %s98
    %s99 = sphi 0, %s96
    %s100 = sphi 0, %s99
    %s116 = sphi 0, %s100
    %s124 = sphi 0, %s126
    %s127 = sphi 0, %s124
    %s128 = sphi 0, %s127
    %s144 = sphi 0, %s128
  $region4: #{blame_gpt_forward.10} parent=0 // loop_header_branch
    %12 = sbr.rel (%p10) target = $region8
  $region5: #{blame_gpt_forward.10} parent=0 // loop_body
    %s14 = ssub.s32 %s9, 1
    %s15 = ssub.s32 %s9, 2
    %s25 = sadd.s32 1, %s18
    %p26 = scmp.ge.s32.totalorder %s25, 1
    %s27 = scalar_select %p26, 0, %s25
    %s28 = sadd.s32 1, %s17
    %s29 = scalar_select %p26, %s28, %s17
    %p30 = scmp.ge.s32.totalorder %s29, 1
    %s31 = scalar_select %p30, 0, %s29
    %s32 = sadd.s32 1, %s16
    %s33 = scalar_select %p30, %s32, %s16
    %p34 = scmp.ge.s32.totalorder %s33, 8
    %s35 = scalar_select %p34, 0, %s33
    %s36 = ssub.s32 %s16, %s35
    %s37 = ssub.s32 %s17, %s31
    %s38 = sor.u32 %s36, %s37
    %p39 = scmp.eq.s32.totalorder %s38, 0
    %s41 = sadd.s32 %s40, 1
    %s42 = scalar_select %p39, %s40, %s41
    %p45 = pneg %p39
    %p46 = scmp.eq.s32.totalorder %s9, 7
    %p47 = por %p45, %p46
    %p48 = scmp.ne.s32.totalorder %s40, %s43
    %p49 = scmp.eq.s32.totalorder %s9, 0
    %p50 = por %p48, %p49
    %p51 = scmp.ne.s32.totalorder %s40, %s43
    %p52 = scmp.eq.s32.totalorder %s14, 7
    %p53 = por %p51, %p52
    %p54 = scmp.ne.s32.totalorder %s43, %s44
    %p55 = scmp.eq.s32.totalorder %s14, 0
    %p56 = por %p54, %p55
    %p57 = scmp.ne.s32.totalorder %s43, %s44
    %p58 = scmp.eq.s32.totalorder %s15, 7
    %p59 = por %p57, %p58
    %p61 = scmp.ne.s32.totalorder %s44, %s60
    %p62 = scmp.eq.s32.totalorder %s15, 0
    %p63 = por %p61, %p62
    %s64 = ssub.s32 %s16, %s35
    %s65 = ssub.s32 %s18, %s27
    %s66 = sor.u32 %s64, %s65
    %p67 = scmp.eq.s32.totalorder %s66, 0
    %s69 = sadd.s32 %s68, 1
    %s70 = scalar_select %p67, %s68, %s69
    %p73 = pneg %p67
    %p74 = scmp.eq.s32.totalorder %s9, 7
    %p75 = por %p73, %p74
    %p76 = scmp.ne.s32.totalorder %s68, %s71
    %p77 = scmp.eq.s32.totalorder %s9, 0
    %p78 = por %p76, %p77
    %p79 = scmp.ne.s32.totalorder %s68, %s71
    %p80 = scmp.eq.s32.totalorder %s14, 7
    %p81 = por %p79, %p80
    %p82 = scmp.ne.s32.totalorder %s71, %s72
    %p83 = scmp.eq.s32.totalorder %s14, 0
    %p84 = por %p82, %p83
    %p85 = scmp.ne.s32.totalorder %s71, %s72
    %p86 = scmp.eq.s32.totalorder %s15, 7
    %p87 = por %p85, %p86
    %p89 = scmp.ne.s32.totalorder %s72, %s88
    %p90 = scmp.eq.s32.totalorder %s15, 0
    %p91 = por %p89, %p90
    %s92 = ssub.s32 %s16, %s35
    %s93 = ssub.s32 %s18, %s27
    %s94 = sor.u32 %s92, %s93
    %p95 = scmp.eq.s32.totalorder %s94, 0
    %s97 = sadd.s32 %s96, 1
    %s98 = scalar_select %p95, %s96, %s97
    %p101 = pneg %p95
    %p102 = scmp.eq.s32.totalorder %s9, 7
    %p103 = por %p101, %p102
    %p104 = scmp.ne.s32.totalorder %s96, %s99
    %p105 = scmp.eq.s32.totalorder %s9, 0
    %p106 = por %p104, %p105
    %p107 = scmp.ne.s32.totalorder %s96, %s99
    %p108 = scmp.eq.s32.totalorder %s14, 7
    %p109 = por %p107, %p108
    %p110 = scmp.ne.s32.totalorder %s99, %s100
    %p111 = scmp.eq.s32.totalorder %s14, 0
    %p112 = por %p110, %p111
    %p113 = scmp.ne.s32.totalorder %s99, %s100
    %p114 = scmp.eq.s32.totalorder %s15, 7
    %p115 = por %p113, %p114
    %p117 = scmp.ne.s32.totalorder %s100, %s116
    %p118 = scmp.eq.s32.totalorder %s15, 0
    %p119 = por %p117, %p118
    %s120 = ssub.s32 %s16, %s35
    %s121 = ssub.s32 %s17, %s31
    %s122 = sor.u32 %s120, %s121
    %p123 = scmp.eq.s32.totalorder %s122, 0
    %s125 = sadd.s32 %s124, 1
    %s126 = scalar_select %p123, %s124, %s125
    %p129 = pneg %p123
    %p130 = scmp.eq.s32.totalorder %s9, 7
    %p131 = por %p129, %p130
    %p132 = scmp.ne.s32.totalorder %s124, %s127
    %p133 = scmp.eq.s32.totalorder %s9, 0
    %p134 = por %p132, %p133
    %p135 = scmp.ne.s32.totalorder %s124, %s127
    %p136 = scmp.eq.s32.totalorder %s14, 7
    %p137 = por %p135, %p136
    %p138 = scmp.ne.s32.totalorder %s127, %s128
    %p139 = scmp.eq.s32.totalorder %s14, 0
    %p140 = por %p138, %p139
    %p141 = scmp.ne.s32.totalorder %s127, %s128
    %p142 = scmp.eq.s32.totalorder %s15, 7
    %p143 = por %p141, %p142
    %p145 = scmp.ne.s32.totalorder %s128, %s144
    %p146 = scmp.eq.s32.totalorder %s15, 0
    %p147 = por %p145, %p146
    %p148 = scmp.le.s32.totalorder 1, %s9
    %p149 = scmp.lt.s32.totalorder %s9, 9
    %p150 = pnand %p148, %p149
    %p151 = pneg %p150
    // Predicated region
    $region9: #{blame_gpt_forward.10} parent=5 // pred_check
      _
    $region10: #{blame_gpt_forward.10} parent=5 // pred_check_branch
      %153 = sbr.rel (%p150) target = $region12
    $region11: #{blame_gpt_forward.10} parent=5 // pred_region
      %s154 = ssub.s32 %s9, 1
    $region12: #{blame_gpt_forward.10} parent=5 // pred_fallthru
      _
    %p155 = scmp.lt.s32.totalorder %s9, 8
    // Predicated region
    $region13: #{blame_gpt_forward.10} parent=5 // pred_check
      %p156 = pneg %p155
    $region14: #{blame_gpt_forward.10} parent=5 // pred_check_branch
      %158 = sbr.rel (%p156) target = $region16
    $region15: #{blame_gpt_forward.10} parent=5 // pred_region
      // Predicated region
      $region17: #{blame_gpt_forward.10} parent=15 // pred_check
        %p159 = pneg %p50
      $region18: #{blame_gpt_forward.10} parent=15 // pred_check_branch
        %161 = sbr.rel (%p159) target = $region20
      $region19: #{blame_gpt_forward.10} parent=15 // pred_region
        %p162 = scmp.lt.s32.totalorder %s16, 7
        %s163 = scalar_select %p162, %s16, 7
        %p164 = scmp.lt.s32.totalorder %s17, 0
        %s165 = scalar_select %p164, %s17, 0
        %s166 = sadd.s32 %s165, %s163
        %s167 = smul.addr %s166, 8
        %s168 = scalar_lea.vmem %s0, %s167
      $region20: #{blame_gpt_forward.10} parent=15 // pred_fallthru
        _
      // Predicated region
      $region21: #{blame_gpt_forward.10} parent=15 // pred_check
        %p169 = pneg %p78
      $region22: #{blame_gpt_forward.10} parent=15 // pred_check_branch
        %171 = sbr.rel (%p169) target = $region24
      $region23: #{blame_gpt_forward.10} parent=15 // pred_region
        %p172 = scmp.lt.s32.totalorder %s16, 7
        %s173 = scalar_select %p172, %s16, 7
        %p174 = scmp.lt.s32.totalorder %s18, 0
        %s175 = scalar_select %p174, %s18, 0
        %s176 = sadd.s32 %s175, %s173
        %s177 = smul.addr %s176, 8
        %s178 = scalar_lea.vmem %s1, %s177
      $region24: #{blame_gpt_forward.10} parent=15 // pred_fallthru
        _
      // Predicated region
      $region25: #{blame_gpt_forward.10} parent=15 // pred_check
        %p179 = pneg %p106
      $region26: #{blame_gpt_forward.10} parent=15 // pred_check_branch
        %181 = sbr.rel (%p179) target = $region28
      $region27: #{blame_gpt_forward.10} parent=15 // pred_region
        %p182 = scmp.lt.s32.totalorder %s16, 7
        %s183 = scalar_select %p182, %s16, 7
        %p184 = scmp.lt.s32.totalorder %s18, 0
        %s185 = scalar_select %p184, %s18, 0
        %s186 = sadd.s32 %s185, %s183
        %s187 = smul.addr %s186, 8
        %s188 = scalar_lea.vmem %s2, %s187
      $region28: #{blame_gpt_forward.10} parent=15 // pred_fallthru
        _
    $region16: #{blame_gpt_forward.10} parent=5 // pred_fallthru
      _
    %p189 = scmp.le.s32.totalorder 1, %s9
    %p190 = scmp.lt.s32.totalorder %s9, 9
    %p191 = pnand %p189, %p190
    %p192 = pneg %p191
    // Predicated region
    $region29: #{blame_gpt_forward.10} parent=5 // pred_check
      _
    $region30: #{blame_gpt_forward.10} parent=5 // pred_check_branch
      %194 = sbr.rel (%p191) target = $region32
    $region31: #{blame_gpt_forward.10} parent=5 // pred_region
      %s195 = ssub.s32 %s9, 1
      %p196 = scmp.lt.s32.totalorder %s19, 7
      %s197 = scalar_select %p196, %s19, 7
      %p198 = scmp.lt.s32.totalorder %s20, 0
      %s199 = scalar_select %p198, %s20, 0
      %s200 = sadd.s32 %s199, %s197
      %s201 = smul.addr %s200, 8
      %s202 = scalar_lea.vmem %s0, %s201
      %p203 = pneg %p56
      %p204 = pneg %p53
      %p205 = scmp.lt.s32.totalorder %s19, 7
      %s206 = scalar_select %p205, %s19, 7
      %p207 = scmp.lt.s32.totalorder %s21, 0
      %s208 = scalar_select %p207, %s21, 0
      %s209 = sadd.s32 %s208, %s206
      %s210 = smul.addr %s209, 8
      %s211 = scalar_lea.vmem %s1, %s210
      %p212 = pneg %p84
      %p213 = pneg %p81
      %p214 = scmp.lt.s32.totalorder %s19, 7
      %s215 = scalar_select %p214, %s19, 7
      %p216 = scmp.lt.s32.totalorder %s21, 0
      %s217 = scalar_select %p216, %s21, 0
      %s218 = sadd.s32 %s217, %s215
      %s219 = smul.addr %s218, 8
      %s220 = scalar_lea.vmem %s2, %s219
      %p221 = pneg %p112
      %p222 = pneg %p109
      %p223 = pneg %p140
      %p224 = pneg %p137
      %p225 = scmp.lt.s32.totalorder %s19, 7
      %s226 = scalar_select %p225, %s19, 7
      %p227 = scmp.lt.s32.totalorder %s20, 0
      %s228 = scalar_select %p227, %s20, 0
      %s229 = sadd.s32 %s228, %s226
      %s230 = smul.addr %s229, 8
      %s231 = scalar_lea.vmem %s3, %s230
      %p232 = scmp.lt.s32.totalorder %s19, 7
      %s233 = scalar_select %p232, %s19, 7
      %p234 = scmp.lt.s32.totalorder %s20, 0
      %s235 = scalar_select %p234, %s20, 0
      %s236 = sadd.s32 %s235, %s233
      %s237 = smul.addr %s236, 8
      %s238 = scalar_lea.vmem %s0, %s237
      %p239 = scmp.lt.s32.totalorder %s19, 7
      %s240 = scalar_select %p239, %s19, 7
      %p241 = scmp.lt.s32.totalorder %s21, 0
      %s242 = scalar_select %p241, %s21, 0
      %s243 = sadd.s32 %s242, %s240
      %s244 = smul.addr %s243, 8
      %s245 = scalar_lea.vmem %s1, %s244
      %p246 = scmp.lt.s32.totalorder %s19, 7
      %s247 = scalar_select %p246, %s19, 7
      %p248 = scmp.lt.s32.totalorder %s21, 0
      %s249 = scalar_select %p248, %s21, 0
      %s250 = sadd.s32 %s249, %s247
      %s251 = smul.addr %s250, 8
      %s252 = scalar_lea.vmem %s2, %s251
      %p253 = scmp.lt.s32.totalorder %s19, 7
      %s254 = scalar_select %p253, %s19, 7
      %p255 = scmp.lt.s32.totalorder %s20, 0
      %s256 = scalar_select %p255, %s20, 0
      %s257 = sadd.s32 %s256, %s254
      %s258 = smul.addr %s257, 8
      %s259 = scalar_lea.vmem %s3, %s258
      %p260 = scmp.eq.s32.totalorder %s21, 0
      // Predicated region
      $region33: #{blame_gpt_forward.10} parent=31 // pred_check
        %p261 = pneg %p260
      $region34: #{blame_gpt_forward.10} parent=31 // pred_check_branch
        %263 = sbr.rel (%p261) target = $region36
      $region35: #{blame_gpt_forward.10} parent=31 // pred_region
        %vm264 = vcmask 7168
        %265 = vst.msk [vmem:[#allocation2] sm:$0xff] %vm264, -1e+30
        %266 = vst.msk [vmem:[#allocation3] sm:$0xff] %vm264, 0.0
        %vm267 = vcmask 64512
        %268 = vst.msk [vmem:[#allocation4] sm:$0xff] %vm267, 0.0
      $region36: #{blame_gpt_forward.10} parent=31 // pred_fallthru
        _
      %s269 = smul.u32 %s21, 8
      %s270 = smul.u32 %s20, 8
      %s271 = sadd.s32 %s270, 7
      %p272 = scmp.le.s32.totalorder %s269, %s271
      // Predicated region
      $region37: #{blame_gpt_forward.10} parent=31 // pred_check
        %p273 = pneg %p272
      $region38: #{blame_gpt_forward.10} parent=31 // pred_check_branch
        %275 = sbr.rel (%p273) target = $region40
      $region39: #{blame_gpt_forward.10} parent=31 // pred_region
        %v276 = vld [vmem:[%s238] sm:$0xff]
        %v277 = vld [vmem:[%s245] sm:$0xff]
        %vm278 = vcmask 64512
        %v280 = vsel %vm278, %v276, 0
        %v283 = vsel %vm278, %v277, 0
        %285 = vmatprep.subr.mxu0 0.0
        %286 = vmatpush1.xpose.msra.mxu0 %v283
        %287 = vmatprep.subr.mxu0 0.0
        %288 = vmatpush1.xpose.msra.mxu0 0.0
        %289 = vmatprep.subr.mxu0 0.0
        %290 = vmatpush1.xpose.msra.mxu0 0.0
        %291 = vmatprep.subr.mxu0 0.0
        %292 = vmatpush1.xpose.msra.mxu0 0.0
        %293 = vmatprep.subr.mxu0 0.0
        %294 = vmatpush1.xpose.msra.mxu0 0.0
        %295 = vmatprep.subr.mxu0 0.0
        %296 = vmatpush1.xpose.msra.mxu0 0.0
        %297 = vmatprep.subr.mxu0 0.0
        %298 = vmatpush1.xpose.msra.mxu0 0.0
        %299 = vmatprep.subr.mxu0 0.0
        %300 = vmatpush1.xpose.msra.mxu0 0.0
        %301 = vmatprep.subr.mxu0 0.0
        %302 = vmatpush1.xpose.msra.mxu0 0.0
        %303 = vmatprep.subr.mxu0 0.0
        %304 = vmatpush1.xpose.msra.mxu0 0.0
        %305 = vmatprep.subr.mxu0 0.0
        %306 = vmatpush1.xpose.msra.mxu0 0.0
        %307 = vmatprep.subr.mxu0 0.0
        %308 = vmatpush1.xpose.msra.mxu0 0.0
        %309 = vmatprep.subr.mxu0 0.0
        %310 = vmatpush1.xpose.msra.mxu0 0.0
        %311 = vmatprep.subr.mxu0 0.0
        %312 = vmatpush1.xpose.msra.mxu0 0.0
        %313 = vmatprep.subr.mxu0 0.0
        %314 = vmatpush1.xpose.msra.mxu0 0.0
        %315 = vmatprep.subr.mxu0 0.0
        %316 = vmatpush1.xpose.msra.mxu0 0.0
        %317 = vmatprep.subr.mxu0 0.0
        %318 = vmatpush1.xpose.msra.mxu0 0.0
        %319 = vmatprep.subr.mxu0 0.0
        %320 = vmatpush1.xpose.msra.mxu0 0.0
        %321 = vmatprep.subr.mxu0 0.0
        %322 = vmatpush1.xpose.msra.mxu0 0.0
        %323 = vmatprep.subr.mxu0 0.0
        %324 = vmatpush1.xpose.msra.mxu0 0.0
        %325 = vmatprep.subr.mxu0 0.0
        %326 = vmatpush1.xpose.msra.mxu0 0.0
        %327 = vmatprep.subr.mxu0 0.0
        %328 = vmatpush1.xpose.msra.mxu0 0.0
        %329 = vmatprep.subr.mxu0 0.0
        %330 = vmatpush1.xpose.msra.mxu0 0.0
        %331 = vmatprep.subr.mxu0 0.0
        %332 = vmatpush1.xpose.msra.mxu0 0.0
        %333 = vmatprep.subr.mxu0 0.0
        %334 = vmatpush1.xpose.msra.mxu0 0.0
        %335 = vmatprep.subr.mxu0 0.0
        %336 = vmatpush1.xpose.msra.mxu0 0.0
        %337 = vmatprep.subr.mxu0 0.0
        %338 = vmatpush1.xpose.msra.mxu0 0.0
        %339 = vmatprep.subr.mxu0 0.0
        %340 = vmatpush1.xpose.msra.mxu0 0.0
        %341 = vmatprep.subr.mxu0 0.0
        %342 = vmatpush1.xpose.msra.mxu0 0.0
        %343 = vmatprep.subr.mxu0 0.0
        %344 = vmatpush1.xpose.msra.mxu0 0.0
        %345 = vmatprep.subr.mxu0 0.0
        %346 = vmatpush1.xpose.msra.mxu0 0.0
        %347 = vmatprep.subr.mxu0 0.0
        %348 = vmatpush1.xpose.msra.mxu0 0.0
        %349 = vmatprep.mubr.f32.mxu0 0.0
        %350 = vmatmul.mubr.f32.gmra.mrb[0].mxu0 %v280
        %v351 = vpop.f32.mrb[0].mxu0
        %v352 = vadd.f32 0.0, %v351
        %v353 = vpop.f32.mrb[0].mxu0
        %354 = vdwg.mxu0
        %v355 = vmul.f32 %v352, 0.35355338
        %v356 = vlaneseq
        %v357 = vshrl.u32 %v356, 7
        %v358 = vstv %s270
        %v359 = vadd.s32 %v358, %v357
        %v360 = vlaneseq
        %v361 = vand.u32 %v360, 127
        %v362 = vstv %s269
        %v363 = vadd.s32 %v362, %v361
        %vm364 = vcmp.le.s32.totalorder %v363, %v359
        %v365 = vsel %vm364, %v355, -1e+30
        %v366 = vld [vmem:[#allocation2] sm:$0xff]
        %v367 = vsel %vm278, %v365, -inf
        %368 = vmax.xlane.f32.xlu0 %v367
        %v369 = vpop.xlane.xlu0 %368
        %v370 = vmax.f32 %v366, %v369
        %v371 = vsub.f32 %v366, %v370
        %v372 = vmul.f32 %v371, 1.442695
        %v373 = vpow.pop %v372
        %375 = vset.pattern.permute.xlu0 0
        %376 = vperm.xlu0 %375, %v370
        %v377 = vpop.permute.xlu0 %376
        %v379 = vsub.f32 %v365, %v377
        %v380 = vmul.f32 %v379, 1.442695
        %v381 = vpow.pop %v380
        %v382 = vld [vmem:[#allocation3] sm:$0xff]
        %v383 = vmul.f32 %v373, %v382
        %v384 = vsel %vm278, %v381, 0.0
        %385 = vadd.xlane.f32.xlu0 %v384
        %v386 = vpop.xlane.xlu0 %385
        %v387 = vadd.f32 %v383, %v386
        %vm388 = vcmask 7168
        %389 = vst.msk [vmem:[#allocation3] sm:$0xff] %vm388, %v387
        %v390 = vld [vmem:[#allocation4] sm:$0xff]
        %392 = vset.pattern.permute.xlu0 0
        %393 = vperm.xlu0 %392, %v373
        %v394 = vpop.permute.xlu0 %393
        %v396 = vmul.f32 %v394, %v390
        %v397 = vld [vmem:[%s252] sm:$0xff]
        %v399 = vsel %vm278, %v381, 0
        %401 = vmatprep.subr.mxu0 0.0
        %402 = vmatpush1.msra.mxu0 %v397
        %403 = vmatprep.subr.mxu0 0.0
        %404 = vmatpush1.msra.mxu0 0.0
        %405 = vmatprep.subr.mxu0 0.0
        %406 = vmatpush1.msra.mxu0 0.0
        %407 = vmatprep.subr.mxu0 0.0
        %408 = vmatpush1.msra.mxu0 0.0
        %409 = vmatprep.subr.mxu0 0.0
        %410 = vmatpush1.msra.mxu0 0.0
        %411 = vmatprep.subr.mxu0 0.0
        %412 = vmatpush1.msra.mxu0 0.0
        %413 = vmatprep.subr.mxu0 0.0
        %414 = vmatpush1.msra.mxu0 0.0
        %415 = vmatprep.subr.mxu0 0.0
        %416 = vmatpush1.msra.mxu0 0.0
        %417 = vmatprep.subr.mxu0 0.0
        %418 = vmatpush1.msra.mxu0 0.0
        %419 = vmatprep.subr.mxu0 0.0
        %420 = vmatpush1.msra.mxu0 0.0
        %421 = vmatprep.subr.mxu0 0.0
        %422 = vmatpush1.msra.mxu0 0.0
        %423 = vmatprep.subr.mxu0 0.0
        %424 = vmatpush1.msra.mxu0 0.0
        %425 = vmatprep.subr.mxu0 0.0
        %426 = vmatpush1.msra.mxu0 0.0
        %427 = vmatprep.subr.mxu0 0.0
        %428 = vmatpush1.msra.mxu0 0.0
        %429 = vmatprep.subr.mxu0 0.0
        %430 = vmatpush1.msra.mxu0 0.0
        %431 = vmatprep.subr.mxu0 0.0
        %432 = vmatpush1.msra.mxu0 0.0
        %433 = vmatprep.subr.mxu0 0.0
        %434 = vmatpush1.msra.mxu0 0.0
        %435 = vmatprep.subr.mxu0 0.0
        %436 = vmatpush1.msra.mxu0 0.0
        %437 = vmatprep.subr.mxu0 0.0
        %438 = vmatpush1.msra.mxu0 0.0
        %439 = vmatprep.subr.mxu0 0.0
        %440 = vmatpush1.msra.mxu0 0.0
        %441 = vmatprep.subr.mxu0 0.0
        %442 = vmatpush1.msra.mxu0 0.0
        %443 = vmatprep.subr.mxu0 0.0
        %444 = vmatpush1.msra.mxu0 0.0
        %445 = vmatprep.subr.mxu0 0.0
        %446 = vmatpush1.msra.mxu0 0.0
        %447 = vmatprep.subr.mxu0 0.0
        %448 = vmatpush1.msra.mxu0 0.0
        %449 = vmatprep.subr.mxu0 0.0
        %450 = vmatpush1.msra.mxu0 0.0
        %451 = vmatprep.subr.mxu0 0.0
        %452 = vmatpush1.msra.mxu0 0.0
        %453 = vmatprep.subr.mxu0 0.0
        %454 = vmatpush1.msra.mxu0 0.0
        %455 = vmatprep.subr.mxu0 0.0
        %456 = vmatpush1.msra.mxu0 0.0
        %457 = vmatprep.subr.mxu0 0.0
        %458 = vmatpush1.msra.mxu0 0.0
        %459 = vmatprep.subr.mxu0 0.0
        %460 = vmatpush1.msra.mxu0 0.0
        %461 = vmatprep.subr.mxu0 0.0
        %462 = vmatpush1.msra.mxu0 0.0
        %463 = vmatprep.subr.mxu0 0.0
        %464 = vmatpush1.msra.mxu0 0.0
        %465 = vmatprep.mubr.f32.mxu0 0.0
        %466 = vmatmul.mubr.f32.gmra.mrb[0].mxu0 %v399
        %v467 = vpop.f32.mrb[0].mxu0
        %v468 = vadd.f32 0.0, %v467
        %v469 = vpop.f32.mrb[0].mxu0
        %470 = vdwg.mxu0
        %v471 = vadd.f32 %v396, %v468
        %472 = vst.msk [vmem:[#allocation4] sm:$0xff] %vm278, %v471
        %473 = vst.msk [vmem:[#allocation2] sm:$0xff] %vm388, %v370
      $region40: #{blame_gpt_forward.10} parent=31 // pred_fallthru
        _
      // Predicated region
      $region41: #{blame_gpt_forward.10} parent=31 // pred_check
        %p474 = pneg %p260
      $region42: #{blame_gpt_forward.10} parent=31 // pred_check_branch
        %476 = sbr.rel (%p474) target = $region44
      $region43: #{blame_gpt_forward.10} parent=31 // pred_region
        %v477 = vld [vmem:[#allocation3] sm:$0xff]
        %v478 = vrcp.pop %v477
        %v479 = vld [vmem:[#allocation4] sm:$0xff]
        %481 = vset.pattern.permute.xlu0 0
        %482 = vperm.xlu0 %481, %v478
        %v483 = vpop.permute.xlu0 %482
        %v485 = vmul.f32 %v479, %v483
        %vm486 = vcmask 64512
        %487 = vst.msk [vmem:[%s259] sm:$0xff] %vm486, %v485
      $region44: #{blame_gpt_forward.10} parent=31 // pred_fallthru
        _
      %p488 = scmp.lt.s32.totalorder %s19, 7
      %s489 = scalar_select %p488, %s19, 7
      %p490 = scmp.lt.s32.totalorder %s20, 0
      %s491 = scalar_select %p490, %s20, 0
      %s492 = sadd.s32 %s491, %s489
      %s493 = smul.addr %s492, 8
      %s494 = scalar_lea.vmem %s3, %s493
      // Predicated region
      $region45: #{blame_gpt_forward.10} parent=31 // pred_check
        %p495 = pneg %p137
      $region46: #{blame_gpt_forward.10} parent=31 // pred_check_branch
        %497 = sbr.rel (%p495) target = $region48
      $region47: #{blame_gpt_forward.10} parent=31 // pred_region
        _
      $region48: #{blame_gpt_forward.10} parent=31 // pred_fallthru
        _
    $region32: #{blame_gpt_forward.10} parent=5 // pred_fallthru
      _
    %p498 = scmp.le.s32.totalorder 2, %s9
    // Predicated region
    $region49: #{blame_gpt_forward.10} parent=5 // pred_check
      %p499 = pneg %p498
    $region50: #{blame_gpt_forward.10} parent=5 // pred_check_branch
      %501 = sbr.rel (%p499) target = $region52
    $region51: #{blame_gpt_forward.10} parent=5 // pred_region
      %s502 = ssub.s32 %s9, 2
      // Predicated region
      $region53: #{blame_gpt_forward.10} parent=51 // pred_check
        %p503 = pneg %p143
      $region54: #{blame_gpt_forward.10} parent=51 // pred_check_branch
        %505 = sbr.rel (%p503) target = $region56
      $region55: #{blame_gpt_forward.10} parent=51 // pred_region
        %p506 = scmp.lt.s32.totalorder %s22, 7
        %s507 = scalar_select %p506, %s22, 7
        %p508 = scmp.lt.s32.totalorder %s23, 0
        %s509 = scalar_select %p508, %s23, 0
        %s510 = sadd.s32 %s509, %s507
        %s511 = smul.addr %s510, 8
        %s512 = scalar_lea.vmem %s3, %s511
      $region56: #{blame_gpt_forward.10} parent=51 // pred_fallthru
        _
    $region52: #{blame_gpt_forward.10} parent=5 // pred_fallthru
      _
  $region6: #{blame_gpt_forward.10} parent=0 // loop_footer
    %s13 = sadd.s32 1, %s9
  $region7: #{blame_gpt_forward.10} parent=0 // loop_footer_branch
    %8 = sbr.rel target = $region3
  $region8: #{blame_gpt_forward.10} parent=0 // loop_exit
    _

// kernel: blame_gpt_forward.11
$region0: #{blame_gpt_forward.11}
  #allocation0 [shape = 'u32[]', space=smem, size = 0x4, offset = 0x4, fixed_abs, tag = 'smem constant byte address 0x4 - core index']
  #allocation1 [shape = 'u32[144,128]{1,0:T(1,128)}', space=vmem, size = 0x12000, scoped, tag = 'internal scratch']
  %s0 = inlined_call_operand.vmem [shape: f32[2,4,8,8], index: 0, kind: input, shape index: {}]
  %s1 = inlined_call_operand.vmem [shape: f32[2,8,32], index: 1, kind: input, shape index: {}]
  %s2 = inlined_call_operand.vmem [shape: f32[32,32], index: 2, kind: input, shape index: {}]
  %s3 = inlined_call_operand.vmem [shape: f32[1,32], index: 3, kind: input, shape index: {}]
  %s4 = inlined_call_operand.vmem [shape: f32[2,8,32], index: 4, kind: output, shape index: {}]
  %s5 = sld [smem:[#allocation0]]
  $region49: #{blame_gpt_forward.11} parent=0
    _
  %s7 = ssub.s32 1, %s5
  %s8 = scalar_select 0, %s7, %s5
  loop: start=0, step=1, limit=4
  $region2: #{blame_gpt_forward.11} parent=0 // loop_pre_header
    _
  $region3: #{blame_gpt_forward.11} parent=0 // loop_header
    %s10 = sphi 0, %s14
    %p11 = scmp.ge.s32.totalorder %s10, 4
    %s17 = sphi 0, %s29
    %s18 = sphi 0, %s25
    %s19 = sphi 0, %s17
    %s20 = sphi 0, %s18
    %s21 = sphi 0, %s19
    %s22 = sphi 0, %s20
    %s34 = sphi 0, %s36
    %s37 = sphi 0, %s34
    %s38 = sphi 0, %s37
    %s54 = sphi 0, %s38
    %s62 = sphi 0, %s64
    %s65 = sphi 0, %s62
    %s66 = sphi 0, %s65
    %s82 = sphi 0, %s66
    %s86 = sphi 0, %s86
    %s88 = sphi 0, %s86
    %s89 = sphi 0, %s88
    %s103 = sphi 0, %s89
    %s107 = sphi 0, %s107
    %s109 = sphi 0, %s107
    %s110 = sphi 0, %s109
    %s124 = sphi 0, %s110
    %s132 = sphi 0, %s134
    %s135 = sphi 0, %s132
    %s136 = sphi 0, %s135
    %s152 = sphi 0, %s136
  $region4: #{blame_gpt_forward.11} parent=0 // loop_header_branch
    %13 = sbr.rel (%p11) target = $region8
  $region5: #{blame_gpt_forward.11} parent=0 // loop_body
    %s15 = ssub.s32 %s10, 1
    %s16 = ssub.s32 %s10, 2
    %s23 = sadd.s32 1, %s18
    %p24 = scmp.ge.s32.totalorder %s23, 1
    %s25 = scalar_select %p24, 0, %s23
    %s26 = sadd.s32 1, %s17
    %s27 = scalar_select %p24, %s26, %s17
    %p28 = scmp.ge.s32.totalorder %s27, 2
    %s29 = scalar_select %p28, 0, %s27
    %s30 = ssub.s32 %s17, %s29
    %s31 = ssub.s32 %s18, %s25
    %s32 = sor.u32 %s30, %s31
    %p33 = scmp.eq.s32.totalorder %s32, 0
    %s35 = sadd.s32 %s34, 1
    %s36 = scalar_select %p33, %s34, %s35
    %p39 = pneg %p33
    %p40 = scmp.eq.s32.totalorder %s10, 1
    %p41 = por %p39, %p40
    %p42 = scmp.ne.s32.totalorder %s34, %s37
    %p43 = scmp.eq.s32.totalorder %s10, 0
    %p44 = por %p42, %p43
    %p45 = scmp.ne.s32.totalorder %s34, %s37
    %p46 = scmp.eq.s32.totalorder %s15, 1
    %p47 = por %p45, %p46
    %p48 = scmp.ne.s32.totalorder %s37, %s38
    %p49 = scmp.eq.s32.totalorder %s15, 0
    %p50 = por %p48, %p49
    %p51 = scmp.ne.s32.totalorder %s37, %s38
    %p52 = scmp.eq.s32.totalorder %s16, 1
    %p53 = por %p51, %p52
    %p55 = scmp.ne.s32.totalorder %s38, %s54
    %p56 = scmp.eq.s32.totalorder %s16, 0
    %p57 = por %p55, %p56
    %s58 = ssub.s32 %s17, %s29
    %s59 = ssub.s32 %s18, %s25
    %s60 = sor.u32 %s58, %s59
    %p61 = scmp.eq.s32.totalorder %s60, 0
    %s63 = sadd.s32 %s62, 1
    %s64 = scalar_select %p61, %s62, %s63
    %p67 = pneg %p61
    %p68 = scmp.eq.s32.totalorder %s10, 1
    %p69 = por %p67, %p68
    %p70 = scmp.ne.s32.totalorder %s62, %s65
    %p71 = scmp.eq.s32.totalorder %s10, 0
    %p72 = por %p70, %p71
    %p73 = scmp.ne.s32.totalorder %s62, %s65
    %p74 = scmp.eq.s32.totalorder %s15, 1
    %p75 = por %p73, %p74
    %p76 = scmp.ne.s32.totalorder %s65, %s66
    %p77 = scmp.eq.s32.totalorder %s15, 0
    %p78 = por %p76, %p77
    %p79 = scmp.ne.s32.totalorder %s65, %s66
    %p80 = scmp.eq.s32.totalorder %s16, 1
    %p81 = por %p79, %p80
    %p83 = scmp.ne.s32.totalorder %s66, %s82
    %p84 = scmp.eq.s32.totalorder %s16, 0
    %p85 = por %p83, %p84
    %s87 = sadd.s32 %s86, 1
    %p90 = scmp.eq.s32.totalorder %s10, 1
    %p91 = scmp.ne.s32.totalorder %s86, %s88
    %p92 = scmp.eq.s32.totalorder %s10, 0
    %p93 = por %p91, %p92
    %p94 = scmp.ne.s32.totalorder %s86, %s88
    %p95 = scmp.eq.s32.totalorder %s15, 1
    %p96 = por %p94, %p95
    %p97 = scmp.ne.s32.totalorder %s88, %s89
    %p98 = scmp.eq.s32.totalorder %s15, 0
    %p99 = por %p97, %p98
    %p100 = scmp.ne.s32.totalorder %s88, %s89
    %p101 = scmp.eq.s32.totalorder %s16, 1
    %p102 = por %p100, %p101
    %p104 = scmp.ne.s32.totalorder %s89, %s103
    %p105 = scmp.eq.s32.totalorder %s16, 0
    %p106 = por %p104, %p105
    %s108 = sadd.s32 %s107, 1
    %p111 = scmp.eq.s32.totalorder %s10, 1
    %p112 = scmp.ne.s32.totalorder %s107, %s109
    %p113 = scmp.eq.s32.totalorder %s10, 0
    %p114 = por %p112, %p113
    %p115 = scmp.ne.s32.totalorder %s107, %s109
    %p116 = scmp.eq.s32.totalorder %s15, 1
    %p117 = por %p115, %p116
    %p118 = scmp.ne.s32.totalorder %s109, %s110
    %p119 = scmp.eq.s32.totalorder %s15, 0
    %p120 = por %p118, %p119
    %p121 = scmp.ne.s32.totalorder %s109, %s110
    %p122 = scmp.eq.s32.totalorder %s16, 1
    %p123 = por %p121, %p122
    %p125 = scmp.ne.s32.totalorder %s110, %s124
    %p126 = scmp.eq.s32.totalorder %s16, 0
    %p127 = por %p125, %p126
    %s128 = ssub.s32 %s17, %s29
    %s129 = ssub.s32 %s18, %s25
    %s130 = sor.u32 %s128, %s129
    %p131 = scmp.eq.s32.totalorder %s130, 0
    %s133 = sadd.s32 %s132, 1
    %s134 = scalar_select %p131, %s132, %s133
    %p137 = pneg %p131
    %p138 = scmp.eq.s32.totalorder %s10, 1
    %p139 = por %p137, %p138
    %p140 = scmp.ne.s32.totalorder %s132, %s135
    %p141 = scmp.eq.s32.totalorder %s10, 0
    %p142 = por %p140, %p141
    %p143 = scmp.ne.s32.totalorder %s132, %s135
    %p144 = scmp.eq.s32.totalorder %s15, 1
    %p145 = por %p143, %p144
    %p146 = scmp.ne.s32.totalorder %s135, %s136
    %p147 = scmp.eq.s32.totalorder %s15, 0
    %p148 = por %p146, %p147
    %p149 = scmp.ne.s32.totalorder %s135, %s136
    %p150 = scmp.eq.s32.totalorder %s16, 1
    %p151 = por %p149, %p150
    %p153 = scmp.ne.s32.totalorder %s136, %s152
    %p154 = scmp.eq.s32.totalorder %s16, 0
    %p155 = por %p153, %p154
    %p156 = scmp.le.s32.totalorder 1, %s10
    %p157 = scmp.lt.s32.totalorder %s10, 3
    %p158 = pnand %p156, %p157
    %p159 = pneg %p158
    // Predicated region
    $region9: #{blame_gpt_forward.11} parent=5 // pred_check
      _
    $region10: #{blame_gpt_forward.11} parent=5 // pred_check_branch
      %161 = sbr.rel (%p158) target = $region12
    $region11: #{blame_gpt_forward.11} parent=5 // pred_region
      %s162 = ssub.s32 %s10, 1
      // Predicated region
      $region13: #{blame_gpt_forward.11} parent=11 // pred_check
        %p163 = pneg %p99
      $region14: #{blame_gpt_forward.11} parent=11 // pred_check_branch
        %165 = sbr.rel (%p163) target = $region16
      $region15: #{blame_gpt_forward.11} parent=11 // pred_region
        _
      $region16: #{blame_gpt_forward.11} parent=11 // pred_fallthru
        _
      // Predicated region
      $region17: #{blame_gpt_forward.11} parent=11 // pred_check
        %p166 = pneg %p120
      $region18: #{blame_gpt_forward.11} parent=11 // pred_check_branch
        %168 = sbr.rel (%p166) target = $region20
      $region19: #{blame_gpt_forward.11} parent=11 // pred_region
        _
      $region20: #{blame_gpt_forward.11} parent=11 // pred_fallthru
        _
    $region12: #{blame_gpt_forward.11} parent=5 // pred_fallthru
      _
    %p169 = scmp.lt.s32.totalorder %s10, 2
    // Predicated region
    $region21: #{blame_gpt_forward.11} parent=5 // pred_check
      %p170 = pneg %p169
    $region22: #{blame_gpt_forward.11} parent=5 // pred_check_branch
      %172 = sbr.rel (%p170) target = $region24
    $region23: #{blame_gpt_forward.11} parent=5 // pred_region
      // Predicated region
      $region25: #{blame_gpt_forward.11} parent=23 // pred_check
        %p173 = pneg %p44
      $region26: #{blame_gpt_forward.11} parent=23 // pred_check_branch
        %175 = sbr.rel (%p173) target = $region28
      $region27: #{blame_gpt_forward.11} parent=23 // pred_region
        %p176 = scmp.lt.s32.totalorder %s17, 1
        %s177 = scalar_select %p176, %s17, 1
        %p178 = scmp.lt.s32.totalorder %s18, 0
        %s179 = scalar_select %p178, %s18, 0
        %s180 = smul.addr %s177, 4
        %s181 = sadd.s32 %s179, %s180
        %s182 = smul.addr %s181, 8
        %s183 = scalar_lea.vmem %s0, %s182
      $region28: #{blame_gpt_forward.11} parent=23 // pred_fallthru
        _
      // Predicated region
      $region29: #{blame_gpt_forward.11} parent=23 // pred_check
        %p184 = pneg %p72
      $region30: #{blame_gpt_forward.11} parent=23 // pred_check_branch
        %186 = sbr.rel (%p184) target = $region32
      $region31: #{blame_gpt_forward.11} parent=23 // pred_region
        %p187 = scmp.lt.s32.totalorder %s17, 1
        %s188 = scalar_select %p187, %s17, 1
        %p189 = scmp.lt.s32.totalorder %s18, 0
        %s190 = scalar_select %p189, %s18, 0
        %s191 = sadd.s32 %s190, %s188
        %s192 = smul.addr %s191, 8
        %s193 = scalar_lea.vmem %s1, %s192
      $region32: #{blame_gpt_forward.11} parent=23 // pred_fallthru
        _
    $region24: #{blame_gpt_forward.11} parent=5 // pred_fallthru
      _
    %p194 = scmp.le.s32.totalorder 1, %s10
    %p195 = scmp.lt.s32.totalorder %s10, 3
    %p196 = pnand %p194, %p195
    %p197 = pneg %p196
    // Predicated region
    $region33: #{blame_gpt_forward.11} parent=5 // pred_check
      _
    $region34: #{blame_gpt_forward.11} parent=5 // pred_check_branch
      %199 = sbr.rel (%p196) target = $region36
    $region35: #{blame_gpt_forward.11} parent=5 // pred_region
      %s200 = ssub.s32 %s10, 1
      %p201 = scmp.lt.s32.totalorder %s19, 1
      %s202 = scalar_select %p201, %s19, 1
      %p203 = scmp.lt.s32.totalorder %s20, 0
      %s204 = scalar_select %p203, %s20, 0
      %s205 = smul.addr %s202, 4
      %s206 = sadd.s32 %s204, %s205
      %s207 = smul.addr %s206, 8
      %s208 = scalar_lea.vmem %s0, %s207
      %p209 = pneg %p50
      %p210 = pneg %p47
      %p211 = scmp.lt.s32.totalorder %s19, 1
      %s212 = scalar_select %p211, %s19, 1
      %p213 = scmp.lt.s32.totalorder %s20, 0
      %s214 = scalar_select %p213, %s20, 0
      %s215 = sadd.s32 %s214, %s212
      %s216 = smul.addr %s215, 8
      %s217 = scalar_lea.vmem %s1, %s216
      %p218 = pneg %p78
      %p219 = pneg %p75
      %p220 = pneg %p99
      %p221 = pneg %p96
      %p222 = pneg %p120
      %p223 = pneg %p117
      %p224 = pneg %p148
      %p225 = pneg %p145
      %p226 = scmp.lt.s32.totalorder %s19, 1
      %s227 = scalar_select %p226, %s19, 1
      %p228 = scmp.lt.s32.totalorder %s20, 0
      %s229 = scalar_select %p228, %s20, 0
      %s230 = sadd.s32 %s229, %s227
      %s231 = smul.addr %s230, 8
      %s232 = scalar_lea.vmem %s4, %s231
      %p233 = scmp.lt.s32.totalorder %s19, 1
      %s234 = scalar_select %p233, %s19, 1
      %p235 = scmp.lt.s32.totalorder %s20, 0
      %s236 = scalar_select %p235, %s20, 0
      %s237 = smul.addr %s234, 4
      %s238 = sadd.s32 %s236, %s237
      %s239 = smul.addr %s238, 8
      %s240 = scalar_lea.vmem %s0, %s239
      %p241 = scmp.lt.s32.totalorder %s19, 1
      %s242 = scalar_select %p241, %s19, 1
      %p243 = scmp.lt.s32.totalorder %s20, 0
      %s244 = scalar_select %p243, %s20, 0
      %s245 = sadd.s32 %s244, %s242
      %s246 = smul.addr %s245, 8
      %s247 = scalar_lea.vmem %s1, %s246
      %p248 = scmp.lt.s32.totalorder %s19, 1
      %s249 = scalar_select %p248, %s19, 1
      %p250 = scmp.lt.s32.totalorder %s20, 0
      %s251 = scalar_select %p250, %s20, 0
      %s252 = sadd.s32 %s251, %s249
      %s253 = smul.addr %s252, 8
      %s254 = scalar_lea.vmem %s4, %s253
      %v255 = vld [vmem:[%s247] sm:$0xff]
      %v256 = vld [vmem:[%s3] sm:$0x1]
      %v258 = vlaneseq
      %v259 = vshrl.u32 %v258, 7
      %v260 = vsub.s32 0, %v259
      %v261 = vrot.slane %v256, %v260
      %v263 = vadd.f32 %v255, %v261
      %v264 = vld [vmem:[%s240] sm:$0xff]
      %v265 = vld [vmem:[%s2] sm:$0xff]
      %vm266 = vcmask 64512
      %v268 = vsel %vm266, %v264, 0
      %270 = vmatprep.subr.mxu0 0.0
      %271 = vmatpush1.msra.mxu0 %v265
      %272 = vmatprep.subr.mxu0 0.0
      %273 = vmatpush1.msra.mxu0 0.0
      %274 = vmatprep.subr.mxu0 0.0
      %275 = vmatpush1.msra.mxu0 0.0
      %276 = vmatprep.subr.mxu0 0.0
      %277 = vmatpush1.msra.mxu0 0.0
      %278 = vmatprep.subr.mxu0 0.0
      %279 = vmatpush1.msra.mxu0 0.0
      %280 = vmatprep.subr.mxu0 0.0
      %281 = vmatpush1.msra.mxu0 0.0
      %282 = vmatprep.subr.mxu0 0.0
      %283 = vmatpush1.msra.mxu0 0.0
      %284 = vmatprep.subr.mxu0 0.0
      %285 = vmatpush1.msra.mxu0 0.0
      %286 = vmatprep.subr.mxu0 0.0
      %287 = vmatpush1.msra.mxu0 0.0
      %288 = vmatprep.subr.mxu0 0.0
      %289 = vmatpush1.msra.mxu0 0.0
      %290 = vmatprep.subr.mxu0 0.0
      %291 = vmatpush1.msra.mxu0 0.0
      %292 = vmatprep.subr.mxu0 0.0
      %293 = vmatpush1.msra.mxu0 0.0
      %294 = vmatprep.subr.mxu0 0.0
      %295 = vmatpush1.msra.mxu0 0.0
      %296 = vmatprep.subr.mxu0 0.0
      %297 = vmatpush1.msra.mxu0 0.0
      %298 = vmatprep.subr.mxu0 0.0
      %299 = vmatpush1.msra.mxu0 0.0
      %300 = vmatprep.subr.mxu0 0.0
      %301 = vmatpush1.msra.mxu0 0.0
      %302 = vmatprep.subr.mxu0 0.0
      %303 = vmatpush1.msra.mxu0 0.0
      %304 = vmatprep.subr.mxu0 0.0
      %305 = vmatpush1.msra.mxu0 0.0
      %306 = vmatprep.subr.mxu0 0.0
      %307 = vmatpush1.msra.mxu0 0.0
      %308 = vmatprep.subr.mxu0 0.0
      %309 = vmatpush1.msra.mxu0 0.0
      %310 = vmatprep.subr.mxu0 0.0
      %311 = vmatpush1.msra.mxu0 0.0
      %312 = vmatprep.subr.mxu0 0.0
      %313 = vmatpush1.msra.mxu0 0.0
      %314 = vmatprep.subr.mxu0 0.0
      %315 = vmatpush1.msra.mxu0 0.0
      %316 = vmatprep.subr.mxu0 0.0
      %317 = vmatpush1.msra.mxu0 0.0
      %318 = vmatprep.subr.mxu0 0.0
      %319 = vmatpush1.msra.mxu0 0.0
      %320 = vmatprep.subr.mxu0 0.0
      %321 = vmatpush1.msra.mxu0 0.0
      %322 = vmatprep.subr.mxu0 0.0
      %323 = vmatpush1.msra.mxu0 0.0
      %324 = vmatprep.subr.mxu0 0.0
      %325 = vmatpush1.msra.mxu0 0.0
      %326 = vmatprep.subr.mxu0 0.0
      %327 = vmatpush1.msra.mxu0 0.0
      %328 = vmatprep.subr.mxu0 0.0
      %329 = vmatpush1.msra.mxu0 0.0
      %330 = vmatprep.subr.mxu0 0.0
      %331 = vmatpush1.msra.mxu0 0.0
      %332 = vmatprep.subr.mxu0 0.0
      %333 = vmatpush1.msra.mxu0 0.0
      %334 = vmatprep.mubr.f32.mxu0 0.0
      %335 = vmatmul.mubr.f32.gmra.mrb[0].mxu0 %v268
      %v336 = vpop.f32.mrb[0].mxu0
      %v337 = vadd.f32 0.0, %v336
      %v338 = vpop.f32.mrb[0].mxu0
      %339 = vdwg.mxu0
      %v340 = vadd.f32 %v263, %v337
      %s341 = scalar_lea.vmem %s240, 8
      %v342 = vld [vmem:[%s341] sm:$0xff]
      %v343 = vld [vmem:[%s2 + $0x8] sm:$0xff]
      %v345 = vsel %vm266, %v342, 0
      %347 = vmatprep.subr.mxu0 0.0
      %348 = vmatpush1.msra.mxu0 %v343
      %349 = vmatprep.subr.mxu0 0.0
      %350 = vmatpush1.msra.mxu0 0.0
      %351 = vmatprep.subr.mxu0 0.0
      %352 = vmatpush1.msra.mxu0 0.0
      %353 = vmatprep.subr.mxu0 0.0
      %354 = vmatpush1.msra.mxu0 0.0
      %355 = vmatprep.subr.mxu0 0.0
      %356 = vmatpush1.msra.mxu0 0.0
      %357 = vmatprep.subr.mxu0 0.0
      %358 = vmatpush1.msra.mxu0 0.0
      %359 = vmatprep.subr.mxu0 0.0
      %360 = vmatpush1.msra.mxu0 0.0
      %361 = vmatprep.subr.mxu0 0.0
      %362 = vmatpush1.msra.mxu0 0.0
      %363 = vmatprep.subr.mxu0 0.0
      %364 = vmatpush1.msra.mxu0 0.0
      %365 = vmatprep.subr.mxu0 0.0
      %366 = vmatpush1.msra.mxu0 0.0
      %367 = vmatprep.subr.mxu0 0.0
      %368 = vmatpush1.msra.mxu0 0.0
      %369 = vmatprep.subr.mxu0 0.0
      %370 = vmatpush1.msra.mxu0 0.0
      %371 = vmatprep.subr.mxu0 0.0
      %372 = vmatpush1.msra.mxu0 0.0
      %373 = vmatprep.subr.mxu0 0.0
      %374 = vmatpush1.msra.mxu0 0.0
      %375 = vmatprep.subr.mxu0 0.0
      %376 = vmatpush1.msra.mxu0 0.0
      %377 = vmatprep.subr.mxu0 0.0
      %378 = vmatpush1.msra.mxu0 0.0
      %379 = vmatprep.subr.mxu0 0.0
      %380 = vmatpush1.msra.mxu0 0.0
      %381 = vmatprep.subr.mxu0 0.0
      %382 = vmatpush1.msra.mxu0 0.0
      %383 = vmatprep.subr.mxu0 0.0
      %384 = vmatpush1.msra.mxu0 0.0
      %385 = vmatprep.subr.mxu0 0.0
      %386 = vmatpush1.msra.mxu0 0.0
      %387 = vmatprep.subr.mxu0 0.0
      %388 = vmatpush1.msra.mxu0 0.0
      %389 = vmatprep.subr.mxu0 0.0
      %390 = vmatpush1.msra.mxu0 0.0
      %391 = vmatprep.subr.mxu0 0.0
      %392 = vmatpush1.msra.mxu0 0.0
      %393 = vmatprep.subr.mxu0 0.0
      %394 = vmatpush1.msra.mxu0 0.0
      %395 = vmatprep.subr.mxu0 0.0
      %396 = vmatpush1.msra.mxu0 0.0
      %397 = vmatprep.subr.mxu0 0.0
      %398 = vmatpush1.msra.mxu0 0.0
      %399 = vmatprep.subr.mxu0 0.0
      %400 = vmatpush1.msra.mxu0 0.0
      %401 = vmatprep.subr.mxu0 0.0
      %402 = vmatpush1.msra.mxu0 0.0
      %403 = vmatprep.subr.mxu0 0.0
      %404 = vmatpush1.msra.mxu0 0.0
      %405 = vmatprep.subr.mxu0 0.0
      %406 = vmatpush1.msra.mxu0 0.0
      %407 = vmatprep.subr.mxu0 0.0
      %408 = vmatpush1.msra.mxu0 0.0
      %409 = vmatprep.subr.mxu0 0.0
      %410 = vmatpush1.msra.mxu0 0.0
      %411 = vmatprep.mubr.f32.mxu0 0.0
      %412 = vmatmul.mubr.f32.gmra.mrb[0].mxu0 %v345
      %v413 = vpop.f32.mrb[0].mxu0
      %v414 = vadd.f32 0.0, %v413
      %v415 = vpop.f32.mrb[0].mxu0
      %416 = vdwg.mxu0
      %v417 = vadd.f32 %v340, %v414
      %s418 = scalar_lea.vmem %s240, 16
      %v419 = vld [vmem:[%s418] sm:$0xff]
      %v420 = vld [vmem:[%s2 + $0x10] sm:$0xff]
      %v422 = vsel %vm266, %v419, 0
      %424 = vmatprep.subr.mxu0 0.0
      %425 = vmatpush1.msra.mxu0 %v420
      %426 = vmatprep.subr.mxu0 0.0
      %427 = vmatpush1.msra.mxu0 0.0
      %428 = vmatprep.subr.mxu0 0.0
      %429 = vmatpush1.msra.mxu0 0.0
      %430 = vmatprep.subr.mxu0 0.0
      %431 = vmatpush1.msra.mxu0 0.0
      %432 = vmatprep.subr.mxu0 0.0
      %433 = vmatpush1.msra.mxu0 0.0
      %434 = vmatprep.subr.mxu0 0.0
      %435 = vmatpush1.msra.mxu0 0.0
      %436 = vmatprep.subr.mxu0 0.0
      %437 = vmatpush1.msra.mxu0 0.0
      %438 = vmatprep.subr.mxu0 0.0
      %439 = vmatpush1.msra.mxu0 0.0
      %440 = vmatprep.subr.mxu0 0.0
      %441 = vmatpush1.msra.mxu0 0.0
      %442 = vmatprep.subr.mxu0 0.0
      %443 = vmatpush1.msra.mxu0 0.0
      %444 = vmatprep.subr.mxu0 0.0
      %445 = vmatpush1.msra.mxu0 0.0
      %446 = vmatprep.subr.mxu0 0.0
      %447 = vmatpush1.msra.mxu0 0.0
      %448 = vmatprep.subr.mxu0 0.0
      %449 = vmatpush1.msra.mxu0 0.0
      %450 = vmatprep.subr.mxu0 0.0
      %451 = vmatpush1.msra.mxu0 0.0
      %452 = vmatprep.subr.mxu0 0.0
      %453 = vmatpush1.msra.mxu0 0.0
      %454 = vmatprep.subr.mxu0 0.0
      %455 = vmatpush1.msra.mxu0 0.0
      %456 = vmatprep.subr.mxu0 0.0
      %457 = vmatpush1.msra.mxu0 0.0
      %458 = vmatprep.subr.mxu0 0.0
      %459 = vmatpush1.msra.mxu0 0.0
      %460 = vmatprep.subr.mxu0 0.0
      %461 = vmatpush1.msra.mxu0 0.0
      %462 = vmatprep.subr.mxu0 0.0
      %463 = vmatpush1.msra.mxu0 0.0
      %464 = vmatprep.subr.mxu0 0.0
      %465 = vmatpush1.msra.mxu0 0.0
      %466 = vmatprep.subr.mxu0 0.0
      %467 = vmatpush1.msra.mxu0 0.0
      %468 = vmatprep.subr.mxu0 0.0
      %469 = vmatpush1.msra.mxu0 0.0
      %470 = vmatprep.subr.mxu0 0.0
      %471 = vmatpush1.msra.mxu0 0.0
      %472 = vmatprep.subr.mxu0 0.0
      %473 = vmatpush1.msra.mxu0 0.0
      %474 = vmatprep.subr.mxu0 0.0
      %475 = vmatpush1.msra.mxu0 0.0
      %476 = vmatprep.subr.mxu0 0.0
      %477 = vmatpush1.msra.mxu0 0.0
      %478 = vmatprep.subr.mxu0 0.0
      %479 = vmatpush1.msra.mxu0 0.0
      %480 = vmatprep.subr.mxu0 0.0
      %481 = vmatpush1.msra.mxu0 0.0
      %482 = vmatprep.subr.mxu0 0.0
      %483 = vmatpush1.msra.mxu0 0.0
      %484 = vmatprep.subr.mxu0 0.0
      %485 = vmatpush1.msra.mxu0 0.0
      %486 = vmatprep.subr.mxu0 0.0
      %487 = vmatpush1.msra.mxu0 0.0
      %488 = vmatprep.mubr.f32.mxu0 0.0
      %489 = vmatmul.mubr.f32.gmra.mrb[0].mxu0 %v422
      %v490 = vpop.f32.mrb[0].mxu0
      %v491 = vadd.f32 0.0, %v490
      %v492 = vpop.f32.mrb[0].mxu0
      %493 = vdwg.mxu0
      %v494 = vadd.f32 %v417, %v491
      %s495 = scalar_lea.vmem %s240, 24
      %v496 = vld [vmem:[%s495] sm:$0xff]
      %v497 = vld [vmem:[%s2 + $0x18] sm:$0xff]
      %v499 = vsel %vm266, %v496, 0
      %501 = vmatprep.subr.mxu0 0.0
      %502 = vmatpush1.msra.mxu0 %v497
      %503 = vmatprep.subr.mxu0 0.0
      %504 = vmatpush1.msra.mxu0 0.0
      %505 = vmatprep.subr.mxu0 0.0
      %506 = vmatpush1.msra.mxu0 0.0
      %507 = vmatprep.subr.mxu0 0.0
      %508 = vmatpush1.msra.mxu0 0.0
      %509 = vmatprep.subr.mxu0 0.0
      %510 = vmatpush1.msra.mxu0 0.0
      %511 = vmatprep.subr.mxu0 0.0
      %512 = vmatpush1.msra.mxu0 0.0
      %513 = vmatprep.subr.mxu0 0.0
      %514 = vmatpush1.msra.mxu0 0.0
      %515 = vmatprep.subr.mxu0 0.0
      %516 = vmatpush1.msra.mxu0 0.0
      %517 = vmatprep.subr.mxu0 0.0
      %518 = vmatpush1.msra.mxu0 0.0
      %519 = vmatprep.subr.mxu0 0.0
      %520 = vmatpush1.msra.mxu0 0.0
      %521 = vmatprep.subr.mxu0 0.0
      %522 = vmatpush1.msra.mxu0 0.0
      %523 = vmatprep.subr.mxu0 0.0
      %524 = vmatpush1.msra.mxu0 0.0
      %525 = vmatprep.subr.mxu0 0.0
      %526 = vmatpush1.msra.mxu0 0.0
      %527 = vmatprep.subr.mxu0 0.0
      %528 = vmatpush1.msra.mxu0 0.0
      %529 = vmatprep.subr.mxu0 0.0
      %530 = vmatpush1.msra.mxu0 0.0
      %531 = vmatprep.subr.mxu0 0.0
      %532 = vmatpush1.msra.mxu0 0.0
      %533 = vmatprep.subr.mxu0 0.0
      %534 = vmatpush1.msra.mxu0 0.0
      %535 = vmatprep.subr.mxu0 0.0
      %536 = vmatpush1.msra.mxu0 0.0
      %537 = vmatprep.subr.mxu0 0.0
      %538 = vmatpush1.msra.mxu0 0.0
      %539 = vmatprep.subr.mxu0 0.0
      %540 = vmatpush1.msra.mxu0 0.0
      %541 = vmatprep.subr.mxu0 0.0
      %542 = vmatpush1.msra.mxu0 0.0
      %543 = vmatprep.subr.mxu0 0.0
      %544 = vmatpush1.msra.mxu0 0.0
      %545 = vmatprep.subr.mxu0 0.0
      %546 = vmatpush1.msra.mxu0 0.0
      %547 = vmatprep.subr.mxu0 0.0
      %548 = vmatpush1.msra.mxu0 0.0
      %549 = vmatprep.subr.mxu0 0.0
      %550 = vmatpush1.msra.mxu0 0.0
      %551 = vmatprep.subr.mxu0 0.0
      %552 = vmatpush1.msra.mxu0 0.0
      %553 = vmatprep.subr.mxu0 0.0
      %554 = vmatpush1.msra.mxu0 0.0
      %555 = vmatprep.subr.mxu0 0.0
      %556 = vmatpush1.msra.mxu0 0.0
      %557 = vmatprep.subr.mxu0 0.0
      %558 = vmatpush1.msra.mxu0 0.0
      %559 = vmatprep.subr.mxu0 0.0
      %560 = vmatpush1.msra.mxu0 0.0
      %561 = vmatprep.subr.mxu0 0.0
      %562 = vmatpush1.msra.mxu0 0.0
      %563 = vmatprep.subr.mxu0 0.0
      %564 = vmatpush1.msra.mxu0 0.0
      %565 = vmatprep.mubr.f32.mxu0 0.0
      %566 = vmatmul.mubr.f32.gmra.mrb[0].mxu0 %v499
      %v567 = vpop.f32.mrb[0].mxu0
      %v568 = vadd.f32 0.0, %v567
      %v569 = vpop.f32.mrb[0].mxu0
      %570 = vdwg.mxu0
      %v571 = vadd.f32 %v494, %v568
      %vm572 = vcmask 261120
      %573 = vst.msk [vmem:[%s254] sm:$0xff] %vm572, %v571
      %p574 = scmp.lt.s32.totalorder %s19, 1
      %s575 = scalar_select %p574, %s19, 1
      %p576 = scmp.lt.s32.totalorder %s20, 0
      %s577 = scalar_select %p576, %s20, 0
      %s578 = sadd.s32 %s577, %s575
      %s579 = smul.addr %s578, 8
      %s580 = scalar_lea.vmem %s4, %s579
      // Predicated region
      $region37: #{blame_gpt_forward.11} parent=35 // pred_check
        %p581 = pneg %p145
      $region38: #{blame_gpt_forward.11} parent=35 // pred_check_branch
        %583 = sbr.rel (%p581) target = $region40
      $region39: #{blame_gpt_forward.11} parent=35 // pred_region
        _
      $region40: #{blame_gpt_forward.11} parent=35 // pred_fallthru
        _
    $region36: #{blame_gpt_forward.11} parent=5 // pred_fallthru
      _
    %p584 = scmp.le.s32.totalorder 2, %s10
    // Predicated region
    $region41: #{blame_gpt_forward.11} parent=5 // pred_check
      %p585 = pneg %p584
    $region42: #{blame_gpt_forward.11} parent=5 // pred_check_branch
      %587 = sbr.rel (%p585) target = $region44
    $region43: #{blame_gpt_forward.11} parent=5 // pred_region
      %s588 = ssub.s32 %s10, 2
      // Predicated region
      $region45: #{blame_gpt_forward.11} parent=43 // pred_check
        %p589 = pneg %p151
      $region46: #{blame_gpt_forward.11} parent=43 // pred_check_branch
        %591 = sbr.rel (%p589) target = $region48
      $region47: #{blame_gpt_forward.11} parent=43 // pred_region
        %p592 = scmp.lt.s32.totalorder %s21, 1
        %s593 = scalar_select %p592, %s21, 1
        %p594 = scmp.lt.s32.totalorder %s22, 0
        %s595 = scalar_select %p594, %s22, 0
        %s596 = sadd.s32 %s595, %s593
        %s597 = smul.addr %s596, 8
        %s598 = scalar_lea.vmem %s4, %s597
      $region48: #{blame_gpt_forward.11} parent=43 // pred_fallthru
        _
    $region44: #{blame_gpt_forward.11} parent=5 // pred_fallthru
      _
  $region6: #{blame_gpt_forward.11} parent=0 // loop_footer
    %s14 = sadd.s32 1, %s10
  $region7: #{blame_gpt_forward.11} parent=0 // loop_footer_branch
    %9 = sbr.rel target = $region3
  $region8: #{blame_gpt_forward.11} parent=0 // loop_exit
    _

// kernel: blame_gpt_forward.12
$region0: #{blame_gpt_forward.12}
  #allocation0 [shape = 'u32[]', space=smem, size = 0x4, offset = 0x4, fixed_abs, tag = 'smem constant byte address 0x4 - core index']
  #allocation1 [shape = 'u32[144,128]{1,0:T(1,128)}', space=vmem, size = 0x12000, scoped, tag = 'internal scratch']
  #allocation2 [shape = 'f32[16,32]{1,0:T(8,128)}', space=vmem, size = 0x2000, scoped, tag = 'scratch operand']
  #allocation3 [shape = 'f32[16,32]{1,0:T(8,128)}', space=vmem, size = 0x2000, scoped, tag = 'scratch operand']
  %s0 = inlined_call_operand.vmem [shape: f32[16,32], index: 0, kind: input, shape index: {}]
  %s1 = inlined_call_operand.vmem [shape: f32[1,32], index: 1, kind: input, shape index: {}]
  %s2 = inlined_call_operand.vmem [shape: f32[1,32], index: 2, kind: input, shape index: {}]
  %s3 = inlined_call_operand.vmem [shape: f32[32,128], index: 3, kind: input, shape index: {}]
  %s4 = inlined_call_operand.vmem [shape: f32[1,128], index: 4, kind: input, shape index: {}]
  %s5 = inlined_call_operand.vmem [shape: f32[128,32], index: 5, kind: input, shape index: {}]
  %s6 = inlined_call_operand.vmem [shape: f32[1,32], index: 6, kind: input, shape index: {}]
  %s7 = inlined_call_operand.vmem [shape: f32[16,32], index: 7, kind: output, shape index: {}]
  %s8 = sld [smem:[#allocation0]]
  $region46: #{blame_gpt_forward.12} parent=0
    _
  %s10 = ssub.s32 1, %s8
  %s11 = scalar_select 0, %s10, %s8
  // Predicated region
  $region2: #{blame_gpt_forward.12} parent=0 // pred_check
    _
  $region3: #{blame_gpt_forward.12} parent=0 // pred_check_branch
    %13 = sbr.rel (0) target = $region5
  $region4: #{blame_gpt_forward.12} parent=0 // pred_region
    _
  $region5: #{blame_gpt_forward.12} parent=0 // pred_fallthru
    _
  // Predicated region
  $region6: #{blame_gpt_forward.12} parent=0 // pred_check
    _
  $region7: #{blame_gpt_forward.12} parent=0 // pred_check_branch
    %15 = sbr.rel (0) target = $region9
  $region8: #{blame_gpt_forward.12} parent=0 // pred_region
    _
  $region9: #{blame_gpt_forward.12} parent=0 // pred_fallthru
    _
  // Predicated region
  $region10: #{blame_gpt_forward.12} parent=0 // pred_check
    _
  $region11: #{blame_gpt_forward.12} parent=0 // pred_check_branch
    %17 = sbr.rel (0) target = $region13
  $region12: #{blame_gpt_forward.12} parent=0 // pred_region
    _
  $region13: #{blame_gpt_forward.12} parent=0 // pred_fallthru
    _
  // Predicated region
  $region14: #{blame_gpt_forward.12} parent=0 // pred_check
    _
  $region15: #{blame_gpt_forward.12} parent=0 // pred_check_branch
    %19 = sbr.rel (0) target = $region17
  $region16: #{blame_gpt_forward.12} parent=0 // pred_region
    _
  $region17: #{blame_gpt_forward.12} parent=0 // pred_fallthru
    _
  // Predicated region
  $region18: #{blame_gpt_forward.12} parent=0 // pred_check
    _
  $region19: #{blame_gpt_forward.12} parent=0 // pred_check_branch
    %21 = sbr.rel (0) target = $region21
  $region20: #{blame_gpt_forward.12} parent=0 // pred_region
    _
  $region21: #{blame_gpt_forward.12} parent=0 // pred_fallthru
    _
  // Predicated region
  $region22: #{blame_gpt_forward.12} parent=0 // pred_check
    _
  $region23: #{blame_gpt_forward.12} parent=0 // pred_check_branch
    %23 = sbr.rel (0) target = $region25
  $region24: #{blame_gpt_forward.12} parent=0 // pred_region
    _
  $region25: #{blame_gpt_forward.12} parent=0 // pred_fallthru
    _
  // Predicated region
  $region26: #{blame_gpt_forward.12} parent=0 // pred_check
    _
  $region27: #{blame_gpt_forward.12} parent=0 // pred_check_branch
    %25 = sbr.rel (0) target = $region29
  $region28: #{blame_gpt_forward.12} parent=0 // pred_region
    _
  $region29: #{blame_gpt_forward.12} parent=0 // pred_fallthru
    _
  %p26 = scmp.eq.s32.totalorder 0, 0
  // Predicated region
  $region30: #{blame_gpt_forward.12} parent=0 // pred_check
    %p27 = pneg %p26
  $region31: #{blame_gpt_forward.12} parent=0 // pred_check_branch
    %29 = sbr.rel (%p27) target = $region33
  $region32: #{blame_gpt_forward.12} parent=0 // pred_region
    %v30 = vld [vmem:[%s0] sm:$0xff]
    %v31 = vld [vmem:[%s0 + $0x8] sm:$0xff]
    %v32 = vld [vmem:[%s1] sm:$0x1]
    %v33 = vld [vmem:[%s2] sm:$0x1]
    %vm34 = vcmask 261120
    %v35 = vsel %vm34, %v30, 0.0
    %36 = vadd.xlane.f32.xlu0 %v35
    %v37 = vpop.xlane.xlu0 %36
    %v38 = vsel %vm34, %v31, 0.0
    %39 = vadd.xlane.f32.xlu0 %v38
    %v40 = vpop.xlane.xlu0 %39
    %v41 = vrcp.pop 32.0
    %v42 = vmul.f32 %v37, %v41
    %v43 = vmul.f32 %v40, %v41
    %v44 = vsub.f32 %v30, %v42
    %v45 = vsub.f32 %v31, %v43
    %v46 = vmul.f32 %v44, %v44
    %v47 = vmul.f32 %v45, %v45
    %v48 = vsel %vm34, %v46, 0.0
    %49 = vadd.xlane.f32.xlu0 %v48
    %v50 = vpop.xlane.xlu0 %49
    %v51 = vsel %vm34, %v47, 0.0
    %52 = vadd.xlane.f32.xlu0 %v51
    %v53 = vpop.xlane.xlu0 %52
    %v54 = vmul.f32 %v50, %v41
    %v55 = vmul.f32 %v53, %v41
    %v56 = vadd.f32 %v54, 1e-05
    %v57 = vadd.f32 %v55, 1e-05
    %v58 = vrsqrt.pop %v56
    %v59 = vrsqrt.pop %v57
    %v60 = vmul.f32 %v44, %v58
    %v61 = vmul.f32 %v45, %v59
    %v63 = vlaneseq
    %v64 = vshrl.u32 %v63, 7
    %v65 = vsub.s32 0, %v64
    %v66 = vrot.slane %v32, %v65
    %v68 = vmul.f32 %v60, %v66
    %v69 = vmul.f32 %v61, %v66
    %v71 = vlaneseq
    %v72 = vshrl.u32 %v71, 7
    %v73 = vsub.s32 0, %v72
    %v74 = vrot.slane %v33, %v73
    %v76 = vadd.f32 %v68, %v74
    %v77 = vadd.f32 %v69, %v74
    %78 = vst.msk [vmem:[#allocation2] sm:$0xff] %vm34, %v76
    %79 = vst.msk [vmem:[#allocation2 + $0x8] sm:$0xff] %vm34, %v77
    %v80 = vld [vmem:[%s6] sm:$0x1]
    %v82 = vlaneseq
    %v83 = vshrl.u32 %v82, 7
    %v84 = vsub.s32 0, %v83
    %v85 = vrot.slane %v80, %v84
    %v87 = vadd.f32 %v30, %v85
    %v88 = vadd.f32 %v31, %v85
    %89 = vst.msk [vmem:[#allocation3] sm:$0xff] %vm34, %v87
    %90 = vst.msk [vmem:[#allocation3 + $0x8] sm:$0xff] %vm34, %v88
  $region33: #{blame_gpt_forward.12} parent=0 // pred_fallthru
    _
  %v91 = vld [vmem:[#allocation2] sm:$0xff]
  %v92 = vld [vmem:[#allocation2 + $0x8] sm:$0xff]
  %v93 = vld [vmem:[%s3] sm:$0xff]
  %v94 = vld [vmem:[%s3 + $0x8] sm:$0xff]
  %v95 = vld [vmem:[%s3 + $0x10] sm:$0xff]
  %v96 = vld [vmem:[%s3 + $0x18] sm:$0xff]
  %v97 = vld [vmem:[%s4] sm:$0x1]
  %v99 = vlaneseq
  %v100 = vshrl.u32 %v99, 7
  %v101 = vsub.s32 0, %v100
  %v102 = vrot.slane %v97, %v101
  %vm104 = vcmask 261120
  %v106 = vsel %vm104, %v91, 0
  %v109 = vsel %vm104, %v92, 0
  %111 = vmatprep.subr.mxu0 0.0
  %112 = vmatpush1.msra.mxu0 %v93
  %113 = vmatprep.subr.mxu0 0.0
  %114 = vmatpush1.msra.mxu0 %v94
  %115 = vmatprep.subr.mxu0 0.0
  %116 = vmatpush1.msra.mxu0 %v95
  %117 = vmatprep.subr.mxu0 0.0
  %118 = vmatpush1.msra.mxu0 %v96
  %119 = vmatprep.subr.mxu0 0.0
  %120 = vmatpush1.msra.mxu0 0.0
  %121 = vmatprep.subr.mxu0 0.0
  %122 = vmatpush1.msra.mxu0 0.0
  %123 = vmatprep.subr.mxu0 0.0
  %124 = vmatpush1.msra.mxu0 0.0
  %125 = vmatprep.subr.mxu0 0.0
  %126 = vmatpush1.msra.mxu0 0.0
  %127 = vmatprep.subr.mxu0 0.0
  %128 = vmatpush1.msra.mxu0 0.0
  %129 = vmatprep.subr.mxu0 0.0
  %130 = vmatpush1.msra.mxu0 0.0
  %131 = vmatprep.subr.mxu0 0.0
  %132 = vmatpush1.msra.mxu0 0.0
  %133 = vmatprep.subr.mxu0 0.0
  %134 = vmatpush1.msra.mxu0 0.0
  %135 = vmatprep.subr.mxu0 0.0
  %136 = vmatpush1.msra.mxu0 0.0
  %137 = vmatprep.subr.mxu0 0.0
  %138 = vmatpush1.msra.mxu0 0.0
  %139 = vmatprep.subr.mxu0 0.0
  %140 = vmatpush1.msra.mxu0 0.0
  %141 = vmatprep.subr.mxu0 0.0
  %142 = vmatpush1.msra.mxu0 0.0
  %143 = vmatprep.subr.mxu0 0.0
  %144 = vmatpush1.msra.mxu0 0.0
  %145 = vmatprep.subr.mxu0 0.0
  %146 = vmatpush1.msra.mxu0 0.0
  %147 = vmatprep.subr.mxu0 0.0
  %148 = vmatpush1.msra.mxu0 0.0
  %149 = vmatprep.subr.mxu0 0.0
  %150 = vmatpush1.msra.mxu0 0.0
  %151 = vmatprep.subr.mxu0 0.0
  %152 = vmatpush1.msra.mxu0 0.0
  %153 = vmatprep.subr.mxu0 0.0
  %154 = vmatpush1.msra.mxu0 0.0
  %155 = vmatprep.subr.mxu0 0.0
  %156 = vmatpush1.msra.mxu0 0.0
  %157 = vmatprep.subr.mxu0 0.0
  %158 = vmatpush1.msra.mxu0 0.0
  %159 = vmatprep.subr.mxu0 0.0
  %160 = vmatpush1.msra.mxu0 0.0
  %161 = vmatprep.subr.mxu0 0.0
  %162 = vmatpush1.msra.mxu0 0.0
  %163 = vmatprep.subr.mxu0 0.0
  %164 = vmatpush1.msra.mxu0 0.0
  %165 = vmatprep.subr.mxu0 0.0
  %166 = vmatpush1.msra.mxu0 0.0
  %167 = vmatprep.subr.mxu0 0.0
  %168 = vmatpush1.msra.mxu0 0.0
  %169 = vmatprep.subr.mxu0 0.0
  %170 = vmatpush1.msra.mxu0 0.0
  %171 = vmatprep.subr.mxu0 0.0
  %172 = vmatpush1.msra.mxu0 0.0
  %173 = vmatprep.subr.mxu0 0.0
  %174 = vmatpush1.msra.mxu0 0.0
  %175 = vmatprep.mubr.f32.mxu0 0.0
  %176 = vmatmul.mubr.f32.gmra.mrb[0].mxu0 %v106
  %v177 = vpop.f32.mrb[0].mxu0
  %v178 = vadd.f32 %v102, %v177
  %v179 = vpop.f32.mrb[0].mxu0
  %180 = vmatprep.mubr.f32.mxu0 0.0
  %181 = vmatmul.mubr.f32.gmra.mrb[0].mxu0 %v109
  %v182 = vpop.f32.mrb[0].mxu0
  %v183 = vadd.f32 %v102, %v182
  %v184 = vpop.f32.mrb[0].mxu0
  %185 = vdwg.mxu0
  %v186 = vmul.f32 %v178, 0.5
  %v187 = vmul.f32 %v183, 0.5
  %v188 = vmul.f32 %v178, %v178
  %v189 = vmul.f32 %v183, %v183
  %v190 = vmul.f32 %v178, %v188
  %v191 = vmul.f32 %v183, %v189
  %v192 = vmul.f32 %v190, 0.044715
  %v193 = vmul.f32 %v191, 0.044715
  %v194 = vadd.f32 %v178, %v192
  %v195 = vadd.f32 %v183, %v193
  %v196 = vmul.f32 %v194, 0.7978846
  %v197 = vmul.f32 %v195, 0.7978846
  %v198 = vtanh.pop %v196
  %v199 = vtanh.pop %v197
  %v200 = vadd.f32 %v198, 1.0
  %v201 = vadd.f32 %v199, 1.0
  %v202 = vmul.f32 %v186, %v200
  %v203 = vmul.f32 %v187, %v201
  %v204 = vld [vmem:[#allocation3] sm:$0xff]
  %v205 = vld [vmem:[#allocation3 + $0x8] sm:$0xff]
  %v206 = vld [vmem:[%s5] sm:$0xff]
  %v207 = vld [vmem:[%s5 + $0x8] sm:$0xff]
  %v208 = vld [vmem:[%s5 + $0x10] sm:$0xff]
  %v209 = vld [vmem:[%s5 + $0x18] sm:$0xff]
  %v210 = vld [vmem:[%s5 + $0x20] sm:$0xff]
  %v211 = vld [vmem:[%s5 + $0x28] sm:$0xff]
  %v212 = vld [vmem:[%s5 + $0x30] sm:$0xff]
  %v213 = vld [vmem:[%s5 + $0x38] sm:$0xff]
  %v214 = vld [vmem:[%s5 + $0x40] sm:$0xff]
  %v215 = vld [vmem:[%s5 + $0x48] sm:$0xff]
  %v216 = vld [vmem:[%s5 + $0x50] sm:$0xff]
  %v217 = vld [vmem:[%s5 + $0x58] sm:$0xff]
  %v218 = vld [vmem:[%s5 + $0x60] sm:$0xff]
  %v219 = vld [vmem:[%s5 + $0x68] sm:$0xff]
  %v220 = vld [vmem:[%s5 + $0x70] sm:$0xff]
  %v221 = vld [vmem:[%s5 + $0x78] sm:$0xff]
  %222 = vmatprep.subr.mxu0 0.0
  %223 = vmatpush1.msra.mxu0 %v206
  %224 = vmatprep.subr.mxu0 0.0
  %225 = vmatpush1.msra.mxu0 %v207
  %226 = vmatprep.subr.mxu0 0.0
  %227 = vmatpush1.msra.mxu0 %v208
  %228 = vmatprep.subr.mxu0 0.0
  %229 = vmatpush1.msra.mxu0 %v209
  %230 = vmatprep.subr.mxu0 0.0
  %231 = vmatpush1.msra.mxu0 %v210
  %232 = vmatprep.subr.mxu0 0.0
  %233 = vmatpush1.msra.mxu0 %v211
  %234 = vmatprep.subr.mxu0 0.0
  %235 = vmatpush1.msra.mxu0 %v212
  %236 = vmatprep.subr.mxu0 0.0
  %237 = vmatpush1.msra.mxu0 %v213
  %238 = vmatprep.subr.mxu0 0.0
  %239 = vmatpush1.msra.mxu0 %v214
  %240 = vmatprep.subr.mxu0 0.0
  %241 = vmatpush1.msra.mxu0 %v215
  %242 = vmatprep.subr.mxu0 0.0
  %243 = vmatpush1.msra.mxu0 %v216
  %244 = vmatprep.subr.mxu0 0.0
  %245 = vmatpush1.msra.mxu0 %v217
  %246 = vmatprep.subr.mxu0 0.0
  %247 = vmatpush1.msra.mxu0 %v218
  %248 = vmatprep.subr.mxu0 0.0
  %249 = vmatpush1.msra.mxu0 %v219
  %250 = vmatprep.subr.mxu0 0.0
  %251 = vmatpush1.msra.mxu0 %v220
  %252 = vmatprep.subr.mxu0 0.0
  %253 = vmatpush1.msra.mxu0 %v221
  %254 = vmatprep.subr.mxu0 0.0
  %255 = vmatpush1.msra.mxu0 0.0
  %256 = vmatprep.subr.mxu0 0.0
  %257 = vmatpush1.msra.mxu0 0.0
  %258 = vmatprep.subr.mxu0 0.0
  %259 = vmatpush1.msra.mxu0 0.0
  %260 = vmatprep.subr.mxu0 0.0
  %261 = vmatpush1.msra.mxu0 0.0
  %262 = vmatprep.subr.mxu0 0.0
  %263 = vmatpush1.msra.mxu0 0.0
  %264 = vmatprep.subr.mxu0 0.0
  %265 = vmatpush1.msra.mxu0 0.0
  %266 = vmatprep.subr.mxu0 0.0
  %267 = vmatpush1.msra.mxu0 0.0
  %268 = vmatprep.subr.mxu0 0.0
  %269 = vmatpush1.msra.mxu0 0.0
  %270 = vmatprep.subr.mxu0 0.0
  %271 = vmatpush1.msra.mxu0 0.0
  %272 = vmatprep.subr.mxu0 0.0
  %273 = vmatpush1.msra.mxu0 0.0
  %274 = vmatprep.subr.mxu0 0.0
  %275 = vmatpush1.msra.mxu0 0.0
  %276 = vmatprep.subr.mxu0 0.0
  %277 = vmatpush1.msra.mxu0 0.0
  %278 = vmatprep.subr.mxu0 0.0
  %279 = vmatpush1.msra.mxu0 0.0
  %280 = vmatprep.subr.mxu0 0.0
  %281 = vmatpush1.msra.mxu0 0.0
  %282 = vmatprep.subr.mxu0 0.0
  %283 = vmatpush1.msra.mxu0 0.0
  %284 = vmatprep.subr.mxu0 0.0
  %285 = vmatpush1.msra.mxu0 0.0
  %286 = vmatprep.mubr.f32.mxu0 0.0
  %287 = vmatmul.mubr.f32.gmra.mrb[0].mxu0 %v202
  %v288 = vpop.f32.mrb[0].mxu0
  %v289 = vadd.f32 0.0, %v288
  %v290 = vpop.f32.mrb[0].mxu0
  %291 = vmatprep.mubr.f32.mxu0 0.0
  %292 = vmatmul.mubr.f32.gmra.mrb[0].mxu0 %v203
  %v293 = vpop.f32.mrb[0].mxu0
  %v294 = vadd.f32 0.0, %v293
  %v295 = vpop.f32.mrb[0].mxu0
  %296 = vdwg.mxu0
  %v297 = vadd.f32 %v204, %v289
  %v298 = vadd.f32 %v205, %v294
  %299 = vst.msk [vmem:[#allocation3] sm:$0xff] %vm104, %v297
  %300 = vst.msk [vmem:[#allocation3 + $0x8] sm:$0xff] %vm104, %v298
  // Predicated region
  $region34: #{blame_gpt_forward.12} parent=0 // pred_check
    %p301 = pneg %p26
  $region35: #{blame_gpt_forward.12} parent=0 // pred_check_branch
    %303 = sbr.rel (%p301) target = $region37
  $region36: #{blame_gpt_forward.12} parent=0 // pred_region
    %v304 = vld [vmem:[#allocation3] sm:$0xff]
    %v305 = vld [vmem:[#allocation3 + $0x8] sm:$0xff]
    %306 = vst.msk [vmem:[%s7] sm:$0xff] %vm104, %v304
    %307 = vst.msk [vmem:[%s7 + $0x8] sm:$0xff] %vm104, %v305
  $region37: #{blame_gpt_forward.12} parent=0 // pred_fallthru
    _
  // Predicated region
  $region38: #{blame_gpt_forward.12} parent=0 // pred_check
    _
  $region39: #{blame_gpt_forward.12} parent=0 // pred_check_branch
    %309 = sbr.rel (0) target = $region41
  $region40: #{blame_gpt_forward.12} parent=0 // pred_region
    _
  $region41: #{blame_gpt_forward.12} parent=0 // pred_fallthru
    _
  // Predicated region
  $region42: #{blame_gpt_forward.12} parent=0 // pred_check
    _
  $region43: #{blame_gpt_forward.12} parent=0 // pred_check_branch
    %311 = sbr.rel (0) target = $region45
  $region44: #{blame_gpt_forward.12} parent=0 // pred_region
    _
  $region45: #{blame_gpt_forward.12} parent=0 // pred_fallthru
    _

// kernel: blame_gpt_forward.17
$region0: #{blame_gpt_forward.17}
  #allocation0 [shape = 'u32[]', space=smem, size = 0x4, offset = 0x4, fixed_abs, tag = 'smem constant byte address 0x4 - core index']
  #allocation1 [shape = 'u32[144,128]{1,0:T(1,128)}', space=vmem, size = 0x12000, scoped, tag = 'internal scratch']
  %s0 = inlined_call_operand.vmem [shape: f32[2,32], index: 0, kind: input, shape index: {}]
  %s1 = inlined_call_operand.vmem [shape: f32[1,32], index: 1, kind: input, shape index: {}]
  %s2 = inlined_call_operand.vmem [shape: f32[1,32], index: 2, kind: input, shape index: {}]
  %s3 = inlined_call_operand.vmem [shape: f32[64,32], index: 3, kind: input, shape index: {}]
  %s4 = inlined_call_operand.hbm [shape: f32[2,64], index: 4, kind: output, shape index: {}]
  %s5 = sld [smem:[#allocation0]]
  $region26: #{blame_gpt_forward.17} parent=0
    _
  %s7 = ssub.s32 1, %s5
  %s8 = scalar_select 0, %s7, %s5
  $region1: #{blame_gpt_forward.17} parent=0
    #allocation2 [shape = 'u8[1024]{0}', space=vmem, size = 0x400, scoped, tag = 'output window, operand 0, single buffered']
    #allocation3 [shape = 's32[1]{0}', space=sflag, size = 0x4, scoped, tag = 'scoped memory for blame_gpt_forward.17']
    %9 = vsyncpa [#allocation3], 0
    // Predicated region
    $region2: #{blame_gpt_forward.17} parent=1 // pred_check
      _
    $region3: #{blame_gpt_forward.17} parent=1 // pred_check_branch
      %11 = sbr.rel (0) target = $region5
    $region4: #{blame_gpt_forward.17} parent=1 // pred_region
      _
    $region5: #{blame_gpt_forward.17} parent=1 // pred_fallthru
      _
    // Predicated region
    $region6: #{blame_gpt_forward.17} parent=1 // pred_check
      _
    $region7: #{blame_gpt_forward.17} parent=1 // pred_check_branch
      %13 = sbr.rel (0) target = $region9
    $region8: #{blame_gpt_forward.17} parent=1 // pred_region
      _
    $region9: #{blame_gpt_forward.17} parent=1 // pred_fallthru
      _
    // Predicated region
    $region10: #{blame_gpt_forward.17} parent=1 // pred_check
      _
    $region11: #{blame_gpt_forward.17} parent=1 // pred_check_branch
      %15 = sbr.rel (0) target = $region13
    $region12: #{blame_gpt_forward.17} parent=1 // pred_region
      _
    $region13: #{blame_gpt_forward.17} parent=1 // pred_fallthru
      _
    // Predicated region
    $region14: #{blame_gpt_forward.17} parent=1 // pred_check
      _
    $region15: #{blame_gpt_forward.17} parent=1 // pred_check_branch
      %17 = sbr.rel (0) target = $region17
    $region16: #{blame_gpt_forward.17} parent=1 // pred_region
      _
    $region17: #{blame_gpt_forward.17} parent=1 // pred_fallthru
      _
    %v18 = vld [vmem:[%s0] sm:$0x3]
    %v19 = vld [vmem:[%s1] sm:$0x1]
    %v20 = vld [vmem:[%s2] sm:$0x1]
    %vm21 = vcmask 254976
    %v22 = vsel %vm21, %v18, 0.0
    %23 = vadd.xlane.f32.xlu0 %v22
    %v24 = vpop.xlane.xlu0 %23
    %v25 = vrcp.pop 32.0
    %v26 = vmul.f32 %v24, %v25
    %v27 = vsub.f32 %v18, %v26
    %v28 = vmul.f32 %v27, %v27
    %v29 = vsel %vm21, %v28, 0.0
    %30 = vadd.xlane.f32.xlu0 %v29
    %v31 = vpop.xlane.xlu0 %30
    %v32 = vmul.f32 %v31, %v25
    %v33 = vadd.f32 %v32, 1e-05
    %v34 = vrsqrt.pop %v33
    %v35 = vmul.f32 %v27, %v34
    %v37 = vlaneseq
    %v38 = vshrl.u32 %v37, 7
    %v39 = vsub.s32 0, %v38
    %v40 = vrot.slane %v19, %v39
    %v42 = vmul.f32 %v35, %v40
    %v44 = vlaneseq
    %v45 = vshrl.u32 %v44, 7
    %v46 = vsub.s32 0, %v45
    %v47 = vrot.slane %v20, %v46
    %v49 = vadd.f32 %v42, %v47
    %v50 = vld [vmem:[%s3] sm:$0xff]
    %v51 = vld [vmem:[%s3 + $0x8] sm:$0xff]
    %v52 = vld [vmem:[%s3 + $0x10] sm:$0xff]
    %v53 = vld [vmem:[%s3 + $0x18] sm:$0xff]
    %v54 = vld [vmem:[%s3 + $0x20] sm:$0xff]
    %v55 = vld [vmem:[%s3 + $0x28] sm:$0xff]
    %v56 = vld [vmem:[%s3 + $0x30] sm:$0xff]
    %v57 = vld [vmem:[%s3 + $0x38] sm:$0xff]
    %vm58 = vcmask 261120
    %v60 = vsel %vm58, %v49, 0
    %v63 = vsel %vm58, %v50, 0
    %v66 = vsel %vm58, %v51, 0
    %v69 = vsel %vm58, %v52, 0
    %v72 = vsel %vm58, %v53, 0
    %v75 = vsel %vm58, %v54, 0
    %v78 = vsel %vm58, %v55, 0
    %v81 = vsel %vm58, %v56, 0
    %v84 = vsel %vm58, %v57, 0
    %86 = vmatprep.subr.mxu0 0.0
    %87 = vmatpush1.xpose.msra.mxu0 %v63
    %88 = vmatprep.subr.mxu0 0.0
    %89 = vmatpush1.xpose.msra.mxu0 %v66
    %90 = vmatprep.subr.mxu0 0.0
    %91 = vmatpush1.xpose.msra.mxu0 %v69
    %92 = vmatprep.subr.mxu0 0.0
    %93 = vmatpush1.xpose.msra.mxu0 %v72
    %94 = vmatprep.subr.mxu0 0.0
    %95 = vmatpush1.xpose.msra.mxu0 %v75
    %96 = vmatprep.subr.mxu0 0.0
    %97 = vmatpush1.xpose.msra.mxu0 %v78
    %98 = vmatprep.subr.mxu0 0.0
    %99 = vmatpush1.xpose.msra.mxu0 %v81
    %100 = vmatprep.subr.mxu0 0.0
    %101 = vmatpush1.xpose.msra.mxu0 %v84
    %102 = vmatprep.subr.mxu0 0.0
    %103 = vmatpush1.xpose.msra.mxu0 0.0
    %104 = vmatprep.subr.mxu0 0.0
    %105 = vmatpush1.xpose.msra.mxu0 0.0
    %106 = vmatprep.subr.mxu0 0.0
    %107 = vmatpush1.xpose.msra.mxu0 0.0
    %108 = vmatprep.subr.mxu0 0.0
    %109 = vmatpush1.xpose.msra.mxu0 0.0
    %110 = vmatprep.subr.mxu0 0.0
    %111 = vmatpush1.xpose.msra.mxu0 0.0
    %112 = vmatprep.subr.mxu0 0.0
    %113 = vmatpush1.xpose.msra.mxu0 0.0
    %114 = vmatprep.subr.mxu0 0.0
    %115 = vmatpush1.xpose.msra.mxu0 0.0
    %116 = vmatprep.subr.mxu0 0.0
    %117 = vmatpush1.xpose.msra.mxu0 0.0
    %118 = vmatprep.subr.mxu0 0.0
    %119 = vmatpush1.xpose.msra.mxu0 0.0
    %120 = vmatprep.subr.mxu0 0.0
    %121 = vmatpush1.xpose.msra.mxu0 0.0
    %122 = vmatprep.subr.mxu0 0.0
    %123 = vmatpush1.xpose.msra.mxu0 0.0
    %124 = vmatprep.subr.mxu0 0.0
    %125 = vmatpush1.xpose.msra.mxu0 0.0
    %126 = vmatprep.subr.mxu0 0.0
    %127 = vmatpush1.xpose.msra.mxu0 0.0
    %128 = vmatprep.subr.mxu0 0.0
    %129 = vmatpush1.xpose.msra.mxu0 0.0
    %130 = vmatprep.subr.mxu0 0.0
    %131 = vmatpush1.xpose.msra.mxu0 0.0
    %132 = vmatprep.subr.mxu0 0.0
    %133 = vmatpush1.xpose.msra.mxu0 0.0
    %134 = vmatprep.subr.mxu0 0.0
    %135 = vmatpush1.xpose.msra.mxu0 0.0
    %136 = vmatprep.subr.mxu0 0.0
    %137 = vmatpush1.xpose.msra.mxu0 0.0
    %138 = vmatprep.subr.mxu0 0.0
    %139 = vmatpush1.xpose.msra.mxu0 0.0
    %140 = vmatprep.subr.mxu0 0.0
    %141 = vmatpush1.xpose.msra.mxu0 0.0
    %142 = vmatprep.subr.mxu0 0.0
    %143 = vmatpush1.xpose.msra.mxu0 0.0
    %144 = vmatprep.subr.mxu0 0.0
    %145 = vmatpush1.xpose.msra.mxu0 0.0
    %146 = vmatprep.subr.mxu0 0.0
    %147 = vmatpush1.xpose.msra.mxu0 0.0
    %148 = vmatprep.subr.mxu0 0.0
    %149 = vmatpush1.xpose.msra.mxu0 0.0
    %150 = vmatprep.mubr.f32.mxu0 0.0
    %151 = vmatmul.mubr.f32.gmra.mrb[0].mxu0 %v60
    %v152 = vpop.f32.mrb[0].mxu0
    %v153 = vadd.f32 0.0, %v152
    %v154 = vpop.f32.mrb[0].mxu0
    %155 = vdwg.mxu0
    %vm156 = vcmask 517120
    %157 = vst.msk [vmem:[#allocation2] sm:$0x3] %vm156, %v153
    // Predicated region
    $region18: #{blame_gpt_forward.17} parent=1 // pred_check
      _
    $region19: #{blame_gpt_forward.17} parent=1 // pred_check_branch
      %159 = sbr.rel (0) target = $region21
    $region20: #{blame_gpt_forward.17} parent=1 // pred_region
      %s161 = ssub.s32 32, 32
      %162 = vsyncadd [#allocation3], %s161
      %s164 = sshll.u32 [#allocation2], 4
      %s165 = int_to_ptr.vmem [resolvable:$true] %s164
      %167 = dma.vmem_to_hbm [thread:$0]  %s165, 32, %s4, [#allocation3]
    $region21: #{blame_gpt_forward.17} parent=1 // pred_fallthru
      _
    // Predicated region
    $region22: #{blame_gpt_forward.17} parent=1 // pred_check
      _
    $region23: #{blame_gpt_forward.17} parent=1 // pred_check_branch
      %169 = sbr.rel (0) target = $region25
    $region24: #{blame_gpt_forward.17} parent=1 // pred_region
      %170 = dma.done [#allocation3], 32
    $region25: #{blame_gpt_forward.17} parent=1 // pred_fallthru
      _
    %171 = vsyncpa [#allocation3], 1

</llo_original>
